<compile_context>
chip_gen: v6e
topology: v6e:2x2x1
jax: 0.10.0
libtpu: 0.0.40
codegen_flags: <defaults>
</compile_context>

<pallas_src>
import math
import jax
import jax.numpy as jnp
from jax import lax
from jax.experimental import pallas as pl
from jax.experimental.pallas import tpu as pltpu

# ---- small, module-consistent shapes -------------------------------------
B = 2            # batch
S = 8            # sequence length
D = 128          # embedding_dim (scaled down from 768)
H = 4            # n_heads (scaled down from 12); head_dim = 32
DH = D // H
F = 256          # dim_feedforward (scaled from 2048)
L = 2            # transformer_layers
EPS = 1e-5       # nn.LayerNorm default eps
BS = B * S
NEG = -1e30      # additive mask for cross-batch attention entries

assert F == 2 * D  # FFN bias packs as exactly two 128-lane rows in the slab

ROWS_PER_LAYER = 11                 # slab rows used per transformer layer
SLAB_ROWS = L * ROWS_PER_LAYER + 2  # + final-FFN biases = 24 rows (8-aligned)


def _layer_norm(x, w, b):
    mu = jnp.mean(x, axis=-1, keepdims=True)
    var = jnp.mean((x - mu) ** 2, axis=-1, keepdims=True)
    return (x - mu) * lax.rsqrt(var + EPS) * w + b


# ---------------------------------------------------------------------------
# Kernel
# ---------------------------------------------------------------------------
def encoder_kernel(x_ref, mask_ref, bias_ref,
                   inw_ref, outw_ref, l1w_ref, l2w_ref, fw1_ref, fw2_ref,
                   o_ref):
    f32, bf16 = jnp.float32, jnp.bfloat16
    x = x_ref[...]                                # (BS, D) f32, batch folded
    mask = mask_ref[...]                          # (BS, BS) f32 block-diag additive

    def split_heads(t):                           # (BS, D) -> (H, BS, DH)
        return jnp.transpose(t.reshape(BS, H, DH), (1, 0, 2))

    for l in range(L):                            # unrolled (L = 2)
        base = l * ROWS_PER_LAYER

        # --- multi-head self attention (post-norm TransformerEncoderLayer) ---
        qkv = jnp.dot(x.astype(bf16), inw_ref[l],
                      preferred_element_type=f32)               # (BS, 3D)
        q = qkv[:, :D] + bias_ref[base + 0]       # 1/sqrt(DH) already folded in
        k = qkv[:, D:2 * D] + bias_ref[base + 1]
        v = qkv[:, 2 * D:] + bias_ref[base + 2]

        qh = split_heads(q.astype(bf16))          # (H, BS, DH)
        kh = split_heads(k.astype(bf16))
        vh = split_heads(v.astype(bf16))

        s = jnp.einsum('hqd,hkd->hqk', qh, kh,
                       preferred_element_type=f32)              # (H, BS, BS)
        s = s + mask                              # keep attention within batch elem
        s = s - jnp.max(s, axis=-1, keepdims=True)
        p = jnp.exp(s)
        # approx reciprocal on the EUP: documented ~1e-3 rel divergence vs exact softmax
        p = p * pl.reciprocal(jnp.sum(p, axis=-1, keepdims=True), approx=True)

        ctx = jnp.einsum('hqk,hkd->hqd', p.astype(bf16), vh,
                         preferred_element_type=f32)            # (H, BS, DH)
        attn = jnp.transpose(ctx, (1, 0, 2)).reshape(BS, D)
        attn = jnp.dot(attn.astype(bf16), outw_ref[l],
                       preferred_element_type=f32) + bias_ref[base + 3]

        x = _layer_norm(x + attn, bias_ref[base + 7], bias_ref[base + 8])

        # --- position-wise feed-forward (relu) ---
        hff = jnp.dot(x.astype(bf16), l1w_ref[l],
                      preferred_element_type=f32)               # (BS, F)
        h0 = jnp.maximum(hff[:, :D] + bias_ref[base + 4], 0.0)
        h1 = jnp.maximum(hff[:, D:] + bias_ref[base + 5], 0.0)
        hcat = jnp.concatenate([h0, h1], axis=-1).astype(bf16)  # 128-lane-aligned concat
        ff = jnp.dot(hcat, l2w_ref[l],
                     preferred_element_type=f32) + bias_ref[base + 6]

        x = _layer_norm(x + ff, bias_ref[base + 9], bias_ref[base + 10])

    # --- final ffn: Linear -> ReLU -> Linear ---
    fb = L * ROWS_PER_LAYER
    y = jnp.maximum(jnp.dot(x.astype(bf16), fw1_ref[...],
                            preferred_element_type=f32) + bias_ref[fb + 0], 0.0)
    y = jnp.dot(y.astype(bf16), fw2_ref[...],
                preferred_element_type=f32) + bias_ref[fb + 1]

    # --- AdaptiveAvgPool1d(1) over sequence, per batch element ---
    o_ref[...] = jnp.mean(y.reshape(B, S, D), axis=1)            # (B, D)


# ---------------------------------------------------------------------------
# Parameter prep: fold attention scale + pack small vectors into one slab
# ---------------------------------------------------------------------------
def prepare_inputs(params):
    scale = 1.0 / math.sqrt(DH)
    inw = params["inw"].at[:, :, :D].multiply(scale)     # (L, D, 3D)
    inb = params["inb"].at[:, :D].multiply(scale)        # (L, 3D)

    rows = []
    for l in range(L):
        rows += [
            inb[l, :D], inb[l, D:2 * D], inb[l, 2 * D:],  # q / k / v bias (rows 0-2)
            params["outb"][l],                            # out_proj bias    (row 3)
            params["l1b"][l, :D], params["l1b"][l, D:],   # FFN bias 1       (rows 4-5)
            params["l2b"][l],                             # FFN bias 2       (row 6)
            params["n1w"][l], params["n1b"][l],           # LayerNorm 1      (rows 7-8)
            params["n2w"][l], params["n2b"][l],           # LayerNorm 2      (rows 9-10)
        ]
    rows += [params["fb1"], params["fb2"]]                # final FFN biases
    slab = jnp.stack(rows, axis=0).astype(jnp.float32)    # (SLAB_ROWS, 128)

    bf16 = jnp.bfloat16
    w = dict(inw=inw.astype(bf16), outw=params["outw"].astype(bf16),
             l1w=params["l1w"].astype(bf16), l2w=params["l2w"].astype(bf16),
             fw1=params["fw1"].astype(bf16), fw2=params["fw2"].astype(bf16))
    return slab, w


# ---------------------------------------------------------------------------
# Wrapper
# ---------------------------------------------------------------------------
def single_log_encoder(x, params):
    """x: (B, S, D) float32 embeddings (BERT last_hidden_state analog)."""
    x2d = x.reshape(B * S, D)                # fold batch into the matmul M dim

    bias_slab, w = prepare_inputs(params)

    # Block-diagonal additive mask, precomputed off the kernel critical path.
    row_b = jnp.arange(BS, dtype=jnp.int32) // S
    mask = jnp.where(row_b[:, None] == row_b[None, :], 0.0, NEG).astype(jnp.float32)

    args = (x2d, mask, bias_slab,
            w["inw"], w["outw"], w["l1w"], w["l2w"], w["fw1"], w["fw2"])

    bytes_accessed = sum(a.size * a.dtype.itemsize for a in args) + B * D * 4
    flops = 2 * BS * D * (3 * D + D + 2 * F) * L        # qkv / out-proj / FFN matmuls
    flops += 2 * H * BS * BS * DH * 2 * L                # attention score + value
    flops += 2 * BS * D * D * 2                          # final Linear-ReLU-Linear
    cost = pl.CostEstimate(flops=flops,
                           transcendentals=H * BS * BS * L,
                           bytes_accessed=bytes_accessed)

    vmem_spec = pl.BlockSpec(memory_space=pltpu.MemorySpace.VMEM)
    return pl.pallas_call(
        encoder_kernel,
        out_shape=jax.ShapeDtypeStruct((B, D), jnp.float32),
        in_specs=[vmem_spec] * len(args),     # whole arrays resident, no grid
        out_specs=vmem_spec,
        cost_estimate=cost,
    )(*args)


# ---------------------------------------------------------------------------
# Pure-JAX reference (independent math, same bf16 cast points)
# ---------------------------------------------------------------------------
def reference(x, p):
    scale = 1.0 / math.sqrt(DH)
    bf16, f32 = jnp.bfloat16, jnp.float32
    outs = []
    for b in range(B):
        h = x[b].astype(f32)
        for l in range(L):
            qkv = jnp.dot(h.astype(bf16), p["inw"][l].astype(bf16),
                          preferred_element_type=f32) + p["inb"][l]
            q, k, v = qkv[:, :D] * scale, qkv[:, D:2 * D], qkv[:, 2 * D:]
            heads = []
            for hd in range(H):
                qh = q[:, hd * DH:(hd + 1) * DH].astype(bf16)
                kh = k[:, hd * DH:(hd + 1) * DH].astype(bf16)
                vh = v[:, hd * DH:(hd + 1) * DH].astype(bf16)
                sc = jnp.dot(qh, kh.T, preferred_element_type=f32)
                pr = jax.nn.softmax(sc, axis=-1)
                heads.append(jnp.dot(pr.astype(bf16), vh,
                                     preferred_element_type=f32))
            attn = jnp.concatenate(heads, axis=-1)
            attn = jnp.dot(attn.astype(bf16), p["outw"][l].astype(bf16),
                           preferred_element_type=f32) + p["outb"][l]
            h = _layer_norm(h + attn, p["n1w"][l], p["n1b"][l])
            hf = jnp.maximum(
                jnp.dot(h.astype(bf16), p["l1w"][l].astype(bf16),
                        preferred_element_type=f32) + p["l1b"][l], 0.0)
            ff = jnp.dot(hf.astype(bf16), p["l2w"][l].astype(bf16),
                         preferred_element_type=f32) + p["l2b"][l]
            h = _layer_norm(h + ff, p["n2w"][l], p["n2b"][l])
        y = jnp.maximum(jnp.dot(h.astype(bf16), p["fw1"].astype(bf16),
                                preferred_element_type=f32) + p["fb1"], 0.0)
        y = jnp.dot(y.astype(bf16), p["fw2"].astype(bf16),
                    preferred_element_type=f32) + p["fb2"]
        outs.append(jnp.mean(y, axis=0))
    return jnp.stack(outs)


def init_params(key):
    ks = jax.random.split(key, 12)
    std = 0.02
    f32 = jnp.float32
    return {
        # per-layer attention: in_proj stored transposed -> (L, D, 3D)
        "inw":  jax.random.normal(ks[0], (L, D, 3 * D), f32) * std,
        "inb":  jax.random.normal(ks[1], (L, 3 * D), f32) * std,
        "outw": jax.random.normal(ks[2], (L, D, D), f32) * std,
        "outb": jax.random.normal(ks[3], (L, D), f32) * std,
        # per-layer feed-forward
        "l1w":  jax.random.normal(ks[4], (L, D, F), f32) * std,
        "l1b":  jax.random.normal(ks[5], (L, F), f32) * std,
        "l2w":  jax.random.normal(ks[6], (L, F, D), f32) * std,
        "l2b":  jax.random.normal(ks[7], (L, D), f32) * std,
        # layer norms
        "n1w":  jnp.ones((L, D), f32),
        "n1b":  jnp.zeros((L, D), f32),
        "n2w":  jnp.ones((L, D), f32),
        "n2b":  jnp.zeros((L, D), f32),
        # final ffn
        "fw1":  jax.random.normal(ks[8], (D, D), f32) * std,
        "fb1":  jax.random.normal(ks[9], (D,), f32) * std,
        "fw2":  jax.random.normal(ks[10], (D, D), f32) * std,
        "fb2":  jax.random.normal(ks[11], (D,), f32) * std,
    }


if __name__ == "__main__":
    key = jax.random.PRNGKey(0)
    kx, kp = jax.random.split(key)
    x = jax.random.normal(kx, (B, S, D), jnp.float32)
    params = init_params(kp)

    out = jax.block_until_ready(single_log_encoder(x, params))
    assert out.shape == (B, D), out.shape

    ref = jax.block_until_ready(reference(x, params))
    err = float(jnp.max(jnp.abs(out - ref)))
    assert jnp.allclose(out, ref, rtol=2e-2, atol=3e-3), err

    print("KERNEL_OK")
</pallas_src>

<mosaic_0001>
module attributes {stable_mosaic.version = 11 : i64} {
  func.func @encoder_kernel(%arg0: memref<16x128xf32, #tpu.memory_space<vmem>>, %arg1: memref<16x16xf32, #tpu.memory_space<vmem>>, %arg2: memref<24x128xf32, #tpu.memory_space<vmem>>, %arg3: memref<2x128x384xbf16, #tpu.memory_space<vmem>>, %arg4: memref<2x128x128xbf16, #tpu.memory_space<vmem>>, %arg5: memref<2x128x256xbf16, #tpu.memory_space<vmem>>, %arg6: memref<2x256x128xbf16, #tpu.memory_space<vmem>>, %arg7: memref<128x128xbf16, #tpu.memory_space<vmem>>, %arg8: memref<128x128xbf16, #tpu.memory_space<vmem>>, %arg9: memref<2x128xf32, #tpu.memory_space<vmem>>) attributes {dimension_semantics = [], scalar_prefetch = 0 : i64, scratch_operands = 0 : i64, tpu.core_type = #tpu.core_type<tc>} {
    %c0 = arith.constant 0 : index
    %c0_0 = arith.constant 0 : index
    %0 = vector.load %arg0[%c0, %c0_0] : memref<16x128xf32, #tpu.memory_space<vmem>>, vector<16x128xf32>
    %c0_1 = arith.constant 0 : index
    %c0_2 = arith.constant 0 : index
    %1 = vector.load %arg1[%c0_1, %c0_2] : memref<16x16xf32, #tpu.memory_space<vmem>>, vector<16x16xf32>
    %2 = arith.truncf %0 : vector<16x128xf32> to vector<16x128xbf16>
    %c0_3 = arith.constant 0 : index
    %c0_4 = arith.constant 0 : index
    %c0_5 = arith.constant 0 : index
    %3 = vector.load %arg3[%c0_3, %c0_4, %c0_5] : memref<2x128x384xbf16, #tpu.memory_space<vmem>>, vector<1x128x384xbf16>
    %4 = vector.shape_cast %3 : vector<1x128x384xbf16> to vector<128x384xbf16>
    %cst = arith.constant dense<0.000000e+00> : vector<16x384xf32>
    %5 = tpu.matmul %2, %4, %cst {dimension_numbers = #tpu.dot_dimension_numbers<[1], [0], [0], [1], [0, 0, 1, 1], [], []>} : vector<16x128xbf16>, vector<128x384xbf16>, vector<16x384xf32> -> vector<16x384xf32>
    %6 = vector.extract_strided_slice %5 {offsets = [0, 0], sizes = [16, 128], strides = [1, 1]} : vector<16x384xf32> to vector<16x128xf32>
    %c0_6 = arith.constant 0 : index
    %c0_7 = arith.constant 0 : index
    %7 = vector.load %arg2[%c0_6, %c0_7] : memref<24x128xf32, #tpu.memory_space<vmem>>, vector<1x128xf32>
    %8 = vector.shape_cast %7 : vector<1x128xf32> to vector<128xf32>
    %9 = vector.shape_cast %8 : vector<128xf32> to vector<1x128xf32>
    %10 = vector.broadcast %9 : vector<1x128xf32> to vector<16x128xf32>
    %11 = arith.addf %6, %10 : vector<16x128xf32>
    %12 = vector.extract_strided_slice %5 {offsets = [0, 128], sizes = [16, 128], strides = [1, 1]} : vector<16x384xf32> to vector<16x128xf32>
    %c1 = arith.constant 1 : index
    %c0_8 = arith.constant 0 : index
    %13 = vector.load %arg2[%c1, %c0_8] : memref<24x128xf32, #tpu.memory_space<vmem>>, vector<1x128xf32>
    %14 = vector.shape_cast %13 : vector<1x128xf32> to vector<128xf32>
    %15 = vector.shape_cast %14 : vector<128xf32> to vector<1x128xf32>
    %16 = vector.broadcast %15 : vector<1x128xf32> to vector<16x128xf32>
    %17 = arith.addf %12, %16 : vector<16x128xf32>
    %18 = vector.extract_strided_slice %5 {offsets = [0, 256], sizes = [16, 128], strides = [1, 1]} : vector<16x384xf32> to vector<16x128xf32>
    %c2 = arith.constant 2 : index
    %c0_9 = arith.constant 0 : index
    %19 = vector.load %arg2[%c2, %c0_9] : memref<24x128xf32, #tpu.memory_space<vmem>>, vector<1x128xf32>
    %20 = vector.shape_cast %19 : vector<1x128xf32> to vector<128xf32>
    %21 = vector.shape_cast %20 : vector<128xf32> to vector<1x128xf32>
    %22 = vector.broadcast %21 : vector<1x128xf32> to vector<16x128xf32>
    %23 = arith.addf %18, %22 : vector<16x128xf32>
    %24 = arith.truncf %11 : vector<16x128xf32> to vector<16x128xbf16>
    %25 = vector.shape_cast %24 : vector<16x128xbf16> to vector<16x4x32xbf16>
    %26 = tpu.transpose %25, [1, 0, 2] : vector<16x4x32xbf16> -> vector<4x16x32xbf16>
    %27 = arith.truncf %17 : vector<16x128xf32> to vector<16x128xbf16>
    %28 = vector.shape_cast %27 : vector<16x128xbf16> to vector<16x4x32xbf16>
    %29 = tpu.transpose %28, [1, 0, 2] : vector<16x4x32xbf16> -> vector<4x16x32xbf16>
    %30 = arith.truncf %23 : vector<16x128xf32> to vector<16x128xbf16>
    %31 = vector.shape_cast %30 : vector<16x128xbf16> to vector<16x4x32xbf16>
    %32 = tpu.transpose %31, [1, 0, 2] : vector<16x4x32xbf16> -> vector<4x16x32xbf16>
    "tpu.trace_start"() <{level = 10 : i32, message = "hqd,hkd->hqk"}> : () -> ()
    %cst_10 = arith.constant dense<0.000000e+00> : vector<4x16x16xf32>
    %33 = tpu.matmul %26, %29, %cst_10 {dimension_numbers = #tpu.dot_dimension_numbers<[2], [2], [1], [1], [0, 0, 0, 1, 1, 1], [0], [0]>} : vector<4x16x32xbf16>, vector<4x16x32xbf16>, vector<4x16x16xf32> -> vector<4x16x16xf32>
    "tpu.trace_stop"() : () -> ()
    %34 = vector.shape_cast %1 : vector<16x16xf32> to vector<1x16x16xf32>
    %35 = vector.broadcast %34 : vector<1x16x16xf32> to vector<4x16x16xf32>
    %36 = arith.addf %33, %35 : vector<4x16x16xf32>
    %cst_11 = arith.constant dense<0xFF800000> : vector<4x16xf32>
    %37 = vector.multi_reduction <maximumf>, %36, %cst_11 [2] : vector<4x16x16xf32> to vector<4x16xf32>
    %38 = vector.shape_cast %37 : vector<4x16xf32> to vector<4x16x1xf32>
    %39 = vector.broadcast %38 : vector<4x16x1xf32> to vector<4x16x16xf32>
    %40 = arith.subf %36, %39 : vector<4x16x16xf32>
    %41 = math.exp %40 : vector<4x16x16xf32>
    %cst_12 = arith.constant dense<0.000000e+00> : vector<4x16xf32>
    %42 = vector.multi_reduction <add>, %41, %cst_12 [2] : vector<4x16x16xf32> to vector<4x16xf32>
    %43 = vector.shape_cast %42 : vector<4x16xf32> to vector<4x16x1xf32>
    %44 = tpu.reciprocal %43 {approx = true} : vector<4x16x1xf32> -> vector<4x16x1xf32>
    %45 = vector.broadcast %44 : vector<4x16x1xf32> to vector<4x16x16xf32>
    %46 = arith.mulf %41, %45 : vector<4x16x16xf32>
    %47 = arith.truncf %46 : vector<4x16x16xf32> to vector<4x16x16xbf16>
    "tpu.trace_start"() <{level = 10 : i32, message = "hqk,hkd->hqd"}> : () -> ()
    %cst_13 = arith.constant dense<0.000000e+00> : vector<4x16x32xf32>
    %48 = tpu.matmul %47, %32, %cst_13 {dimension_numbers = #tpu.dot_dimension_numbers<[2], [1], [1], [2], [0, 0, 0, 1, 1, 2], [0], [0]>} : vector<4x16x16xbf16>, vector<4x16x32xbf16>, vector<4x16x32xf32> -> vector<4x16x32xf32>
    "tpu.trace_stop"() : () -> ()
    %49 = tpu.transpose %48, [1, 0, 2] : vector<4x16x32xf32> -> vector<16x4x32xf32>
    %50 = vector.shape_cast %49 : vector<16x4x32xf32> to vector<16x128xf32>
    %51 = arith.truncf %50 : vector<16x128xf32> to vector<16x128xbf16>
    %c0_14 = arith.constant 0 : index
    %c0_15 = arith.constant 0 : index
    %c0_16 = arith.constant 0 : index
    %52 = vector.load %arg4[%c0_14, %c0_15, %c0_16] : memref<2x128x128xbf16, #tpu.memory_space<vmem>>, vector<1x128x128xbf16>
    %53 = vector.shape_cast %52 : vector<1x128x128xbf16> to vector<128x128xbf16>
    %cst_17 = arith.constant dense<0.000000e+00> : vector<16x128xf32>
    %54 = tpu.matmul %51, %53, %cst_17 {dimension_numbers = #tpu.dot_dimension_numbers<[1], [0], [0], [1], [0, 0, 1, 1], [], []>} : vector<16x128xbf16>, vector<128x128xbf16>, vector<16x128xf32> -> vector<16x128xf32>
    %c3 = arith.constant 3 : index
    %c0_18 = arith.constant 0 : index
    %55 = vector.load %arg2[%c3, %c0_18] : memref<24x128xf32, #tpu.memory_space<vmem>>, vector<1x128xf32>
    %56 = vector.shape_cast %55 : vector<1x128xf32> to vector<128xf32>
    %57 = vector.shape_cast %56 : vector<128xf32> to vector<1x128xf32>
    %58 = vector.broadcast %57 : vector<1x128xf32> to vector<16x128xf32>
    %59 = arith.addf %54, %58 : vector<16x128xf32>
    %60 = arith.addf %0, %59 : vector<16x128xf32>
    %c7 = arith.constant 7 : index
    %c0_19 = arith.constant 0 : index
    %61 = vector.load %arg2[%c7, %c0_19] : memref<24x128xf32, #tpu.memory_space<vmem>>, vector<1x128xf32>
    %62 = vector.shape_cast %61 : vector<1x128xf32> to vector<128xf32>
    %c8 = arith.constant 8 : index
    %c0_20 = arith.constant 0 : index
    %63 = vector.load %arg2[%c8, %c0_20] : memref<24x128xf32, #tpu.memory_space<vmem>>, vector<1x128xf32>
    %64 = vector.shape_cast %63 : vector<1x128xf32> to vector<128xf32>
    %cst_21 = arith.constant dense<0.000000e+00> : vector<16xf32>
    %65 = vector.multi_reduction <add>, %60, %cst_21 [1] : vector<16x128xf32> to vector<16xf32>
    %66 = vector.shape_cast %65 : vector<16xf32> to vector<16x1xf32>
    %cst_22 = arith.constant 1.280000e+02 : f32
    %67 = vector.broadcast %cst_22 : f32 to vector<16x1xf32>
    %68 = arith.divf %66, %67 : vector<16x1xf32>
    %69 = vector.broadcast %68 : vector<16x1xf32> to vector<16x128xf32>
    %70 = arith.subf %60, %69 : vector<16x128xf32>
    %71 = arith.mulf %70, %70 : vector<16x128xf32>
    %cst_23 = arith.constant dense<0.000000e+00> : vector<16xf32>
    %72 = vector.multi_reduction <add>, %71, %cst_23 [1] : vector<16x128xf32> to vector<16xf32>
    %73 = vector.shape_cast %72 : vector<16xf32> to vector<16x1xf32>
    %cst_24 = arith.constant 1.280000e+02 : f32
    %74 = vector.broadcast %cst_24 : f32 to vector<16x1xf32>
    %75 = arith.divf %73, %74 : vector<16x1xf32>
    %76 = vector.broadcast %68 : vector<16x1xf32> to vector<16x128xf32>
    %77 = arith.subf %60, %76 : vector<16x128xf32>
    %cst_25 = arith.constant 9.99999974E-6 : f32
    %78 = vector.broadcast %cst_25 : f32 to vector<16x1xf32>
    %79 = arith.addf %75, %78 : vector<16x1xf32>
    %80 = math.rsqrt %79 : vector<16x1xf32>
    %81 = vector.broadcast %80 : vector<16x1xf32> to vector<16x128xf32>
    %82 = arith.mulf %77, %81 : vector<16x128xf32>
    %83 = vector.shape_cast %62 : vector<128xf32> to vector<1x128xf32>
    %84 = vector.broadcast %83 : vector<1x128xf32> to vector<16x128xf32>
    %85 = arith.mulf %82, %84 : vector<16x128xf32>
    %86 = vector.shape_cast %64 : vector<128xf32> to vector<1x128xf32>
    %87 = vector.broadcast %86 : vector<1x128xf32> to vector<16x128xf32>
    %88 = arith.addf %85, %87 : vector<16x128xf32>
    %89 = arith.truncf %88 : vector<16x128xf32> to vector<16x128xbf16>
    %c0_26 = arith.constant 0 : index
    %c0_27 = arith.constant 0 : index
    %c0_28 = arith.constant 0 : index
    %90 = vector.load %arg5[%c0_26, %c0_27, %c0_28] : memref<2x128x256xbf16, #tpu.memory_space<vmem>>, vector<1x128x256xbf16>
    %91 = vector.shape_cast %90 : vector<1x128x256xbf16> to vector<128x256xbf16>
    %cst_29 = arith.constant dense<0.000000e+00> : vector<16x256xf32>
    %92 = tpu.matmul %89, %91, %cst_29 {dimension_numbers = #tpu.dot_dimension_numbers<[1], [0], [0], [1], [0, 0, 1, 1], [], []>} : vector<16x128xbf16>, vector<128x256xbf16>, vector<16x256xf32> -> vector<16x256xf32>
    %93 = vector.extract_strided_slice %92 {offsets = [0, 0], sizes = [16, 128], strides = [1, 1]} : vector<16x256xf32> to vector<16x128xf32>
    %c4 = arith.constant 4 : index
    %c0_30 = arith.constant 0 : index
    %94 = vector.load %arg2[%c4, %c0_30] : memref<24x128xf32, #tpu.memory_space<vmem>>, vector<1x128xf32>
    %95 = vector.shape_cast %94 : vector<1x128xf32> to vector<128xf32>
    %96 = vector.shape_cast %95 : vector<128xf32> to vector<1x128xf32>
    %97 = vector.broadcast %96 : vector<1x128xf32> to vector<16x128xf32>
    %98 = arith.addf %93, %97 : vector<16x128xf32>
    %cst_31 = arith.constant 0.000000e+00 : f32
    %99 = vector.broadcast %cst_31 : f32 to vector<16x128xf32>
    %100 = arith.maximumf %98, %99 : vector<16x128xf32>
    %101 = vector.extract_strided_slice %92 {offsets = [0, 128], sizes = [16, 128], strides = [1, 1]} : vector<16x256xf32> to vector<16x128xf32>
    %c5 = arith.constant 5 : index
    %c0_32 = arith.constant 0 : index
    %102 = vector.load %arg2[%c5, %c0_32] : memref<24x128xf32, #tpu.memory_space<vmem>>, vector<1x128xf32>
    %103 = vector.shape_cast %102 : vector<1x128xf32> to vector<128xf32>
    %104 = vector.shape_cast %103 : vector<128xf32> to vector<1x128xf32>
    %105 = vector.broadcast %104 : vector<1x128xf32> to vector<16x128xf32>
    %106 = arith.addf %101, %105 : vector<16x128xf32>
    %cst_33 = arith.constant 0.000000e+00 : f32
    %107 = vector.broadcast %cst_33 : f32 to vector<16x128xf32>
    %108 = arith.maximumf %106, %107 : vector<16x128xf32>
    %109 = tpu.concatenate %100, %108 in 1 : vector<16x128xf32>, vector<16x128xf32> -> vector<16x256xf32>
    %110 = arith.truncf %109 : vector<16x256xf32> to vector<16x256xbf16>
    %c0_34 = arith.constant 0 : index
    %c0_35 = arith.constant 0 : index
    %c0_36 = arith.constant 0 : index
    %111 = vector.load %arg6[%c0_34, %c0_35, %c0_36] : memref<2x256x128xbf16, #tpu.memory_space<vmem>>, vector<1x256x128xbf16>
    %112 = vector.shape_cast %111 : vector<1x256x128xbf16> to vector<256x128xbf16>
    %cst_37 = arith.constant dense<0.000000e+00> : vector<16x128xf32>
    %113 = tpu.matmul %110, %112, %cst_37 {dimension_numbers = #tpu.dot_dimension_numbers<[1], [0], [0], [1], [0, 0, 1, 1], [], []>} : vector<16x256xbf16>, vector<256x128xbf16>, vector<16x128xf32> -> vector<16x128xf32>
    %c6 = arith.constant 6 : index
    %c0_38 = arith.constant 0 : index
    %114 = vector.load %arg2[%c6, %c0_38] : memref<24x128xf32, #tpu.memory_space<vmem>>, vector<1x128xf32>
    %115 = vector.shape_cast %114 : vector<1x128xf32> to vector<128xf32>
    %116 = vector.shape_cast %115 : vector<128xf32> to vector<1x128xf32>
    %117 = vector.broadcast %116 : vector<1x128xf32> to vector<16x128xf32>
    %118 = arith.addf %113, %117 : vector<16x128xf32>
    %119 = arith.addf %88, %118 : vector<16x128xf32>
    %c9 = arith.constant 9 : index
    %c0_39 = arith.constant 0 : index
    %120 = vector.load %arg2[%c9, %c0_39] : memref<24x128xf32, #tpu.memory_space<vmem>>, vector<1x128xf32>
    %121 = vector.shape_cast %120 : vector<1x128xf32> to vector<128xf32>
    %c10 = arith.constant 10 : index
    %c0_40 = arith.constant 0 : index
    %122 = vector.load %arg2[%c10, %c0_40] : memref<24x128xf32, #tpu.memory_space<vmem>>, vector<1x128xf32>
    %123 = vector.shape_cast %122 : vector<1x128xf32> to vector<128xf32>
    %cst_41 = arith.constant dense<0.000000e+00> : vector<16xf32>
    %124 = vector.multi_reduction <add>, %119, %cst_41 [1] : vector<16x128xf32> to vector<16xf32>
    %125 = vector.shape_cast %124 : vector<16xf32> to vector<16x1xf32>
    %cst_42 = arith.constant 1.280000e+02 : f32
    %126 = vector.broadcast %cst_42 : f32 to vector<16x1xf32>
    %127 = arith.divf %125, %126 : vector<16x1xf32>
    %128 = vector.broadcast %127 : vector<16x1xf32> to vector<16x128xf32>
    %129 = arith.subf %119, %128 : vector<16x128xf32>
    %130 = arith.mulf %129, %129 : vector<16x128xf32>
    %cst_43 = arith.constant dense<0.000000e+00> : vector<16xf32>
    %131 = vector.multi_reduction <add>, %130, %cst_43 [1] : vector<16x128xf32> to vector<16xf32>
    %132 = vector.shape_cast %131 : vector<16xf32> to vector<16x1xf32>
    %cst_44 = arith.constant 1.280000e+02 : f32
    %133 = vector.broadcast %cst_44 : f32 to vector<16x1xf32>
    %134 = arith.divf %132, %133 : vector<16x1xf32>
    %135 = vector.broadcast %127 : vector<16x1xf32> to vector<16x128xf32>
    %136 = arith.subf %119, %135 : vector<16x128xf32>
    %cst_45 = arith.constant 9.99999974E-6 : f32
    %137 = vector.broadcast %cst_45 : f32 to vector<16x1xf32>
    %138 = arith.addf %134, %137 : vector<16x1xf32>
    %139 = math.rsqrt %138 : vector<16x1xf32>
    %140 = vector.broadcast %139 : vector<16x1xf32> to vector<16x128xf32>
    %141 = arith.mulf %136, %140 : vector<16x128xf32>
    %142 = vector.shape_cast %121 : vector<128xf32> to vector<1x128xf32>
    %143 = vector.broadcast %142 : vector<1x128xf32> to vector<16x128xf32>
    %144 = arith.mulf %141, %143 : vector<16x128xf32>
    %145 = vector.shape_cast %123 : vector<128xf32> to vector<1x128xf32>
    %146 = vector.broadcast %145 : vector<1x128xf32> to vector<16x128xf32>
    %147 = arith.addf %144, %146 : vector<16x128xf32>
    %148 = arith.truncf %147 : vector<16x128xf32> to vector<16x128xbf16>
    %c1_46 = arith.constant 1 : index
    %c0_47 = arith.constant 0 : index
    %c0_48 = arith.constant 0 : index
    %149 = vector.load %arg3[%c1_46, %c0_47, %c0_48] : memref<2x128x384xbf16, #tpu.memory_space<vmem>>, vector<1x128x384xbf16>
    %150 = vector.shape_cast %149 : vector<1x128x384xbf16> to vector<128x384xbf16>
    %cst_49 = arith.constant dense<0.000000e+00> : vector<16x384xf32>
    %151 = tpu.matmul %148, %150, %cst_49 {dimension_numbers = #tpu.dot_dimension_numbers<[1], [0], [0], [1], [0, 0, 1, 1], [], []>} : vector<16x128xbf16>, vector<128x384xbf16>, vector<16x384xf32> -> vector<16x384xf32>
    %152 = vector.extract_strided_slice %151 {offsets = [0, 0], sizes = [16, 128], strides = [1, 1]} : vector<16x384xf32> to vector<16x128xf32>
    %c11 = arith.constant 11 : index
    %c0_50 = arith.constant 0 : index
    %153 = vector.load %arg2[%c11, %c0_50] : memref<24x128xf32, #tpu.memory_space<vmem>>, vector<1x128xf32>
    %154 = vector.shape_cast %153 : vector<1x128xf32> to vector<128xf32>
    %155 = vector.shape_cast %154 : vector<128xf32> to vector<1x128xf32>
    %156 = vector.broadcast %155 : vector<1x128xf32> to vector<16x128xf32>
    %157 = arith.addf %152, %156 : vector<16x128xf32>
    %158 = vector.extract_strided_slice %151 {offsets = [0, 128], sizes = [16, 128], strides = [1, 1]} : vector<16x384xf32> to vector<16x128xf32>
    %c12 = arith.constant 12 : index
    %c0_51 = arith.constant 0 : index
    %159 = vector.load %arg2[%c12, %c0_51] : memref<24x128xf32, #tpu.memory_space<vmem>>, vector<1x128xf32>
    %160 = vector.shape_cast %159 : vector<1x128xf32> to vector<128xf32>
    %161 = vector.shape_cast %160 : vector<128xf32> to vector<1x128xf32>
    %162 = vector.broadcast %161 : vector<1x128xf32> to vector<16x128xf32>
    %163 = arith.addf %158, %162 : vector<16x128xf32>
    %164 = vector.extract_strided_slice %151 {offsets = [0, 256], sizes = [16, 128], strides = [1, 1]} : vector<16x384xf32> to vector<16x128xf32>
    %c13 = arith.constant 13 : index
    %c0_52 = arith.constant 0 : index
    %165 = vector.load %arg2[%c13, %c0_52] : memref<24x128xf32, #tpu.memory_space<vmem>>, vector<1x128xf32>
    %166 = vector.shape_cast %165 : vector<1x128xf32> to vector<128xf32>
    %167 = vector.shape_cast %166 : vector<128xf32> to vector<1x128xf32>
    %168 = vector.broadcast %167 : vector<1x128xf32> to vector<16x128xf32>
    %169 = arith.addf %164, %168 : vector<16x128xf32>
    %170 = arith.truncf %157 : vector<16x128xf32> to vector<16x128xbf16>
    %171 = vector.shape_cast %170 : vector<16x128xbf16> to vector<16x4x32xbf16>
    %172 = tpu.transpose %171, [1, 0, 2] : vector<16x4x32xbf16> -> vector<4x16x32xbf16>
    %173 = arith.truncf %163 : vector<16x128xf32> to vector<16x128xbf16>
    %174 = vector.shape_cast %173 : vector<16x128xbf16> to vector<16x4x32xbf16>
    %175 = tpu.transpose %174, [1, 0, 2] : vector<16x4x32xbf16> -> vector<4x16x32xbf16>
    %176 = arith.truncf %169 : vector<16x128xf32> to vector<16x128xbf16>
    %177 = vector.shape_cast %176 : vector<16x128xbf16> to vector<16x4x32xbf16>
    %178 = tpu.transpose %177, [1, 0, 2] : vector<16x4x32xbf16> -> vector<4x16x32xbf16>
    "tpu.trace_start"() <{level = 10 : i32, message = "hqd,hkd->hqk"}> : () -> ()
    %cst_53 = arith.constant dense<0.000000e+00> : vector<4x16x16xf32>
    %179 = tpu.matmul %172, %175, %cst_53 {dimension_numbers = #tpu.dot_dimension_numbers<[2], [2], [1], [1], [0, 0, 0, 1, 1, 1], [0], [0]>} : vector<4x16x32xbf16>, vector<4x16x32xbf16>, vector<4x16x16xf32> -> vector<4x16x16xf32>
    "tpu.trace_stop"() : () -> ()
    %180 = vector.shape_cast %1 : vector<16x16xf32> to vector<1x16x16xf32>
    %181 = vector.broadcast %180 : vector<1x16x16xf32> to vector<4x16x16xf32>
    %182 = arith.addf %179, %181 : vector<4x16x16xf32>
    %cst_54 = arith.constant dense<0xFF800000> : vector<4x16xf32>
    %183 = vector.multi_reduction <maximumf>, %182, %cst_54 [2] : vector<4x16x16xf32> to vector<4x16xf32>
    %184 = vector.shape_cast %183 : vector<4x16xf32> to vector<4x16x1xf32>
    %185 = vector.broadcast %184 : vector<4x16x1xf32> to vector<4x16x16xf32>
    %186 = arith.subf %182, %185 : vector<4x16x16xf32>
    %187 = math.exp %186 : vector<4x16x16xf32>
    %cst_55 = arith.constant dense<0.000000e+00> : vector<4x16xf32>
    %188 = vector.multi_reduction <add>, %187, %cst_55 [2] : vector<4x16x16xf32> to vector<4x16xf32>
    %189 = vector.shape_cast %188 : vector<4x16xf32> to vector<4x16x1xf32>
    %190 = tpu.reciprocal %189 {approx = true} : vector<4x16x1xf32> -> vector<4x16x1xf32>
    %191 = vector.broadcast %190 : vector<4x16x1xf32> to vector<4x16x16xf32>
    %192 = arith.mulf %187, %191 : vector<4x16x16xf32>
    %193 = arith.truncf %192 : vector<4x16x16xf32> to vector<4x16x16xbf16>
    "tpu.trace_start"() <{level = 10 : i32, message = "hqk,hkd->hqd"}> : () -> ()
    %cst_56 = arith.constant dense<0.000000e+00> : vector<4x16x32xf32>
    %194 = tpu.matmul %193, %178, %cst_56 {dimension_numbers = #tpu.dot_dimension_numbers<[2], [1], [1], [2], [0, 0, 0, 1, 1, 2], [0], [0]>} : vector<4x16x16xbf16>, vector<4x16x32xbf16>, vector<4x16x32xf32> -> vector<4x16x32xf32>
    "tpu.trace_stop"() : () -> ()
    %195 = tpu.transpose %194, [1, 0, 2] : vector<4x16x32xf32> -> vector<16x4x32xf32>
    %196 = vector.shape_cast %195 : vector<16x4x32xf32> to vector<16x128xf32>
    %197 = arith.truncf %196 : vector<16x128xf32> to vector<16x128xbf16>
    %c1_57 = arith.constant 1 : index
    %c0_58 = arith.constant 0 : index
    %c0_59 = arith.constant 0 : index
    %198 = vector.load %arg4[%c1_57, %c0_58, %c0_59] : memref<2x128x128xbf16, #tpu.memory_space<vmem>>, vector<1x128x128xbf16>
    %199 = vector.shape_cast %198 : vector<1x128x128xbf16> to vector<128x128xbf16>
    %cst_60 = arith.constant dense<0.000000e+00> : vector<16x128xf32>
    %200 = tpu.matmul %197, %199, %cst_60 {dimension_numbers = #tpu.dot_dimension_numbers<[1], [0], [0], [1], [0, 0, 1, 1], [], []>} : vector<16x128xbf16>, vector<128x128xbf16>, vector<16x128xf32> -> vector<16x128xf32>
    %c14 = arith.constant 14 : index
    %c0_61 = arith.constant 0 : index
    %201 = vector.load %arg2[%c14, %c0_61] : memref<24x128xf32, #tpu.memory_space<vmem>>, vector<1x128xf32>
    %202 = vector.shape_cast %201 : vector<1x128xf32> to vector<128xf32>
    %203 = vector.shape_cast %202 : vector<128xf32> to vector<1x128xf32>
    %204 = vector.broadcast %203 : vector<1x128xf32> to vector<16x128xf32>
    %205 = arith.addf %200, %204 : vector<16x128xf32>
    %206 = arith.addf %147, %205 : vector<16x128xf32>
    %c18 = arith.constant 18 : index
    %c0_62 = arith.constant 0 : index
    %207 = vector.load %arg2[%c18, %c0_62] : memref<24x128xf32, #tpu.memory_space<vmem>>, vector<1x128xf32>
    %208 = vector.shape_cast %207 : vector<1x128xf32> to vector<128xf32>
    %c19 = arith.constant 19 : index
    %c0_63 = arith.constant 0 : index
    %209 = vector.load %arg2[%c19, %c0_63] : memref<24x128xf32, #tpu.memory_space<vmem>>, vector<1x128xf32>
    %210 = vector.shape_cast %209 : vector<1x128xf32> to vector<128xf32>
    %cst_64 = arith.constant dense<0.000000e+00> : vector<16xf32>
    %211 = vector.multi_reduction <add>, %206, %cst_64 [1] : vector<16x128xf32> to vector<16xf32>
    %212 = vector.shape_cast %211 : vector<16xf32> to vector<16x1xf32>
    %cst_65 = arith.constant 1.280000e+02 : f32
    %213 = vector.broadcast %cst_65 : f32 to vector<16x1xf32>
    %214 = arith.divf %212, %213 : vector<16x1xf32>
    %215 = vector.broadcast %214 : vector<16x1xf32> to vector<16x128xf32>
    %216 = arith.subf %206, %215 : vector<16x128xf32>
    %217 = arith.mulf %216, %216 : vector<16x128xf32>
    %cst_66 = arith.constant dense<0.000000e+00> : vector<16xf32>
    %218 = vector.multi_reduction <add>, %217, %cst_66 [1] : vector<16x128xf32> to vector<16xf32>
    %219 = vector.shape_cast %218 : vector<16xf32> to vector<16x1xf32>
    %cst_67 = arith.constant 1.280000e+02 : f32
    %220 = vector.broadcast %cst_67 : f32 to vector<16x1xf32>
    %221 = arith.divf %219, %220 : vector<16x1xf32>
    %222 = vector.broadcast %214 : vector<16x1xf32> to vector<16x128xf32>
    %223 = arith.subf %206, %222 : vector<16x128xf32>
    %cst_68 = arith.constant 9.99999974E-6 : f32
    %224 = vector.broadcast %cst_68 : f32 to vector<16x1xf32>
    %225 = arith.addf %221, %224 : vector<16x1xf32>
    %226 = math.rsqrt %225 : vector<16x1xf32>
    %227 = vector.broadcast %226 : vector<16x1xf32> to vector<16x128xf32>
    %228 = arith.mulf %223, %227 : vector<16x128xf32>
    %229 = vector.shape_cast %208 : vector<128xf32> to vector<1x128xf32>
    %230 = vector.broadcast %229 : vector<1x128xf32> to vector<16x128xf32>
    %231 = arith.mulf %228, %230 : vector<16x128xf32>
    %232 = vector.shape_cast %210 : vector<128xf32> to vector<1x128xf32>
    %233 = vector.broadcast %232 : vector<1x128xf32> to vector<16x128xf32>
    %234 = arith.addf %231, %233 : vector<16x128xf32>
    %235 = arith.truncf %234 : vector<16x128xf32> to vector<16x128xbf16>
    %c1_69 = arith.constant 1 : index
    %c0_70 = arith.constant 0 : index
    %c0_71 = arith.constant 0 : index
    %236 = vector.load %arg5[%c1_69, %c0_70, %c0_71] : memref<2x128x256xbf16, #tpu.memory_space<vmem>>, vector<1x128x256xbf16>
    %237 = vector.shape_cast %236 : vector<1x128x256xbf16> to vector<128x256xbf16>
    %cst_72 = arith.constant dense<0.000000e+00> : vector<16x256xf32>
    %238 = tpu.matmul %235, %237, %cst_72 {dimension_numbers = #tpu.dot_dimension_numbers<[1], [0], [0], [1], [0, 0, 1, 1], [], []>} : vector<16x128xbf16>, vector<128x256xbf16>, vector<16x256xf32> -> vector<16x256xf32>
    %239 = vector.extract_strided_slice %238 {offsets = [0, 0], sizes = [16, 128], strides = [1, 1]} : vector<16x256xf32> to vector<16x128xf32>
    %c15 = arith.constant 15 : index
    %c0_73 = arith.constant 0 : index
    %240 = vector.load %arg2[%c15, %c0_73] : memref<24x128xf32, #tpu.memory_space<vmem>>, vector<1x128xf32>
    %241 = vector.shape_cast %240 : vector<1x128xf32> to vector<128xf32>
    %242 = vector.shape_cast %241 : vector<128xf32> to vector<1x128xf32>
    %243 = vector.broadcast %242 : vector<1x128xf32> to vector<16x128xf32>
    %244 = arith.addf %239, %243 : vector<16x128xf32>
    %cst_74 = arith.constant 0.000000e+00 : f32
    %245 = vector.broadcast %cst_74 : f32 to vector<16x128xf32>
    %246 = arith.maximumf %244, %245 : vector<16x128xf32>
    %247 = vector.extract_strided_slice %238 {offsets = [0, 128], sizes = [16, 128], strides = [1, 1]} : vector<16x256xf32> to vector<16x128xf32>
    %c16 = arith.constant 16 : index
    %c0_75 = arith.constant 0 : index
    %248 = vector.load %arg2[%c16, %c0_75] : memref<24x128xf32, #tpu.memory_space<vmem>>, vector<1x128xf32>
    %249 = vector.shape_cast %248 : vector<1x128xf32> to vector<128xf32>
    %250 = vector.shape_cast %249 : vector<128xf32> to vector<1x128xf32>
    %251 = vector.broadcast %250 : vector<1x128xf32> to vector<16x128xf32>
    %252 = arith.addf %247, %251 : vector<16x128xf32>
    %cst_76 = arith.constant 0.000000e+00 : f32
    %253 = vector.broadcast %cst_76 : f32 to vector<16x128xf32>
    %254 = arith.maximumf %252, %253 : vector<16x128xf32>
    %255 = tpu.concatenate %246, %254 in 1 : vector<16x128xf32>, vector<16x128xf32> -> vector<16x256xf32>
    %256 = arith.truncf %255 : vector<16x256xf32> to vector<16x256xbf16>
    %c1_77 = arith.constant 1 : index
    %c0_78 = arith.constant 0 : index
    %c0_79 = arith.constant 0 : index
    %257 = vector.load %arg6[%c1_77, %c0_78, %c0_79] : memref<2x256x128xbf16, #tpu.memory_space<vmem>>, vector<1x256x128xbf16>
    %258 = vector.shape_cast %257 : vector<1x256x128xbf16> to vector<256x128xbf16>
    %cst_80 = arith.constant dense<0.000000e+00> : vector<16x128xf32>
    %259 = tpu.matmul %256, %258, %cst_80 {dimension_numbers = #tpu.dot_dimension_numbers<[1], [0], [0], [1], [0, 0, 1, 1], [], []>} : vector<16x256xbf16>, vector<256x128xbf16>, vector<16x128xf32> -> vector<16x128xf32>
    %c17 = arith.constant 17 : index
    %c0_81 = arith.constant 0 : index
    %260 = vector.load %arg2[%c17, %c0_81] : memref<24x128xf32, #tpu.memory_space<vmem>>, vector<1x128xf32>
    %261 = vector.shape_cast %260 : vector<1x128xf32> to vector<128xf32>
    %262 = vector.shape_cast %261 : vector<128xf32> to vector<1x128xf32>
    %263 = vector.broadcast %262 : vector<1x128xf32> to vector<16x128xf32>
    %264 = arith.addf %259, %263 : vector<16x128xf32>
    %265 = arith.addf %234, %264 : vector<16x128xf32>
    %c20 = arith.constant 20 : index
    %c0_82 = arith.constant 0 : index
    %266 = vector.load %arg2[%c20, %c0_82] : memref<24x128xf32, #tpu.memory_space<vmem>>, vector<1x128xf32>
    %267 = vector.shape_cast %266 : vector<1x128xf32> to vector<128xf32>
    %c21 = arith.constant 21 : index
    %c0_83 = arith.constant 0 : index
    %268 = vector.load %arg2[%c21, %c0_83] : memref<24x128xf32, #tpu.memory_space<vmem>>, vector<1x128xf32>
    %269 = vector.shape_cast %268 : vector<1x128xf32> to vector<128xf32>
    %cst_84 = arith.constant dense<0.000000e+00> : vector<16xf32>
    %270 = vector.multi_reduction <add>, %265, %cst_84 [1] : vector<16x128xf32> to vector<16xf32>
    %271 = vector.shape_cast %270 : vector<16xf32> to vector<16x1xf32>
    %cst_85 = arith.constant 1.280000e+02 : f32
    %272 = vector.broadcast %cst_85 : f32 to vector<16x1xf32>
    %273 = arith.divf %271, %272 : vector<16x1xf32>
    %274 = vector.broadcast %273 : vector<16x1xf32> to vector<16x128xf32>
    %275 = arith.subf %265, %274 : vector<16x128xf32>
    %276 = arith.mulf %275, %275 : vector<16x128xf32>
    %cst_86 = arith.constant dense<0.000000e+00> : vector<16xf32>
    %277 = vector.multi_reduction <add>, %276, %cst_86 [1] : vector<16x128xf32> to vector<16xf32>
    %278 = vector.shape_cast %277 : vector<16xf32> to vector<16x1xf32>
    %cst_87 = arith.constant 1.280000e+02 : f32
    %279 = vector.broadcast %cst_87 : f32 to vector<16x1xf32>
    %280 = arith.divf %278, %279 : vector<16x1xf32>
    %281 = vector.broadcast %273 : vector<16x1xf32> to vector<16x128xf32>
    %282 = arith.subf %265, %281 : vector<16x128xf32>
    %cst_88 = arith.constant 9.99999974E-6 : f32
    %283 = vector.broadcast %cst_88 : f32 to vector<16x1xf32>
    %284 = arith.addf %280, %283 : vector<16x1xf32>
    %285 = math.rsqrt %284 : vector<16x1xf32>
    %286 = vector.broadcast %285 : vector<16x1xf32> to vector<16x128xf32>
    %287 = arith.mulf %282, %286 : vector<16x128xf32>
    %288 = vector.shape_cast %267 : vector<128xf32> to vector<1x128xf32>
    %289 = vector.broadcast %288 : vector<1x128xf32> to vector<16x128xf32>
    %290 = arith.mulf %287, %289 : vector<16x128xf32>
    %291 = vector.shape_cast %269 : vector<128xf32> to vector<1x128xf32>
    %292 = vector.broadcast %291 : vector<1x128xf32> to vector<16x128xf32>
    %293 = arith.addf %290, %292 : vector<16x128xf32>
    %294 = arith.truncf %293 : vector<16x128xf32> to vector<16x128xbf16>
    %c0_89 = arith.constant 0 : index
    %c0_90 = arith.constant 0 : index
    %295 = vector.load %arg7[%c0_89, %c0_90] : memref<128x128xbf16, #tpu.memory_space<vmem>>, vector<128x128xbf16>
    %cst_91 = arith.constant dense<0.000000e+00> : vector<16x128xf32>
    %296 = tpu.matmul %294, %295, %cst_91 {dimension_numbers = #tpu.dot_dimension_numbers<[1], [0], [0], [1], [0, 0, 1, 1], [], []>} : vector<16x128xbf16>, vector<128x128xbf16>, vector<16x128xf32> -> vector<16x128xf32>
    %c22 = arith.constant 22 : index
    %c0_92 = arith.constant 0 : index
    %297 = vector.load %arg2[%c22, %c0_92] : memref<24x128xf32, #tpu.memory_space<vmem>>, vector<1x128xf32>
    %298 = vector.shape_cast %297 : vector<1x128xf32> to vector<128xf32>
    %299 = vector.shape_cast %298 : vector<128xf32> to vector<1x128xf32>
    %300 = vector.broadcast %299 : vector<1x128xf32> to vector<16x128xf32>
    %301 = arith.addf %296, %300 : vector<16x128xf32>
    %cst_93 = arith.constant 0.000000e+00 : f32
    %302 = vector.broadcast %cst_93 : f32 to vector<16x128xf32>
    %303 = arith.maximumf %301, %302 : vector<16x128xf32>
    %304 = arith.truncf %303 : vector<16x128xf32> to vector<16x128xbf16>
    %c0_94 = arith.constant 0 : index
    %c0_95 = arith.constant 0 : index
    %305 = vector.load %arg8[%c0_94, %c0_95] : memref<128x128xbf16, #tpu.memory_space<vmem>>, vector<128x128xbf16>
    %cst_96 = arith.constant dense<0.000000e+00> : vector<16x128xf32>
    %306 = tpu.matmul %304, %305, %cst_96 {dimension_numbers = #tpu.dot_dimension_numbers<[1], [0], [0], [1], [0, 0, 1, 1], [], []>} : vector<16x128xbf16>, vector<128x128xbf16>, vector<16x128xf32> -> vector<16x128xf32>
    %c23 = arith.constant 23 : index
    %c0_97 = arith.constant 0 : index
    %307 = vector.load %arg2[%c23, %c0_97] : memref<24x128xf32, #tpu.memory_space<vmem>>, vector<1x128xf32>
    %308 = vector.shape_cast %307 : vector<1x128xf32> to vector<128xf32>
    %309 = vector.shape_cast %308 : vector<128xf32> to vector<1x128xf32>
    %310 = vector.broadcast %309 : vector<1x128xf32> to vector<16x128xf32>
    %311 = arith.addf %306, %310 : vector<16x128xf32>
    %312 = vector.shape_cast %311 : vector<16x128xf32> to vector<2x8x128xf32>
    %cst_98 = arith.constant dense<0.000000e+00> : vector<2x128xf32>
    %313 = vector.multi_reduction <add>, %312, %cst_98 [1] : vector<2x8x128xf32> to vector<2x128xf32>
    %cst_99 = arith.constant 8.000000e+00 : f32
    %314 = vector.broadcast %cst_99 : f32 to vector<2x128xf32>
    %315 = arith.divf %313, %314 : vector<2x128xf32>
    %c0_100 = arith.constant 0 : index
    %c0_101 = arith.constant 0 : index
    %316 = vector.load %arg9[%c0_100, %c0_101] : memref<2x128xf32, #tpu.memory_space<vmem>>, vector<2x128xf32>
    tpu.vector_store %arg9[%c0_100, %c0_101], %315 {strides = array<i32>} : memref<2x128xf32, #tpu.memory_space<vmem>>, vector<2x128xf32>,
    return
  }
}

</mosaic_0001>

<llo_original>
// kernel: tpu_custom_call.1
$region0: #{tpu_custom_call.1}
  #allocation0 [shape = 'u32[]', space=smem, size = 0x4, offset = 0x4, fixed_abs, tag = 'smem constant byte address 0x4 - core index']
  #allocation1 [shape = 'u32[144,128]{1,0:T(1,128)}', space=vmem, size = 0x12000, scoped, tag = 'internal scratch']
  %s0 = inlined_call_operand.hbm [shape: f32[16,128], index: 0, kind: input, shape index: {}]
  %s1 = inlined_call_operand.hbm [shape: f32[16,16], index: 1, kind: input, shape index: {}]
  %s2 = inlined_call_operand.hbm [shape: f32[24,128], index: 2, kind: input, shape index: {}]
  %s3 = inlined_call_operand.hbm [shape: bf16[2,128,384], index: 3, kind: input, shape index: {}]
  %s4 = inlined_call_operand.hbm [shape: bf16[2,128,128], index: 4, kind: input, shape index: {}]
  %s5 = inlined_call_operand.hbm [shape: bf16[2,128,256], index: 5, kind: input, shape index: {}]
  %s6 = inlined_call_operand.hbm [shape: bf16[2,256,128], index: 6, kind: input, shape index: {}]
  %s7 = inlined_call_operand.hbm [shape: bf16[128,128], index: 7, kind: input, shape index: {}]
  %s8 = inlined_call_operand.hbm [shape: bf16[128,128], index: 8, kind: input, shape index: {}]
  %s9 = inlined_call_operand.hbm [shape: f32[2,128], index: 9, kind: output, shape index: {}]
  %s10 = sld [smem:[#allocation0]]
  $region82: #{tpu_custom_call.1} parent=0
    _
  %s12 = ssub.s32 1, %s10
  %s13 = scalar_select 0, %s12, %s10
  $region1: #{tpu_custom_call.1} parent=0
    #allocation2 [shape = 'u8[8192]{0}', space=vmem, size = 0x2000, scoped, tag = 'input window, operand 0, single buffered']
    #allocation3 [shape = 's32[1]{0}', space=sflag, size = 0x4, scoped, tag = 'scoped memory for tpu_custom_call.1']
    #allocation4 [shape = 's32[1]{0}', space=sflag, size = 0x4, scoped, tag = 'scoped memory for tpu_custom_call.1']
    #allocation5 [shape = 'u8[8192]{0}', space=vmem, size = 0x2000, scoped, tag = 'input window, operand 1, single buffered']
    #allocation6 [shape = 's32[1]{0}', space=sflag, size = 0x4, scoped, tag = 'scoped memory for tpu_custom_call.1']
    #allocation7 [shape = 'u8[12288]{0}', space=vmem, size = 0x3000, scoped, tag = 'input window, operand 2, single buffered']
    #allocation8 [shape = 'u8[196608]{0}', space=vmem, size = 0x30000, scoped, tag = 'input window, operand 3, single buffered']
    #allocation9 [shape = 's32[1]{0}', space=sflag, size = 0x4, scoped, tag = 'scoped memory for tpu_custom_call.1']
    #allocation10 [shape = 'u8[65536]{0}', space=vmem, size = 0x10000, scoped, tag = 'input window, operand 4, single buffered']
    #allocation11 [shape = 'u8[131072]{0}', space=vmem, size = 0x20000, scoped, tag = 'input window, operand 5, single buffered']
    #allocation12 [shape = 's32[1]{0}', space=sflag, size = 0x4, scoped, tag = 'scoped memory for tpu_custom_call.1']
    #allocation13 [shape = 'u8[131072]{0}', space=vmem, size = 0x20000, scoped, tag = 'input window, operand 6, single buffered']
    #allocation14 [shape = 'u8[32768]{0}', space=vmem, size = 0x8000, scoped, tag = 'input window, operand 7, single buffered']
    #allocation15 [shape = 's32[1]{0}', space=sflag, size = 0x4, scoped, tag = 'scoped memory for tpu_custom_call.1']
    #allocation16 [shape = 'u8[32768]{0}', space=vmem, size = 0x8000, scoped, tag = 'input window, operand 8, single buffered']
    #allocation17 [shape = 'u8[1024]{0}', space=vmem, size = 0x400, scoped, tag = 'output window, operand 0, single buffered']
    %14 = vsyncpa [#allocation3], 0
    %15 = vsyncpa [#allocation6], 0
    %16 = vsyncpa [#allocation9], 0
    %17 = vsyncpa [#allocation12], 0
    %18 = vsyncpa [#allocation15], 0
    %19 = vsyncpa [#allocation4], 0
    // Predicated region
    $region2: #{tpu_custom_call.1} parent=1 // pred_check
      _
    $region3: #{tpu_custom_call.1} parent=1 // pred_check_branch
      %21 = sbr.rel (0) target = $region5
    $region4: #{tpu_custom_call.1} parent=1 // pred_region
      %s23 = ssub.s32 256, 256
      %24 = vsyncadd [#allocation3], %s23
      %s25 = sshll.u32 [#allocation2], 4
      %s26 = int_to_ptr.vmem [resolvable:$true] %s25
      %31 = dma.hbm_to_vmem [thread:$0]  %s0, 256, %s26, [#allocation3], 128, 128, 8
    $region5: #{tpu_custom_call.1} parent=1 // pred_fallthru
      _
    // Predicated region
    $region6: #{tpu_custom_call.1} parent=1 // pred_check
      _
    $region7: #{tpu_custom_call.1} parent=1 // pred_check_branch
      %33 = sbr.rel (0) target = $region9
    $region8: #{tpu_custom_call.1} parent=1 // pred_region
      %s35 = ssub.s32 256, 256
      %36 = vsyncadd [#allocation6], %s35
      %s37 = sshll.u32 [#allocation5], 4
      %s38 = int_to_ptr.vmem [resolvable:$true] %s37
      %43 = dma.hbm_to_vmem [thread:$0]  %s1, 256, %s38, [#allocation6], 128, 128, 8
    $region9: #{tpu_custom_call.1} parent=1 // pred_fallthru
      _
    // Predicated region
    $region10: #{tpu_custom_call.1} parent=1 // pred_check
      _
    $region11: #{tpu_custom_call.1} parent=1 // pred_check_branch
      %45 = sbr.rel (0) target = $region13
    $region12: #{tpu_custom_call.1} parent=1 // pred_region
      %s47 = ssub.s32 384, 384
      %48 = vsyncadd [#allocation6], %s47
      %s49 = sshll.u32 [#allocation7], 4
      %s50 = int_to_ptr.vmem [resolvable:$true] %s49
      %55 = dma.hbm_to_vmem [thread:$0]  %s2, 384, %s50, [#allocation6], 128, 128, 8
    $region13: #{tpu_custom_call.1} parent=1 // pred_fallthru
      _
    // Predicated region
    $region14: #{tpu_custom_call.1} parent=1 // pred_check
      _
    $region15: #{tpu_custom_call.1} parent=1 // pred_check_branch
      %57 = sbr.rel (0) target = $region17
    $region16: #{tpu_custom_call.1} parent=1 // pred_region
      %s59 = ssub.s32 6144, 6144
      %60 = vsyncadd [#allocation9], %s59
      %s61 = sshll.u32 [#allocation8], 4
      %s62 = int_to_ptr.vmem [resolvable:$true] %s61
      %67 = dma.hbm_to_vmem [thread:$0]  %s3, 6144, %s62, [#allocation9], 192, 192, 12
    $region17: #{tpu_custom_call.1} parent=1 // pred_fallthru
      _
    // Predicated region
    $region18: #{tpu_custom_call.1} parent=1 // pred_check
      _
    $region19: #{tpu_custom_call.1} parent=1 // pred_check_branch
      %69 = sbr.rel (0) target = $region21
    $region20: #{tpu_custom_call.1} parent=1 // pred_region
      %s71 = ssub.s32 2048, 2048
      %72 = vsyncadd [#allocation9], %s71
      %s73 = sshll.u32 [#allocation10], 4
      %s74 = int_to_ptr.vmem [resolvable:$true] %s73
      %79 = dma.hbm_to_vmem [thread:$0]  %s4, 2048, %s74, [#allocation9], 64, 64, 4
    $region21: #{tpu_custom_call.1} parent=1 // pred_fallthru
      _
    // Predicated region
    $region22: #{tpu_custom_call.1} parent=1 // pred_check
      _
    $region23: #{tpu_custom_call.1} parent=1 // pred_check_branch
      %81 = sbr.rel (0) target = $region25
    $region24: #{tpu_custom_call.1} parent=1 // pred_region
      %s83 = ssub.s32 4096, 4096
      %84 = vsyncadd [#allocation12], %s83
      %s85 = sshll.u32 [#allocation11], 4
      %s86 = int_to_ptr.vmem [resolvable:$true] %s85
      %91 = dma.hbm_to_vmem [thread:$0]  %s5, 4096, %s86, [#allocation12], 128, 128, 8
    $region25: #{tpu_custom_call.1} parent=1 // pred_fallthru
      _
    // Predicated region
    $region26: #{tpu_custom_call.1} parent=1 // pred_check
      _
    $region27: #{tpu_custom_call.1} parent=1 // pred_check_branch
      %93 = sbr.rel (0) target = $region29
    $region28: #{tpu_custom_call.1} parent=1 // pred_region
      %s95 = ssub.s32 4096, 4096
      %96 = vsyncadd [#allocation12], %s95
      %s97 = sshll.u32 [#allocation13], 4
      %s98 = int_to_ptr.vmem [resolvable:$true] %s97
      %103 = dma.hbm_to_vmem [thread:$0]  %s6, 4096, %s98, [#allocation12], 64, 64, 4
    $region29: #{tpu_custom_call.1} parent=1 // pred_fallthru
      _
    // Predicated region
    $region30: #{tpu_custom_call.1} parent=1 // pred_check
      _
    $region31: #{tpu_custom_call.1} parent=1 // pred_check_branch
      %105 = sbr.rel (0) target = $region33
    $region32: #{tpu_custom_call.1} parent=1 // pred_region
      %s107 = ssub.s32 1024, 1024
      %108 = vsyncadd [#allocation15], %s107
      %s109 = sshll.u32 [#allocation14], 4
      %s110 = int_to_ptr.vmem [resolvable:$true] %s109
      %115 = dma.hbm_to_vmem [thread:$0]  %s7, 1024, %s110, [#allocation15], 64, 64, 4
    $region33: #{tpu_custom_call.1} parent=1 // pred_fallthru
      _
    // Predicated region
    $region34: #{tpu_custom_call.1} parent=1 // pred_check
      _
    $region35: #{tpu_custom_call.1} parent=1 // pred_check_branch
      %117 = sbr.rel (0) target = $region37
    $region36: #{tpu_custom_call.1} parent=1 // pred_region
      %s119 = ssub.s32 1024, 1024
      %120 = vsyncadd [#allocation15], %s119
      %s121 = sshll.u32 [#allocation16], 4
      %s122 = int_to_ptr.vmem [resolvable:$true] %s121
      %127 = dma.hbm_to_vmem [thread:$0]  %s8, 1024, %s122, [#allocation15], 64, 64, 4
    $region37: #{tpu_custom_call.1} parent=1 // pred_fallthru
      _
    // Predicated region
    $region38: #{tpu_custom_call.1} parent=1 // pred_check
      _
    $region39: #{tpu_custom_call.1} parent=1 // pred_check_branch
      %129 = sbr.rel (0) target = $region41
    $region40: #{tpu_custom_call.1} parent=1 // pred_region
      %130 = dma.done [#allocation3], 256
    $region41: #{tpu_custom_call.1} parent=1 // pred_fallthru
      _
    // Predicated region
    $region42: #{tpu_custom_call.1} parent=1 // pred_check
      _
    $region43: #{tpu_custom_call.1} parent=1 // pred_check_branch
      %132 = sbr.rel (0) target = $region45
    $region44: #{tpu_custom_call.1} parent=1 // pred_region
      %133 = dma.done [#allocation6], 256
    $region45: #{tpu_custom_call.1} parent=1 // pred_fallthru
      _
    // Predicated region
    $region46: #{tpu_custom_call.1} parent=1 // pred_check
      _
    $region47: #{tpu_custom_call.1} parent=1 // pred_check_branch
      %135 = sbr.rel (0) target = $region49
    $region48: #{tpu_custom_call.1} parent=1 // pred_region
      %136 = dma.done [#allocation6], 384
    $region49: #{tpu_custom_call.1} parent=1 // pred_fallthru
      _
    // Predicated region
    $region50: #{tpu_custom_call.1} parent=1 // pred_check
      _
    $region51: #{tpu_custom_call.1} parent=1 // pred_check_branch
      %138 = sbr.rel (0) target = $region53
    $region52: #{tpu_custom_call.1} parent=1 // pred_region
      %139 = dma.done [#allocation9], 6144
    $region53: #{tpu_custom_call.1} parent=1 // pred_fallthru
      _
    // Predicated region
    $region54: #{tpu_custom_call.1} parent=1 // pred_check
      _
    $region55: #{tpu_custom_call.1} parent=1 // pred_check_branch
      %141 = sbr.rel (0) target = $region57
    $region56: #{tpu_custom_call.1} parent=1 // pred_region
      %142 = dma.done [#allocation9], 2048
    $region57: #{tpu_custom_call.1} parent=1 // pred_fallthru
      _
    // Predicated region
    $region58: #{tpu_custom_call.1} parent=1 // pred_check
      _
    $region59: #{tpu_custom_call.1} parent=1 // pred_check_branch
      %144 = sbr.rel (0) target = $region61
    $region60: #{tpu_custom_call.1} parent=1 // pred_region
      %145 = dma.done [#allocation12], 4096
    $region61: #{tpu_custom_call.1} parent=1 // pred_fallthru
      _
    // Predicated region
    $region62: #{tpu_custom_call.1} parent=1 // pred_check
      _
    $region63: #{tpu_custom_call.1} parent=1 // pred_check_branch
      %147 = sbr.rel (0) target = $region65
    $region64: #{tpu_custom_call.1} parent=1 // pred_region
      %148 = dma.done [#allocation12], 4096
    $region65: #{tpu_custom_call.1} parent=1 // pred_fallthru
      _
    // Predicated region
    $region66: #{tpu_custom_call.1} parent=1 // pred_check
      _
    $region67: #{tpu_custom_call.1} parent=1 // pred_check_branch
      %150 = sbr.rel (0) target = $region69
    $region68: #{tpu_custom_call.1} parent=1 // pred_region
      %151 = dma.done [#allocation15], 1024
    $region69: #{tpu_custom_call.1} parent=1 // pred_fallthru
      _
    // Predicated region
    $region70: #{tpu_custom_call.1} parent=1 // pred_check
      _
    $region71: #{tpu_custom_call.1} parent=1 // pred_check_branch
      %153 = sbr.rel (0) target = $region73
    $region72: #{tpu_custom_call.1} parent=1 // pred_region
      %154 = dma.done [#allocation15], 1024
    $region73: #{tpu_custom_call.1} parent=1 // pred_fallthru
      _
    %v156 = vld [vmem:[#allocation2] sm:$0xff]
    %v157 = vld [vmem:[#allocation2 + $0x8] sm:$0xff]
    %v158 = vld [vmem:[#allocation5] sm:$0xff]
    %v159 = vld [vmem:[#allocation5 + $0x8] sm:$0xff]
    %v160 = vpack.c.bf16 %v157, %v156
    %v161 = vld [vmem:[#allocation8] sm:$0xff]
    %v162 = vld [vmem:[#allocation8 + $0x8] sm:$0xf]
    %v163 = vld [vmem:[#allocation8 + $0xc] sm:$0xff]
    %v164 = vld [vmem:[#allocation8 + $0x14] sm:$0xf]
    %v165 = vld [vmem:[#allocation8 + $0x18] sm:$0xff]
    %v166 = vld [vmem:[#allocation8 + $0x20] sm:$0xf]
    %v167 = vld [vmem:[#allocation8 + $0x24] sm:$0xff]
    %v168 = vld [vmem:[#allocation8 + $0x2c] sm:$0xf]
    %v169 = vld [vmem:[#allocation8 + $0x30] sm:$0xff]
    %v170 = vld [vmem:[#allocation8 + $0x38] sm:$0xf]
    %v171 = vld [vmem:[#allocation8 + $0x3c] sm:$0xff]
    %v172 = vld [vmem:[#allocation8 + $0x44] sm:$0xf]
    %v173 = vld [vmem:[#allocation8 + $0x48] sm:$0xff]
    %v174 = vld [vmem:[#allocation8 + $0x50] sm:$0xf]
    %v175 = vld [vmem:[#allocation8 + $0x54] sm:$0xff]
    %v176 = vld [vmem:[#allocation8 + $0x5c] sm:$0xf]
    %v177 = vld [vmem:[#allocation8 + $0x60] sm:$0xff]
    %v178 = vld [vmem:[#allocation8 + $0x68] sm:$0xf]
    %v179 = vld [vmem:[#allocation8 + $0x6c] sm:$0xff]
    %v180 = vld [vmem:[#allocation8 + $0x74] sm:$0xf]
    %v181 = vld [vmem:[#allocation8 + $0x78] sm:$0xff]
    %v182 = vld [vmem:[#allocation8 + $0x80] sm:$0xf]
    %v183 = vld [vmem:[#allocation8 + $0x84] sm:$0xff]
    %v184 = vld [vmem:[#allocation8 + $0x8c] sm:$0xf]
    %v185 = vld [vmem:[#allocation8 + $0x90] sm:$0xff]
    %v186 = vld [vmem:[#allocation8 + $0x98] sm:$0xf]
    %v187 = vld [vmem:[#allocation8 + $0x9c] sm:$0xff]
    %v188 = vld [vmem:[#allocation8 + $0xa4] sm:$0xf]
    %v189 = vld [vmem:[#allocation8 + $0xa8] sm:$0xff]
    %v190 = vld [vmem:[#allocation8 + $0xb0] sm:$0xf]
    %v191 = vld [vmem:[#allocation8 + $0xb4] sm:$0xff]
    %v192 = vld [vmem:[#allocation8 + $0xbc] sm:$0xf]
    %v225 = vunpack.c.l.b16 %v161
    %v226 = vunpack.c.h.b16 %v161
    %v227 = vunpack.c.l.b16 %v162
    %v228 = vunpack.c.l.b16 %v163
    %v229 = vunpack.c.h.b16 %v163
    %v230 = vunpack.c.l.b16 %v164
    %v231 = vunpack.c.l.b16 %v165
    %v232 = vunpack.c.h.b16 %v165
    %v233 = vunpack.c.l.b16 %v166
    %v234 = vunpack.c.l.b16 %v167
    %v235 = vunpack.c.h.b16 %v167
    %v236 = vunpack.c.l.b16 %v168
    %v237 = vunpack.c.l.b16 %v169
    %v238 = vunpack.c.h.b16 %v169
    %v239 = vunpack.c.l.b16 %v170
    %v240 = vunpack.c.l.b16 %v171
    %v241 = vunpack.c.h.b16 %v171
    %v242 = vunpack.c.l.b16 %v172
    %v243 = vunpack.c.l.b16 %v173
    %v244 = vunpack.c.h.b16 %v173
    %v245 = vunpack.c.l.b16 %v174
    %v246 = vunpack.c.l.b16 %v175
    %v247 = vunpack.c.h.b16 %v175
    %v248 = vunpack.c.l.b16 %v176
    %v249 = vunpack.c.l.b16 %v177
    %v250 = vunpack.c.h.b16 %v177
    %v251 = vunpack.c.l.b16 %v178
    %v252 = vunpack.c.l.b16 %v179
    %v253 = vunpack.c.h.b16 %v179
    %v254 = vunpack.c.l.b16 %v180
    %v255 = vunpack.c.l.b16 %v181
    %v256 = vunpack.c.h.b16 %v181
    %v257 = vunpack.c.l.b16 %v182
    %v258 = vunpack.c.l.b16 %v183
    %v259 = vunpack.c.h.b16 %v183
    %v260 = vunpack.c.l.b16 %v184
    %v261 = vunpack.c.l.b16 %v185
    %v262 = vunpack.c.h.b16 %v185
    %v263 = vunpack.c.l.b16 %v186
    %v264 = vunpack.c.l.b16 %v187
    %v265 = vunpack.c.h.b16 %v187
    %v266 = vunpack.c.l.b16 %v188
    %v267 = vunpack.c.l.b16 %v189
    %v268 = vunpack.c.h.b16 %v189
    %v269 = vunpack.c.l.b16 %v190
    %v270 = vunpack.c.l.b16 %v191
    %v271 = vunpack.c.h.b16 %v191
    %v272 = vunpack.c.l.b16 %v192
    %v273 = vpack.c.b16 %v228, %v225
    %v274 = vpack.c.b16 %v229, %v226
    %v275 = vpack.c.b16 %v230, %v227
    %v276 = vpack.c.b16 %v234, %v231
    %v277 = vpack.c.b16 %v235, %v232
    %v278 = vpack.c.b16 %v236, %v233
    %v279 = vpack.c.b16 %v240, %v237
    %v280 = vpack.c.b16 %v241, %v238
    %v281 = vpack.c.b16 %v242, %v239
    %v282 = vpack.c.b16 %v246, %v243
    %v283 = vpack.c.b16 %v247, %v244
    %v284 = vpack.c.b16 %v248, %v245
    %v285 = vpack.c.b16 %v252, %v249
    %v286 = vpack.c.b16 %v253, %v250
    %v287 = vpack.c.b16 %v254, %v251
    %v288 = vpack.c.b16 %v258, %v255
    %v289 = vpack.c.b16 %v259, %v256
    %v290 = vpack.c.b16 %v260, %v257
    %v291 = vpack.c.b16 %v264, %v261
    %v292 = vpack.c.b16 %v265, %v262
    %v293 = vpack.c.b16 %v266, %v263
    %v294 = vpack.c.b16 %v270, %v267
    %v295 = vpack.c.b16 %v271, %v268
    %v296 = vpack.c.b16 %v272, %v269
    %321 = vmatprep.subr.bf16.mxu0 %v295
    %322 = vmatpush1.bf16.msra.mxu0 %v294
    %323 = vmatprep.subr.bf16.mxu0 %v292
    %324 = vmatpush1.bf16.msra.mxu0 %v291
    %325 = vmatprep.subr.bf16.mxu0 %v289
    %326 = vmatpush1.bf16.msra.mxu0 %v288
    %327 = vmatprep.subr.bf16.mxu0 %v286
    %328 = vmatpush1.bf16.msra.mxu0 %v285
    %329 = vmatprep.subr.bf16.mxu0 %v283
    %330 = vmatpush1.bf16.msra.mxu0 %v282
    %331 = vmatprep.subr.bf16.mxu0 %v280
    %332 = vmatpush1.bf16.msra.mxu0 %v279
    %333 = vmatprep.subr.bf16.mxu0 %v277
    %334 = vmatpush1.bf16.msra.mxu0 %v276
    %335 = vmatprep.subr.bf16.mxu0 %v274
    %336 = vmatpush1.bf16.msra.mxu0 %v273
    %337 = vmatprep.subr.bf16.mxu0 0
    %338 = vmatpush2.bf16.msra.mxu0 0
    %339 = vmatprep.subr.bf16.mxu0 0
    %340 = vmatpush2.bf16.msra.mxu0 0
    %341 = vmatprep.subr.bf16.mxu0 0
    %342 = vmatpush2.bf16.msra.mxu0 0
    %343 = vmatprep.subr.bf16.mxu0 0
    %344 = vmatpush2.bf16.msra.mxu0 0
    %345 = vmatprep.subr.bf16.mxu0 0
    %346 = vmatpush2.bf16.msra.mxu0 0
    %347 = vmatprep.subr.bf16.mxu0 0
    %348 = vmatpush2.bf16.msra.mxu0 0
    %349 = vmatprep.subr.bf16.mxu0 0
    %350 = vmatpush2.bf16.msra.mxu0 0
    %351 = vmatprep.subr.bf16.mxu0 0
    %352 = vmatpush2.bf16.msra.mxu0 0
    %353 = vmatprep.mubr.bf16.mxu0 0
    %354 = vmatmul.mubr.bf16.gmra.mxu0 %v160
    %v355 = vpop.f32.mrf.mxu0
    %v356 = vadd.f32 0.0, %v355
    %v357 = vpop.f32.mrf.mxu0
    %v358 = vadd.f32 0.0, %v357
    %v359 = vpop.f32.mrf.mxu0
    %v360 = vadd.f32 0.0, %v359
    %v361 = vpop.f32.mrf.mxu0
    %v362 = vadd.f32 0.0, %v361
    %363 = vdwg.mxu0
    %364 = vmatprep.subr.bf16.mxu0 0
    %365 = vmatpush1.bf16.msra.mxu0 %v296
    %366 = vmatprep.subr.bf16.mxu0 0
    %367 = vmatpush1.bf16.msra.mxu0 %v293
    %368 = vmatprep.subr.bf16.mxu0 0
    %369 = vmatpush1.bf16.msra.mxu0 %v290
    %370 = vmatprep.subr.bf16.mxu0 0
    %371 = vmatpush1.bf16.msra.mxu0 %v287
    %372 = vmatprep.subr.bf16.mxu0 0
    %373 = vmatpush1.bf16.msra.mxu0 %v284
    %374 = vmatprep.subr.bf16.mxu0 0
    %375 = vmatpush1.bf16.msra.mxu0 %v281
    %376 = vmatprep.subr.bf16.mxu0 0
    %377 = vmatpush1.bf16.msra.mxu0 %v278
    %378 = vmatprep.subr.bf16.mxu0 0
    %379 = vmatpush1.bf16.msra.mxu0 %v275
    %380 = vmatprep.subr.bf16.mxu0 0
    %381 = vmatpush2.bf16.msra.mxu0 0
    %382 = vmatprep.subr.bf16.mxu0 0
    %383 = vmatpush2.bf16.msra.mxu0 0
    %384 = vmatprep.subr.bf16.mxu0 0
    %385 = vmatpush2.bf16.msra.mxu0 0
    %386 = vmatprep.subr.bf16.mxu0 0
    %387 = vmatpush2.bf16.msra.mxu0 0
    %388 = vmatprep.subr.bf16.mxu0 0
    %389 = vmatpush2.bf16.msra.mxu0 0
    %390 = vmatprep.subr.bf16.mxu0 0
    %391 = vmatpush2.bf16.msra.mxu0 0
    %392 = vmatprep.subr.bf16.mxu0 0
    %393 = vmatpush2.bf16.msra.mxu0 0
    %394 = vmatprep.subr.bf16.mxu0 0
    %395 = vmatpush2.bf16.msra.mxu0 0
    %396 = vmatprep.mubr.bf16.mxu0 0
    %397 = vmatmul.mubr.bf16.gmra.mxu0 %v160
    %v398 = vpop.f32.mrf.mxu0
    %v399 = vadd.f32 0.0, %v398
    %v400 = vpop.f32.mrf.mxu0
    %v401 = vpop.f32.mrf.mxu0
    %v402 = vadd.f32 0.0, %v401
    %v403 = vpop.f32.mrf.mxu0
    %404 = vdwg.mxu0
    %v405 = vld [vmem:[#allocation7] sm:$0x1]
    %v406 = vlaneseq
    %v407 = vshrl.u32 %v406, 7
    %v408 = vsub.s32 0, %v407
    %v409 = vrot.slane %v405, %v408
    %v410 = vadd.f32 %v356, %v409
    %v411 = vadd.f32 %v360, %v409
    %v412 = vld [vmem:[#allocation7 + $0x1] sm:$0x1]
    %v413 = vlaneseq
    %v414 = vshrl.u32 %v413, 7
    %v415 = vsub.s32 0, %v414
    %v416 = vrot.slane %v412, %v415
    %v417 = vadd.f32 %v358, %v416
    %v418 = vadd.f32 %v362, %v416
    %v419 = vld [vmem:[#allocation7 + $0x2] sm:$0x1]
    %v420 = vlaneseq
    %v421 = vshrl.u32 %v420, 7
    %v422 = vsub.s32 0, %v421
    %v423 = vrot.slane %v419, %v422
    %v424 = vadd.f32 %v399, %v423
    %v425 = vadd.f32 %v402, %v423
    %v426 = vpack.c.bf16 %v411, %v410
    %428 = vrot.lane.b32.xlu0 %v426, 96
    %v429 = vpop.permute.xlu0 %428
    %430 = vrot.lane.b32.xlu0 %v426, 64
    %v431 = vpop.permute.xlu0 %430
    %432 = vrot.lane.b32.xlu0 %v426, 32
    %v433 = vpop.permute.xlu0 %432
    %v436 = vpack.i.b16 %v429, %v426
    %v438 = vshrl.u32 %v426, 16
    %v439 = vshrl.u32 %v429, 16
    %v440 = vpack.i.b16 %v439, %v438
    %v444 = vpack.i.b16 %v433, %v431
    %v446 = vshrl.u32 %v431, 16
    %v447 = vshrl.u32 %v433, 16
    %v448 = vpack.i.b16 %v447, %v446
    %v451 = vpack.i.b16 0, 0
    %v453 = vshrl.u32 0, 16
    %v454 = vpack.i.b16 %v453, %v453
    %v456 = vcombine.high %v436, %v451
    %v458 = vunpack.c.l.s4 1983009808
    %v459 = vunpack.c.0.s8 %v458
    %v460 = vlaneseq
    %v461 = vshrl.u32 %v460, 7
    %v462 = vsub.s32 %v459, %v461
    %v463 = vrot.slane %v436, %v462
    %v465 = vunpack.c.l.s4 1983009808
    %v466 = vunpack.c.0.s8 %v465
    %v467 = vlaneseq
    %v468 = vshrl.u32 %v467, 7
    %v469 = vsub.s32 %v466, %v468
    %v470 = vrot.slane %v456, %v469
    %v471 = vcombine.high %v444, %v451
    %v473 = vunpack.c.l.s4 1983009808
    %v474 = vunpack.c.0.s8 %v473
    %v475 = vlaneseq
    %v476 = vshrl.u32 %v475, 7
    %v477 = vsub.s32 %v474, %v476
    %v478 = vrot.slane %v444, %v477
    %v480 = vunpack.c.l.s4 1983009808
    %v481 = vunpack.c.0.s8 %v480
    %v482 = vlaneseq
    %v483 = vshrl.u32 %v482, 7
    %v484 = vsub.s32 %v481, %v483
    %v485 = vrot.slane %v471, %v484
    %v486 = vcombine.low %v463, %v478
    %v487 = vcombine.high %v463, %v478
    %v489 = vunpack.c.l.s4 1934713408
    %v490 = vunpack.c.0.s8 %v489
    %v491 = vlaneseq
    %v492 = vshrl.u32 %v491, 7
    %v493 = vsub.s32 %v490, %v492
    %v494 = vrot.slane %v486, %v493
    %v496 = vunpack.c.l.s4 1934713408
    %v497 = vunpack.c.0.s8 %v496
    %v498 = vlaneseq
    %v499 = vshrl.u32 %v498, 7
    %v500 = vsub.s32 %v497, %v499
    %v501 = vrot.slane %v487, %v500
    %v502 = vcombine.low %v470, %v485
    %v503 = vcombine.high %v470, %v485
    %v505 = vunpack.c.l.s4 1934713408
    %v506 = vunpack.c.0.s8 %v505
    %v507 = vlaneseq
    %v508 = vshrl.u32 %v507, 7
    %v509 = vsub.s32 %v506, %v508
    %v510 = vrot.slane %v502, %v509
    %v512 = vunpack.c.l.s4 1934713408
    %v513 = vunpack.c.0.s8 %v512
    %v514 = vlaneseq
    %v515 = vshrl.u32 %v514, 7
    %v516 = vsub.s32 %v513, %v515
    %v517 = vrot.slane %v503, %v516
    %v518 = vcombine.high %v494, 0
    %v519 = vcombine.high %v501, 0
    %v520 = vcombine.high %v510, 0
    %v521 = vcombine.high %v517, 0
    %v522 = vcombine.high %v440, %v454
    %v524 = vunpack.c.l.s4 1983009808
    %v525 = vunpack.c.0.s8 %v524
    %v526 = vlaneseq
    %v527 = vshrl.u32 %v526, 7
    %v528 = vsub.s32 %v525, %v527
    %v529 = vrot.slane %v440, %v528
    %v531 = vunpack.c.l.s4 1983009808
    %v532 = vunpack.c.0.s8 %v531
    %v533 = vlaneseq
    %v534 = vshrl.u32 %v533, 7
    %v535 = vsub.s32 %v532, %v534
    %v536 = vrot.slane %v522, %v535
    %v537 = vcombine.high %v448, %v454
    %v539 = vunpack.c.l.s4 1983009808
    %v540 = vunpack.c.0.s8 %v539
    %v541 = vlaneseq
    %v542 = vshrl.u32 %v541, 7
    %v543 = vsub.s32 %v540, %v542
    %v544 = vrot.slane %v448, %v543
    %v546 = vunpack.c.l.s4 1983009808
    %v547 = vunpack.c.0.s8 %v546
    %v548 = vlaneseq
    %v549 = vshrl.u32 %v548, 7
    %v550 = vsub.s32 %v547, %v549
    %v551 = vrot.slane %v537, %v550
    %v552 = vcombine.low %v529, %v544
    %v553 = vcombine.high %v529, %v544
    %v555 = vunpack.c.l.s4 1934713408
    %v556 = vunpack.c.0.s8 %v555
    %v557 = vlaneseq
    %v558 = vshrl.u32 %v557, 7
    %v559 = vsub.s32 %v556, %v558
    %v560 = vrot.slane %v552, %v559
    %v562 = vunpack.c.l.s4 1934713408
    %v563 = vunpack.c.0.s8 %v562
    %v564 = vlaneseq
    %v565 = vshrl.u32 %v564, 7
    %v566 = vsub.s32 %v563, %v565
    %v567 = vrot.slane %v553, %v566
    %v568 = vcombine.low %v536, %v551
    %v569 = vcombine.high %v536, %v551
    %v571 = vunpack.c.l.s4 1934713408
    %v572 = vunpack.c.0.s8 %v571
    %v573 = vlaneseq
    %v574 = vshrl.u32 %v573, 7
    %v575 = vsub.s32 %v572, %v574
    %v576 = vrot.slane %v568, %v575
    %v578 = vunpack.c.l.s4 1934713408
    %v579 = vunpack.c.0.s8 %v578
    %v580 = vlaneseq
    %v581 = vshrl.u32 %v580, 7
    %v582 = vsub.s32 %v579, %v581
    %v583 = vrot.slane %v569, %v582
    %v584 = vcombine.high %v560, 0
    %v585 = vcombine.high %v567, 0
    %v586 = vcombine.high %v576, 0
    %v587 = vcombine.high %v583, 0
    %v588 = vcombine.low %v494, %v501
    %v590 = vunpack.c.l.s4 1983009808
    %v591 = vunpack.c.0.s8 %v590
    %v592 = vlaneseq
    %v593 = vshrl.u32 %v592, 7
    %v594 = vsub.s32 %v591, %v593
    %v595 = vrot.slane %v588, %v594
    %v596 = vcombine.low %v518, %v519
    %v598 = vunpack.c.l.s4 1983009808
    %v599 = vunpack.c.0.s8 %v598
    %v600 = vlaneseq
    %v601 = vshrl.u32 %v600, 7
    %v602 = vsub.s32 %v599, %v601
    %v603 = vrot.slane %v596, %v602
    %v604 = vcombine.low %v510, %v517
    %v606 = vunpack.c.l.s4 1983009808
    %v607 = vunpack.c.0.s8 %v606
    %v608 = vlaneseq
    %v609 = vshrl.u32 %v608, 7
    %v610 = vsub.s32 %v607, %v609
    %v611 = vrot.slane %v604, %v610
    %v612 = vcombine.low %v520, %v521
    %v614 = vunpack.c.l.s4 1983009808
    %v615 = vunpack.c.0.s8 %v614
    %v616 = vlaneseq
    %v617 = vshrl.u32 %v616, 7
    %v618 = vsub.s32 %v615, %v617
    %v619 = vrot.slane %v612, %v618
    %v620 = vcombine.low %v595, %v603
    %v622 = vunpack.c.l.s4 1934713408
    %v623 = vunpack.c.0.s8 %v622
    %v624 = vlaneseq
    %v625 = vshrl.u32 %v624, 7
    %v626 = vsub.s32 %v623, %v625
    %v627 = vrot.slane %v620, %v626
    %v628 = vcombine.low %v611, %v619
    %v630 = vunpack.c.l.s4 1934713408
    %v631 = vunpack.c.0.s8 %v630
    %v632 = vlaneseq
    %v633 = vshrl.u32 %v632, 7
    %v634 = vsub.s32 %v631, %v633
    %v635 = vrot.slane %v628, %v634
    %v636 = vcombine.low %v627, %v635
    %v637 = vcombine.high %v627, %v635
    %v638 = vcombine.low %v560, %v567
    %v640 = vunpack.c.l.s4 1983009808
    %v641 = vunpack.c.0.s8 %v640
    %v642 = vlaneseq
    %v643 = vshrl.u32 %v642, 7
    %v644 = vsub.s32 %v641, %v643
    %v645 = vrot.slane %v638, %v644
    %v646 = vcombine.low %v584, %v585
    %v648 = vunpack.c.l.s4 1983009808
    %v649 = vunpack.c.0.s8 %v648
    %v650 = vlaneseq
    %v651 = vshrl.u32 %v650, 7
    %v652 = vsub.s32 %v649, %v651
    %v653 = vrot.slane %v646, %v652
    %v654 = vcombine.low %v576, %v583
    %v656 = vunpack.c.l.s4 1983009808
    %v657 = vunpack.c.0.s8 %v656
    %v658 = vlaneseq
    %v659 = vshrl.u32 %v658, 7
    %v660 = vsub.s32 %v657, %v659
    %v661 = vrot.slane %v654, %v660
    %v662 = vcombine.low %v586, %v587
    %v664 = vunpack.c.l.s4 1983009808
    %v665 = vunpack.c.0.s8 %v664
    %v666 = vlaneseq
    %v667 = vshrl.u32 %v666, 7
    %v668 = vsub.s32 %v665, %v667
    %v669 = vrot.slane %v662, %v668
    %v670 = vcombine.low %v645, %v653
    %v672 = vunpack.c.l.s4 1934713408
    %v673 = vunpack.c.0.s8 %v672
    %v674 = vlaneseq
    %v675 = vshrl.u32 %v674, 7
    %v676 = vsub.s32 %v673, %v675
    %v677 = vrot.slane %v670, %v676
    %v678 = vcombine.low %v661, %v669
    %v680 = vunpack.c.l.s4 1934713408
    %v681 = vunpack.c.0.s8 %v680
    %v682 = vlaneseq
    %v683 = vshrl.u32 %v682, 7
    %v684 = vsub.s32 %v681, %v683
    %v685 = vrot.slane %v678, %v684
    %v686 = vcombine.low %v677, %v685
    %v687 = vcombine.high %v677, %v685
    %v690 = vpack.i.b16 %v686, %v636
    %v691 = vshrl.u32 %v636, 16
    %v692 = vshrl.u32 %v686, 16
    %v693 = vpack.i.b16 %v692, %v691
    %v696 = vpack.i.b16 %v687, %v637
    %v697 = vshrl.u32 %v637, 16
    %v698 = vshrl.u32 %v687, 16
    %v699 = vpack.i.b16 %v698, %v697
    %v700 = vpack.c.bf16 %v418, %v417
    %702 = vrot.lane.b32.xlu0 %v700, 96
    %v703 = vpop.permute.xlu0 %702
    %704 = vrot.lane.b32.xlu0 %v700, 64
    %v705 = vpop.permute.xlu0 %704
    %706 = vrot.lane.b32.xlu0 %v700, 32
    %v707 = vpop.permute.xlu0 %706
    %v710 = vpack.i.b16 %v703, %v700
    %v712 = vshrl.u32 %v700, 16
    %v713 = vshrl.u32 %v703, 16
    %v714 = vpack.i.b16 %v713, %v712
    %v718 = vpack.i.b16 %v707, %v705
    %v720 = vshrl.u32 %v705, 16
    %v721 = vshrl.u32 %v707, 16
    %v722 = vpack.i.b16 %v721, %v720
    %v724 = vcombine.high %v710, %v451
    %v726 = vunpack.c.l.s4 1983009808
    %v727 = vunpack.c.0.s8 %v726
    %v728 = vlaneseq
    %v729 = vshrl.u32 %v728, 7
    %v730 = vsub.s32 %v727, %v729
    %v731 = vrot.slane %v710, %v730
    %v733 = vunpack.c.l.s4 1983009808
    %v734 = vunpack.c.0.s8 %v733
    %v735 = vlaneseq
    %v736 = vshrl.u32 %v735, 7
    %v737 = vsub.s32 %v734, %v736
    %v738 = vrot.slane %v724, %v737
    %v739 = vcombine.high %v718, %v451
    %v741 = vunpack.c.l.s4 1983009808
    %v742 = vunpack.c.0.s8 %v741
    %v743 = vlaneseq
    %v744 = vshrl.u32 %v743, 7
    %v745 = vsub.s32 %v742, %v744
    %v746 = vrot.slane %v718, %v745
    %v748 = vunpack.c.l.s4 1983009808
    %v749 = vunpack.c.0.s8 %v748
    %v750 = vlaneseq
    %v751 = vshrl.u32 %v750, 7
    %v752 = vsub.s32 %v749, %v751
    %v753 = vrot.slane %v739, %v752
    %v754 = vcombine.low %v731, %v746
    %v755 = vcombine.high %v731, %v746
    %v757 = vunpack.c.l.s4 1934713408
    %v758 = vunpack.c.0.s8 %v757
    %v759 = vlaneseq
    %v760 = vshrl.u32 %v759, 7
    %v761 = vsub.s32 %v758, %v760
    %v762 = vrot.slane %v754, %v761
    %v764 = vunpack.c.l.s4 1934713408
    %v765 = vunpack.c.0.s8 %v764
    %v766 = vlaneseq
    %v767 = vshrl.u32 %v766, 7
    %v768 = vsub.s32 %v765, %v767
    %v769 = vrot.slane %v755, %v768
    %v770 = vcombine.low %v738, %v753
    %v771 = vcombine.high %v738, %v753
    %v773 = vunpack.c.l.s4 1934713408
    %v774 = vunpack.c.0.s8 %v773
    %v775 = vlaneseq
    %v776 = vshrl.u32 %v775, 7
    %v777 = vsub.s32 %v774, %v776
    %v778 = vrot.slane %v770, %v777
    %v780 = vunpack.c.l.s4 1934713408
    %v781 = vunpack.c.0.s8 %v780
    %v782 = vlaneseq
    %v783 = vshrl.u32 %v782, 7
    %v784 = vsub.s32 %v781, %v783
    %v785 = vrot.slane %v771, %v784
    %v786 = vcombine.high %v762, 0
    %v787 = vcombine.high %v769, 0
    %v788 = vcombine.high %v778, 0
    %v789 = vcombine.high %v785, 0
    %v790 = vcombine.high %v714, %v454
    %v792 = vunpack.c.l.s4 1983009808
    %v793 = vunpack.c.0.s8 %v792
    %v794 = vlaneseq
    %v795 = vshrl.u32 %v794, 7
    %v796 = vsub.s32 %v793, %v795
    %v797 = vrot.slane %v714, %v796
    %v799 = vunpack.c.l.s4 1983009808
    %v800 = vunpack.c.0.s8 %v799
    %v801 = vlaneseq
    %v802 = vshrl.u32 %v801, 7
    %v803 = vsub.s32 %v800, %v802
    %v804 = vrot.slane %v790, %v803
    %v805 = vcombine.high %v722, %v454
    %v807 = vunpack.c.l.s4 1983009808
    %v808 = vunpack.c.0.s8 %v807
    %v809 = vlaneseq
    %v810 = vshrl.u32 %v809, 7
    %v811 = vsub.s32 %v808, %v810
    %v812 = vrot.slane %v722, %v811
    %v814 = vunpack.c.l.s4 1983009808
    %v815 = vunpack.c.0.s8 %v814
    %v816 = vlaneseq
    %v817 = vshrl.u32 %v816, 7
    %v818 = vsub.s32 %v815, %v817
    %v819 = vrot.slane %v805, %v818
    %v820 = vcombine.low %v797, %v812
    %v821 = vcombine.high %v797, %v812
    %v823 = vunpack.c.l.s4 1934713408
    %v824 = vunpack.c.0.s8 %v823
    %v825 = vlaneseq
    %v826 = vshrl.u32 %v825, 7
    %v827 = vsub.s32 %v824, %v826
    %v828 = vrot.slane %v820, %v827
    %v830 = vunpack.c.l.s4 1934713408
    %v831 = vunpack.c.0.s8 %v830
    %v832 = vlaneseq
    %v833 = vshrl.u32 %v832, 7
    %v834 = vsub.s32 %v831, %v833
    %v835 = vrot.slane %v821, %v834
    %v836 = vcombine.low %v804, %v819
    %v837 = vcombine.high %v804, %v819
    %v839 = vunpack.c.l.s4 1934713408
    %v840 = vunpack.c.0.s8 %v839
    %v841 = vlaneseq
    %v842 = vshrl.u32 %v841, 7
    %v843 = vsub.s32 %v840, %v842
    %v844 = vrot.slane %v836, %v843
    %v846 = vunpack.c.l.s4 1934713408
    %v847 = vunpack.c.0.s8 %v846
    %v848 = vlaneseq
    %v849 = vshrl.u32 %v848, 7
    %v850 = vsub.s32 %v847, %v849
    %v851 = vrot.slane %v837, %v850
    %v852 = vcombine.high %v828, 0
    %v853 = vcombine.high %v835, 0
    %v854 = vcombine.high %v844, 0
    %v855 = vcombine.high %v851, 0
    %v856 = vcombine.low %v762, %v769
    %v858 = vunpack.c.l.s4 1983009808
    %v859 = vunpack.c.0.s8 %v858
    %v860 = vlaneseq
    %v861 = vshrl.u32 %v860, 7
    %v862 = vsub.s32 %v859, %v861
    %v863 = vrot.slane %v856, %v862
    %v864 = vcombine.low %v786, %v787
    %v866 = vunpack.c.l.s4 1983009808
    %v867 = vunpack.c.0.s8 %v866
    %v868 = vlaneseq
    %v869 = vshrl.u32 %v868, 7
    %v870 = vsub.s32 %v867, %v869
    %v871 = vrot.slane %v864, %v870
    %v872 = vcombine.low %v778, %v785
    %v874 = vunpack.c.l.s4 1983009808
    %v875 = vunpack.c.0.s8 %v874
    %v876 = vlaneseq
    %v877 = vshrl.u32 %v876, 7
    %v878 = vsub.s32 %v875, %v877
    %v879 = vrot.slane %v872, %v878
    %v880 = vcombine.low %v788, %v789
    %v882 = vunpack.c.l.s4 1983009808
    %v883 = vunpack.c.0.s8 %v882
    %v884 = vlaneseq
    %v885 = vshrl.u32 %v884, 7
    %v886 = vsub.s32 %v883, %v885
    %v887 = vrot.slane %v880, %v886
    %v888 = vcombine.low %v863, %v871
    %v890 = vunpack.c.l.s4 1934713408
    %v891 = vunpack.c.0.s8 %v890
    %v892 = vlaneseq
    %v893 = vshrl.u32 %v892, 7
    %v894 = vsub.s32 %v891, %v893
    %v895 = vrot.slane %v888, %v894
    %v896 = vcombine.low %v879, %v887
    %v898 = vunpack.c.l.s4 1934713408
    %v899 = vunpack.c.0.s8 %v898
    %v900 = vlaneseq
    %v901 = vshrl.u32 %v900, 7
    %v902 = vsub.s32 %v899, %v901
    %v903 = vrot.slane %v896, %v902
    %v904 = vcombine.low %v895, %v903
    %v905 = vcombine.high %v895, %v903
    %v906 = vcombine.low %v828, %v835
    %v908 = vunpack.c.l.s4 1983009808
    %v909 = vunpack.c.0.s8 %v908
    %v910 = vlaneseq
    %v911 = vshrl.u32 %v910, 7
    %v912 = vsub.s32 %v909, %v911
    %v913 = vrot.slane %v906, %v912
    %v914 = vcombine.low %v852, %v853
    %v916 = vunpack.c.l.s4 1983009808
    %v917 = vunpack.c.0.s8 %v916
    %v918 = vlaneseq
    %v919 = vshrl.u32 %v918, 7
    %v920 = vsub.s32 %v917, %v919
    %v921 = vrot.slane %v914, %v920
    %v922 = vcombine.low %v844, %v851
    %v924 = vunpack.c.l.s4 1983009808
    %v925 = vunpack.c.0.s8 %v924
    %v926 = vlaneseq
    %v927 = vshrl.u32 %v926, 7
    %v928 = vsub.s32 %v925, %v927
    %v929 = vrot.slane %v922, %v928
    %v930 = vcombine.low %v854, %v855
    %v932 = vunpack.c.l.s4 1983009808
    %v933 = vunpack.c.0.s8 %v932
    %v934 = vlaneseq
    %v935 = vshrl.u32 %v934, 7
    %v936 = vsub.s32 %v933, %v935
    %v937 = vrot.slane %v930, %v936
    %v938 = vcombine.low %v913, %v921
    %v940 = vunpack.c.l.s4 1934713408
    %v941 = vunpack.c.0.s8 %v940
    %v942 = vlaneseq
    %v943 = vshrl.u32 %v942, 7
    %v944 = vsub.s32 %v941, %v943
    %v945 = vrot.slane %v938, %v944
    %v946 = vcombine.low %v929, %v937
    %v948 = vunpack.c.l.s4 1934713408
    %v949 = vunpack.c.0.s8 %v948
    %v950 = vlaneseq
    %v951 = vshrl.u32 %v950, 7
    %v952 = vsub.s32 %v949, %v951
    %v953 = vrot.slane %v946, %v952
    %v954 = vcombine.low %v945, %v953
    %v955 = vcombine.high %v945, %v953
    %v958 = vpack.i.b16 %v954, %v904
    %v959 = vshrl.u32 %v904, 16
    %v960 = vshrl.u32 %v954, 16
    %v961 = vpack.i.b16 %v960, %v959
    %v964 = vpack.i.b16 %v955, %v905
    %v965 = vshrl.u32 %v905, 16
    %v966 = vshrl.u32 %v955, 16
    %v967 = vpack.i.b16 %v966, %v965
    %v968 = vpack.c.bf16 %v425, %v424
    %970 = vrot.lane.b32.xlu0 %v968, 96
    %v971 = vpop.permute.xlu0 %970
    %972 = vrot.lane.b32.xlu0 %v968, 64
    %v973 = vpop.permute.xlu0 %972
    %974 = vrot.lane.b32.xlu0 %v968, 32
    %v975 = vpop.permute.xlu0 %974
    %v978 = vpack.i.b16 %v971, %v968
    %v980 = vshrl.u32 %v968, 16
    %v981 = vshrl.u32 %v971, 16
    %v982 = vpack.i.b16 %v981, %v980
    %v986 = vpack.i.b16 %v975, %v973
    %v988 = vshrl.u32 %v973, 16
    %v989 = vshrl.u32 %v975, 16
    %v990 = vpack.i.b16 %v989, %v988
    %v992 = vcombine.high %v978, %v451
    %v994 = vunpack.c.l.s4 1983009808
    %v995 = vunpack.c.0.s8 %v994
    %v996 = vlaneseq
    %v997 = vshrl.u32 %v996, 7
    %v998 = vsub.s32 %v995, %v997
    %v999 = vrot.slane %v978, %v998
    %v1001 = vunpack.c.l.s4 1983009808
    %v1002 = vunpack.c.0.s8 %v1001
    %v1003 = vlaneseq
    %v1004 = vshrl.u32 %v1003, 7
    %v1005 = vsub.s32 %v1002, %v1004
    %v1006 = vrot.slane %v992, %v1005
    %v1007 = vcombine.high %v986, %v451
    %v1009 = vunpack.c.l.s4 1983009808
    %v1010 = vunpack.c.0.s8 %v1009
    %v1011 = vlaneseq
    %v1012 = vshrl.u32 %v1011, 7
    %v1013 = vsub.s32 %v1010, %v1012
    %v1014 = vrot.slane %v986, %v1013
    %v1016 = vunpack.c.l.s4 1983009808
    %v1017 = vunpack.c.0.s8 %v1016
    %v1018 = vlaneseq
    %v1019 = vshrl.u32 %v1018, 7
    %v1020 = vsub.s32 %v1017, %v1019
    %v1021 = vrot.slane %v1007, %v1020
    %v1022 = vcombine.low %v999, %v1014
    %v1023 = vcombine.high %v999, %v1014
    %v1025 = vunpack.c.l.s4 1934713408
    %v1026 = vunpack.c.0.s8 %v1025
    %v1027 = vlaneseq
    %v1028 = vshrl.u32 %v1027, 7
    %v1029 = vsub.s32 %v1026, %v1028
    %v1030 = vrot.slane %v1022, %v1029
    %v1032 = vunpack.c.l.s4 1934713408
    %v1033 = vunpack.c.0.s8 %v1032
    %v1034 = vlaneseq
    %v1035 = vshrl.u32 %v1034, 7
    %v1036 = vsub.s32 %v1033, %v1035
    %v1037 = vrot.slane %v1023, %v1036
    %v1038 = vcombine.low %v1006, %v1021
    %v1039 = vcombine.high %v1006, %v1021
    %v1041 = vunpack.c.l.s4 1934713408
    %v1042 = vunpack.c.0.s8 %v1041
    %v1043 = vlaneseq
    %v1044 = vshrl.u32 %v1043, 7
    %v1045 = vsub.s32 %v1042, %v1044
    %v1046 = vrot.slane %v1038, %v1045
    %v1048 = vunpack.c.l.s4 1934713408
    %v1049 = vunpack.c.0.s8 %v1048
    %v1050 = vlaneseq
    %v1051 = vshrl.u32 %v1050, 7
    %v1052 = vsub.s32 %v1049, %v1051
    %v1053 = vrot.slane %v1039, %v1052
    %v1054 = vcombine.high %v1030, 0
    %v1055 = vcombine.high %v1037, 0
    %v1056 = vcombine.high %v1046, 0
    %v1057 = vcombine.high %v1053, 0
    %v1058 = vcombine.high %v982, %v454
    %v1060 = vunpack.c.l.s4 1983009808
    %v1061 = vunpack.c.0.s8 %v1060
    %v1062 = vlaneseq
    %v1063 = vshrl.u32 %v1062, 7
    %v1064 = vsub.s32 %v1061, %v1063
    %v1065 = vrot.slane %v982, %v1064
    %v1067 = vunpack.c.l.s4 1983009808
    %v1068 = vunpack.c.0.s8 %v1067
    %v1069 = vlaneseq
    %v1070 = vshrl.u32 %v1069, 7
    %v1071 = vsub.s32 %v1068, %v1070
    %v1072 = vrot.slane %v1058, %v1071
    %v1073 = vcombine.high %v990, %v454
    %v1075 = vunpack.c.l.s4 1983009808
    %v1076 = vunpack.c.0.s8 %v1075
    %v1077 = vlaneseq
    %v1078 = vshrl.u32 %v1077, 7
    %v1079 = vsub.s32 %v1076, %v1078
    %v1080 = vrot.slane %v990, %v1079
    %v1082 = vunpack.c.l.s4 1983009808
    %v1083 = vunpack.c.0.s8 %v1082
    %v1084 = vlaneseq
    %v1085 = vshrl.u32 %v1084, 7
    %v1086 = vsub.s32 %v1083, %v1085
    %v1087 = vrot.slane %v1073, %v1086
    %v1088 = vcombine.low %v1065, %v1080
    %v1089 = vcombine.high %v1065, %v1080
    %v1091 = vunpack.c.l.s4 1934713408
    %v1092 = vunpack.c.0.s8 %v1091
    %v1093 = vlaneseq
    %v1094 = vshrl.u32 %v1093, 7
    %v1095 = vsub.s32 %v1092, %v1094
    %v1096 = vrot.slane %v1088, %v1095
    %v1098 = vunpack.c.l.s4 1934713408
    %v1099 = vunpack.c.0.s8 %v1098
    %v1100 = vlaneseq
    %v1101 = vshrl.u32 %v1100, 7
    %v1102 = vsub.s32 %v1099, %v1101
    %v1103 = vrot.slane %v1089, %v1102
    %v1104 = vcombine.low %v1072, %v1087
    %v1105 = vcombine.high %v1072, %v1087
    %v1107 = vunpack.c.l.s4 1934713408
    %v1108 = vunpack.c.0.s8 %v1107
    %v1109 = vlaneseq
    %v1110 = vshrl.u32 %v1109, 7
    %v1111 = vsub.s32 %v1108, %v1110
    %v1112 = vrot.slane %v1104, %v1111
    %v1114 = vunpack.c.l.s4 1934713408
    %v1115 = vunpack.c.0.s8 %v1114
    %v1116 = vlaneseq
    %v1117 = vshrl.u32 %v1116, 7
    %v1118 = vsub.s32 %v1115, %v1117
    %v1119 = vrot.slane %v1105, %v1118
    %v1120 = vcombine.high %v1096, 0
    %v1121 = vcombine.high %v1103, 0
    %v1122 = vcombine.high %v1112, 0
    %v1123 = vcombine.high %v1119, 0
    %v1124 = vcombine.low %v1030, %v1037
    %v1126 = vunpack.c.l.s4 1983009808
    %v1127 = vunpack.c.0.s8 %v1126
    %v1128 = vlaneseq
    %v1129 = vshrl.u32 %v1128, 7
    %v1130 = vsub.s32 %v1127, %v1129
    %v1131 = vrot.slane %v1124, %v1130
    %v1132 = vcombine.low %v1054, %v1055
    %v1134 = vunpack.c.l.s4 1983009808
    %v1135 = vunpack.c.0.s8 %v1134
    %v1136 = vlaneseq
    %v1137 = vshrl.u32 %v1136, 7
    %v1138 = vsub.s32 %v1135, %v1137
    %v1139 = vrot.slane %v1132, %v1138
    %v1140 = vcombine.low %v1046, %v1053
    %v1142 = vunpack.c.l.s4 1983009808
    %v1143 = vunpack.c.0.s8 %v1142
    %v1144 = vlaneseq
    %v1145 = vshrl.u32 %v1144, 7
    %v1146 = vsub.s32 %v1143, %v1145
    %v1147 = vrot.slane %v1140, %v1146
    %v1148 = vcombine.low %v1056, %v1057
    %v1150 = vunpack.c.l.s4 1983009808
    %v1151 = vunpack.c.0.s8 %v1150
    %v1152 = vlaneseq
    %v1153 = vshrl.u32 %v1152, 7
    %v1154 = vsub.s32 %v1151, %v1153
    %v1155 = vrot.slane %v1148, %v1154
    %v1156 = vcombine.low %v1131, %v1139
    %v1158 = vunpack.c.l.s4 1934713408
    %v1159 = vunpack.c.0.s8 %v1158
    %v1160 = vlaneseq
    %v1161 = vshrl.u32 %v1160, 7
    %v1162 = vsub.s32 %v1159, %v1161
    %v1163 = vrot.slane %v1156, %v1162
    %v1164 = vcombine.low %v1147, %v1155
    %v1166 = vunpack.c.l.s4 1934713408
    %v1167 = vunpack.c.0.s8 %v1166
    %v1168 = vlaneseq
    %v1169 = vshrl.u32 %v1168, 7
    %v1170 = vsub.s32 %v1167, %v1169
    %v1171 = vrot.slane %v1164, %v1170
    %v1172 = vcombine.low %v1163, %v1171
    %v1173 = vcombine.high %v1163, %v1171
    %v1174 = vcombine.low %v1096, %v1103
    %v1176 = vunpack.c.l.s4 1983009808
    %v1177 = vunpack.c.0.s8 %v1176
    %v1178 = vlaneseq
    %v1179 = vshrl.u32 %v1178, 7
    %v1180 = vsub.s32 %v1177, %v1179
    %v1181 = vrot.slane %v1174, %v1180
    %v1182 = vcombine.low %v1120, %v1121
    %v1184 = vunpack.c.l.s4 1983009808
    %v1185 = vunpack.c.0.s8 %v1184
    %v1186 = vlaneseq
    %v1187 = vshrl.u32 %v1186, 7
    %v1188 = vsub.s32 %v1185, %v1187
    %v1189 = vrot.slane %v1182, %v1188
    %v1190 = vcombine.low %v1112, %v1119
    %v1192 = vunpack.c.l.s4 1983009808
    %v1193 = vunpack.c.0.s8 %v1192
    %v1194 = vlaneseq
    %v1195 = vshrl.u32 %v1194, 7
    %v1196 = vsub.s32 %v1193, %v1195
    %v1197 = vrot.slane %v1190, %v1196
    %v1198 = vcombine.low %v1122, %v1123
    %v1200 = vunpack.c.l.s4 1983009808
    %v1201 = vunpack.c.0.s8 %v1200
    %v1202 = vlaneseq
    %v1203 = vshrl.u32 %v1202, 7
    %v1204 = vsub.s32 %v1201, %v1203
    %v1205 = vrot.slane %v1198, %v1204
    %v1206 = vcombine.low %v1181, %v1189
    %v1208 = vunpack.c.l.s4 1934713408
    %v1209 = vunpack.c.0.s8 %v1208
    %v1210 = vlaneseq
    %v1211 = vshrl.u32 %v1210, 7
    %v1212 = vsub.s32 %v1209, %v1211
    %v1213 = vrot.slane %v1206, %v1212
    %v1214 = vcombine.low %v1197, %v1205
    %v1216 = vunpack.c.l.s4 1934713408
    %v1217 = vunpack.c.0.s8 %v1216
    %v1218 = vlaneseq
    %v1219 = vshrl.u32 %v1218, 7
    %v1220 = vsub.s32 %v1217, %v1219
    %v1221 = vrot.slane %v1214, %v1220
    %v1222 = vcombine.low %v1213, %v1221
    %v1223 = vcombine.high %v1213, %v1221
    %v1226 = vpack.i.b16 %v1222, %v1172
    %v1228 = vshrl.u32 %v1172, 16
    %v1229 = vshrl.u32 %v1222, 16
    %v1230 = vpack.i.b16 %v1229, %v1228
    %v1234 = vpack.i.b16 %v1223, %v1173
    %v1236 = vshrl.u32 %v1173, 16
    %v1237 = vshrl.u32 %v1223, 16
    %v1238 = vpack.i.b16 %v1237, %v1236
    %vm1240 = vcmask 261120
    %v1242 = vsel %vm1240, %v690, 0
    %v1245 = vsel %vm1240, %v958, 0
    %1247 = vmatprep.subr.bf16.mxu0 0
    %1248 = vmatpush1.bf16.xpose.msra.mxu0 0
    %1249 = vmatprep.subr.bf16.mxu0 0
    %1250 = vmatpush1.bf16.xpose.msra.mxu0 0
    %1251 = vmatprep.subr.bf16.mxu0 0
    %1252 = vmatpush1.bf16.xpose.msra.mxu0 0
    %1253 = vmatprep.subr.bf16.mxu0 0
    %1254 = vmatpush1.bf16.xpose.msra.mxu0 0
    %1255 = vmatprep.subr.bf16.mxu0 0
    %1256 = vmatpush1.bf16.xpose.msra.mxu0 0
    %1257 = vmatprep.subr.bf16.mxu0 0
    %1258 = vmatpush1.bf16.xpose.msra.mxu0 0
    %1259 = vmatprep.subr.bf16.mxu0 0
    %1260 = vmatpush1.bf16.xpose.msra.mxu0 0
    %1261 = vmatprep.subr.bf16.mxu0 0
    %1262 = vmatpush1.bf16.xpose.msra.mxu0 %v1245
    %1263 = vmatprep.subr.bf16.mxu0 0
    %1264 = vmatpush2.bf16.xpose.msra.mxu0 0
    %1265 = vmatprep.subr.bf16.mxu0 0
    %1266 = vmatpush2.bf16.xpose.msra.mxu0 0
    %1267 = vmatprep.subr.bf16.mxu0 0
    %1268 = vmatpush2.bf16.xpose.msra.mxu0 0
    %1269 = vmatprep.subr.bf16.mxu0 0
    %1270 = vmatpush2.bf16.xpose.msra.mxu0 0
    %1271 = vmatprep.subr.bf16.mxu0 0
    %1272 = vmatpush2.bf16.xpose.msra.mxu0 0
    %1273 = vmatprep.subr.bf16.mxu0 0
    %1274 = vmatpush2.bf16.xpose.msra.mxu0 0
    %1275 = vmatprep.subr.bf16.mxu0 0
    %1276 = vmatpush2.bf16.xpose.msra.mxu0 0
    %1277 = vmatprep.subr.bf16.mxu0 0
    %1278 = vmatpush2.bf16.xpose.msra.mxu0 0
    %1279 = vmatprep.mubr.bf16.mxu0 0
    %1280 = vmatmul.mubr.bf16.gmra.mxu0 %v1242
    %v1281 = vpop.f32.mrf.mxu0
    %v1282 = vadd.f32 %v158, %v1281
    %v1283 = vpop.f32.mrf.mxu0
    %v1284 = vpop.f32.mrf.mxu0
    %v1285 = vadd.f32 %v159, %v1284
    %v1286 = vpop.f32.mrf.mxu0
    %1287 = vdwg.mxu0
    %v1289 = vsel %vm1240, %v693, 0
    %v1292 = vsel %vm1240, %v961, 0
    %1294 = vmatprep.subr.bf16.mxu0 0
    %1295 = vmatpush1.bf16.xpose.msra.mxu0 0
    %1296 = vmatprep.subr.bf16.mxu0 0
    %1297 = vmatpush1.bf16.xpose.msra.mxu0 0
    %1298 = vmatprep.subr.bf16.mxu0 0
    %1299 = vmatpush1.bf16.xpose.msra.mxu0 0
    %1300 = vmatprep.subr.bf16.mxu0 0
    %1301 = vmatpush1.bf16.xpose.msra.mxu0 0
    %1302 = vmatprep.subr.bf16.mxu0 0
    %1303 = vmatpush1.bf16.xpose.msra.mxu0 0
    %1304 = vmatprep.subr.bf16.mxu0 0
    %1305 = vmatpush1.bf16.xpose.msra.mxu0 0
    %1306 = vmatprep.subr.bf16.mxu0 0
    %1307 = vmatpush1.bf16.xpose.msra.mxu0 0
    %1308 = vmatprep.subr.bf16.mxu0 0
    %1309 = vmatpush1.bf16.xpose.msra.mxu0 %v1292
    %1310 = vmatprep.subr.bf16.mxu0 0
    %1311 = vmatpush2.bf16.xpose.msra.mxu0 0
    %1312 = vmatprep.subr.bf16.mxu0 0
    %1313 = vmatpush2.bf16.xpose.msra.mxu0 0
    %1314 = vmatprep.subr.bf16.mxu0 0
    %1315 = vmatpush2.bf16.xpose.msra.mxu0 0
    %1316 = vmatprep.subr.bf16.mxu0 0
    %1317 = vmatpush2.bf16.xpose.msra.mxu0 0
    %1318 = vmatprep.subr.bf16.mxu0 0
    %1319 = vmatpush2.bf16.xpose.msra.mxu0 0
    %1320 = vmatprep.subr.bf16.mxu0 0
    %1321 = vmatpush2.bf16.xpose.msra.mxu0 0
    %1322 = vmatprep.subr.bf16.mxu0 0
    %1323 = vmatpush2.bf16.xpose.msra.mxu0 0
    %1324 = vmatprep.subr.bf16.mxu0 0
    %1325 = vmatpush2.bf16.xpose.msra.mxu0 0
    %1326 = vmatprep.mubr.bf16.mxu0 0
    %1327 = vmatmul.mubr.bf16.gmra.mxu0 %v1289
    %v1328 = vpop.f32.mrf.mxu0
    %v1329 = vadd.f32 %v158, %v1328
    %v1330 = vpop.f32.mrf.mxu0
    %v1331 = vpop.f32.mrf.mxu0
    %v1332 = vadd.f32 %v159, %v1331
    %v1333 = vpop.f32.mrf.mxu0
    %1334 = vdwg.mxu0
    %v1336 = vsel %vm1240, %v696, 0
    %v1339 = vsel %vm1240, %v964, 0
    %1341 = vmatprep.subr.bf16.mxu0 0
    %1342 = vmatpush1.bf16.xpose.msra.mxu0 0
    %1343 = vmatprep.subr.bf16.mxu0 0
    %1344 = vmatpush1.bf16.xpose.msra.mxu0 0
    %1345 = vmatprep.subr.bf16.mxu0 0
    %1346 = vmatpush1.bf16.xpose.msra.mxu0 0
    %1347 = vmatprep.subr.bf16.mxu0 0
    %1348 = vmatpush1.bf16.xpose.msra.mxu0 0
    %1349 = vmatprep.subr.bf16.mxu0 0
    %1350 = vmatpush1.bf16.xpose.msra.mxu0 0
    %1351 = vmatprep.subr.bf16.mxu0 0
    %1352 = vmatpush1.bf16.xpose.msra.mxu0 0
    %1353 = vmatprep.subr.bf16.mxu0 0
    %1354 = vmatpush1.bf16.xpose.msra.mxu0 0
    %1355 = vmatprep.subr.bf16.mxu0 0
    %1356 = vmatpush1.bf16.xpose.msra.mxu0 %v1339
    %1357 = vmatprep.subr.bf16.mxu0 0
    %1358 = vmatpush2.bf16.xpose.msra.mxu0 0
    %1359 = vmatprep.subr.bf16.mxu0 0
    %1360 = vmatpush2.bf16.xpose.msra.mxu0 0
    %1361 = vmatprep.subr.bf16.mxu0 0
    %1362 = vmatpush2.bf16.xpose.msra.mxu0 0
    %1363 = vmatprep.subr.bf16.mxu0 0
    %1364 = vmatpush2.bf16.xpose.msra.mxu0 0
    %1365 = vmatprep.subr.bf16.mxu0 0
    %1366 = vmatpush2.bf16.xpose.msra.mxu0 0
    %1367 = vmatprep.subr.bf16.mxu0 0
    %1368 = vmatpush2.bf16.xpose.msra.mxu0 0
    %1369 = vmatprep.subr.bf16.mxu0 0
    %1370 = vmatpush2.bf16.xpose.msra.mxu0 0
    %1371 = vmatprep.subr.bf16.mxu0 0
    %1372 = vmatpush2.bf16.xpose.msra.mxu0 0
    %1373 = vmatprep.mubr.bf16.mxu0 0
    %1374 = vmatmul.mubr.bf16.gmra.mxu0 %v1336
    %v1375 = vpop.f32.mrf.mxu0
    %v1376 = vadd.f32 %v158, %v1375
    %v1377 = vpop.f32.mrf.mxu0
    %v1378 = vpop.f32.mrf.mxu0
    %v1379 = vadd.f32 %v159, %v1378
    %v1380 = vpop.f32.mrf.mxu0
    %1381 = vdwg.mxu0
    %v1383 = vsel %vm1240, %v699, 0
    %v1386 = vsel %vm1240, %v967, 0
    %1388 = vmatprep.subr.bf16.mxu0 0
    %1389 = vmatpush1.bf16.xpose.msra.mxu0 0
    %1390 = vmatprep.subr.bf16.mxu0 0
    %1391 = vmatpush1.bf16.xpose.msra.mxu0 0
    %1392 = vmatprep.subr.bf16.mxu0 0
    %1393 = vmatpush1.bf16.xpose.msra.mxu0 0
    %1394 = vmatprep.subr.bf16.mxu0 0
    %1395 = vmatpush1.bf16.xpose.msra.mxu0 0
    %1396 = vmatprep.subr.bf16.mxu0 0
    %1397 = vmatpush1.bf16.xpose.msra.mxu0 0
    %1398 = vmatprep.subr.bf16.mxu0 0
    %1399 = vmatpush1.bf16.xpose.msra.mxu0 0
    %1400 = vmatprep.subr.bf16.mxu0 0
    %1401 = vmatpush1.bf16.xpose.msra.mxu0 0
    %1402 = vmatprep.subr.bf16.mxu0 0
    %1403 = vmatpush1.bf16.xpose.msra.mxu0 %v1386
    %1404 = vmatprep.subr.bf16.mxu0 0
    %1405 = vmatpush2.bf16.xpose.msra.mxu0 0
    %1406 = vmatprep.subr.bf16.mxu0 0
    %1407 = vmatpush2.bf16.xpose.msra.mxu0 0
    %1408 = vmatprep.subr.bf16.mxu0 0
    %1409 = vmatpush2.bf16.xpose.msra.mxu0 0
    %1410 = vmatprep.subr.bf16.mxu0 0
    %1411 = vmatpush2.bf16.xpose.msra.mxu0 0
    %1412 = vmatprep.subr.bf16.mxu0 0
    %1413 = vmatpush2.bf16.xpose.msra.mxu0 0
    %1414 = vmatprep.subr.bf16.mxu0 0
    %1415 = vmatpush2.bf16.xpose.msra.mxu0 0
    %1416 = vmatprep.subr.bf16.mxu0 0
    %1417 = vmatpush2.bf16.xpose.msra.mxu0 0
    %1418 = vmatprep.subr.bf16.mxu0 0
    %1419 = vmatpush2.bf16.xpose.msra.mxu0 0
    %1420 = vmatprep.mubr.bf16.mxu0 0
    %1421 = vmatmul.mubr.bf16.gmra.mxu0 %v1383
    %v1422 = vpop.f32.mrf.mxu0
    %v1423 = vadd.f32 %v158, %v1422
    %v1424 = vpop.f32.mrf.mxu0
    %v1425 = vpop.f32.mrf.mxu0
    %v1426 = vadd.f32 %v159, %v1425
    %v1427 = vpop.f32.mrf.mxu0
    %1428 = vdwg.mxu0
    %vm1429 = vcmask 130048
    %v1430 = vsel %vm1429, %v1282, -inf
    %1431 = vmax.xlane.f32.xlu0 %v1430
    %v1432 = vpop.xlane.xlu0 %1431
    %v1433 = vsel %vm1429, %v1285, -inf
    %1434 = vmax.xlane.f32.xlu0 %v1433
    %v1435 = vpop.xlane.xlu0 %1434
    %v1436 = vsel %vm1429, %v1329, -inf
    %1437 = vmax.xlane.f32.xlu0 %v1436
    %v1438 = vpop.xlane.xlu0 %1437
    %v1439 = vsel %vm1429, %v1332, -inf
    %1440 = vmax.xlane.f32.xlu0 %v1439
    %v1441 = vpop.xlane.xlu0 %1440
    %v1442 = vsel %vm1429, %v1376, -inf
    %1443 = vmax.xlane.f32.xlu0 %v1442
    %v1444 = vpop.xlane.xlu0 %1443
    %v1445 = vsel %vm1429, %v1379, -inf
    %1446 = vmax.xlane.f32.xlu0 %v1445
    %v1447 = vpop.xlane.xlu0 %1446
    %v1448 = vsel %vm1429, %v1423, -inf
    %1449 = vmax.xlane.f32.xlu0 %v1448
    %v1450 = vpop.xlane.xlu0 %1449
    %v1451 = vsel %vm1429, %v1426, -inf
    %1452 = vmax.xlane.f32.xlu0 %v1451
    %v1453 = vpop.xlane.xlu0 %1452
    %v1454 = vsub.f32 %v1282, %v1432
    %v1455 = vsub.f32 %v1285, %v1435
    %v1456 = vsub.f32 %v1329, %v1438
    %v1457 = vsub.f32 %v1332, %v1441
    %v1458 = vsub.f32 %v1376, %v1444
    %v1459 = vsub.f32 %v1379, %v1447
    %v1460 = vsub.f32 %v1423, %v1450
    %v1461 = vsub.f32 %v1426, %v1453
    %v1462 = vmul.f32 %v1454, 1.442695
    %v1463 = vpow.pop %v1462
    %v1464 = vmul.f32 %v1455, 1.442695
    %v1465 = vpow.pop %v1464
    %v1466 = vmul.f32 %v1456, 1.442695
    %v1467 = vpow.pop %v1466
    %v1468 = vmul.f32 %v1457, 1.442695
    %v1469 = vpow.pop %v1468
    %v1470 = vmul.f32 %v1458, 1.442695
    %v1471 = vpow.pop %v1470
    %v1472 = vmul.f32 %v1459, 1.442695
    %v1473 = vpow.pop %v1472
    %v1474 = vmul.f32 %v1460, 1.442695
    %v1475 = vpow.pop %v1474
    %v1476 = vmul.f32 %v1461, 1.442695
    %v1477 = vpow.pop %v1476
    %v1478 = vsel %vm1429, %v1463, 0.0
    %1479 = vadd.xlane.f32.xlu0 %v1478
    %v1480 = vpop.xlane.xlu0 %1479
    %v1481 = vsel %vm1429, %v1465, 0.0
    %1482 = vadd.xlane.f32.xlu0 %v1481
    %v1483 = vpop.xlane.xlu0 %1482
    %v1484 = vsel %vm1429, %v1467, 0.0
    %1485 = vadd.xlane.f32.xlu0 %v1484
    %v1486 = vpop.xlane.xlu0 %1485
    %v1487 = vsel %vm1429, %v1469, 0.0
    %1488 = vadd.xlane.f32.xlu0 %v1487
    %v1489 = vpop.xlane.xlu0 %1488
    %v1490 = vsel %vm1429, %v1471, 0.0
    %1491 = vadd.xlane.f32.xlu0 %v1490
    %v1492 = vpop.xlane.xlu0 %1491
    %v1493 = vsel %vm1429, %v1473, 0.0
    %1494 = vadd.xlane.f32.xlu0 %v1493
    %v1495 = vpop.xlane.xlu0 %1494
    %v1496 = vsel %vm1429, %v1475, 0.0
    %1497 = vadd.xlane.f32.xlu0 %v1496
    %v1498 = vpop.xlane.xlu0 %1497
    %v1499 = vsel %vm1429, %v1477, 0.0
    %1500 = vadd.xlane.f32.xlu0 %v1499
    %v1501 = vpop.xlane.xlu0 %1500
    %v1502 = vrcp.pop %v1480
    %v1503 = vrcp.pop %v1483
    %v1504 = vrcp.pop %v1486
    %v1505 = vrcp.pop %v1489
    %v1506 = vrcp.pop %v1492
    %v1507 = vrcp.pop %v1495
    %v1508 = vrcp.pop %v1498
    %v1509 = vrcp.pop %v1501
    %v1510 = vmul.f32 %v1463, %v1502
    %v1511 = vmul.f32 %v1465, %v1503
    %v1512 = vmul.f32 %v1467, %v1504
    %v1513 = vmul.f32 %v1469, %v1505
    %v1514 = vmul.f32 %v1471, %v1506
    %v1515 = vmul.f32 %v1473, %v1507
    %v1516 = vmul.f32 %v1475, %v1508
    %v1517 = vmul.f32 %v1477, %v1509
    %v1518 = vpack.c.bf16 %v1511, %v1510
    %v1519 = vpack.c.bf16 %v1513, %v1512
    %v1520 = vpack.c.bf16 %v1515, %v1514
    %v1521 = vpack.c.bf16 %v1517, %v1516
    %v1523 = vsel %vm1429, %v1518, 0
    %1525 = vmatprep.subr.bf16.mxu0 0
    %1526 = vmatpush1.bf16.msra.mxu0 0
    %1527 = vmatprep.subr.bf16.mxu0 0
    %1528 = vmatpush1.bf16.msra.mxu0 0
    %1529 = vmatprep.subr.bf16.mxu0 0
    %1530 = vmatpush1.bf16.msra.mxu0 0
    %1531 = vmatprep.subr.bf16.mxu0 0
    %1532 = vmatpush1.bf16.msra.mxu0 0
    %1533 = vmatprep.subr.bf16.mxu0 0
    %1534 = vmatpush1.bf16.msra.mxu0 0
    %1535 = vmatprep.subr.bf16.mxu0 0
    %1536 = vmatpush1.bf16.msra.mxu0 0
    %1537 = vmatprep.subr.bf16.mxu0 0
    %1538 = vmatpush1.bf16.msra.mxu0 0
    %1539 = vmatprep.subr.bf16.mxu0 0
    %1540 = vmatpush1.bf16.msra.mxu0 %v1226
    %1541 = vmatprep.subr.bf16.mxu0 0
    %1542 = vmatpush2.bf16.msra.mxu0 0
    %1543 = vmatprep.subr.bf16.mxu0 0
    %1544 = vmatpush2.bf16.msra.mxu0 0
    %1545 = vmatprep.subr.bf16.mxu0 0
    %1546 = vmatpush2.bf16.msra.mxu0 0
    %1547 = vmatprep.subr.bf16.mxu0 0
    %1548 = vmatpush2.bf16.msra.mxu0 0
    %1549 = vmatprep.subr.bf16.mxu0 0
    %1550 = vmatpush2.bf16.msra.mxu0 0
    %1551 = vmatprep.subr.bf16.mxu0 0
    %1552 = vmatpush2.bf16.msra.mxu0 0
    %1553 = vmatprep.subr.bf16.mxu0 0
    %1554 = vmatpush2.bf16.msra.mxu0 0
    %1555 = vmatprep.subr.bf16.mxu0 0
    %1556 = vmatpush2.bf16.msra.mxu0 0
    %1557 = vmatprep.mubr.bf16.mxu0 0
    %1558 = vmatmul.mubr.bf16.gmra.mxu0 %v1523
    %v1559 = vpop.f32.mrf.mxu0
    %v1560 = vadd.f32 0.0, %v1559
    %v1561 = vpop.f32.mrf.mxu0
    %v1562 = vpop.f32.mrf.mxu0
    %v1563 = vadd.f32 0.0, %v1562
    %v1564 = vpop.f32.mrf.mxu0
    %1565 = vdwg.mxu0
    %v1567 = vsel %vm1429, %v1519, 0
    %1569 = vmatprep.subr.bf16.mxu0 0
    %1570 = vmatpush1.bf16.msra.mxu0 0
    %1571 = vmatprep.subr.bf16.mxu0 0
    %1572 = vmatpush1.bf16.msra.mxu0 0
    %1573 = vmatprep.subr.bf16.mxu0 0
    %1574 = vmatpush1.bf16.msra.mxu0 0
    %1575 = vmatprep.subr.bf16.mxu0 0
    %1576 = vmatpush1.bf16.msra.mxu0 0
    %1577 = vmatprep.subr.bf16.mxu0 0
    %1578 = vmatpush1.bf16.msra.mxu0 0
    %1579 = vmatprep.subr.bf16.mxu0 0
    %1580 = vmatpush1.bf16.msra.mxu0 0
    %1581 = vmatprep.subr.bf16.mxu0 0
    %1582 = vmatpush1.bf16.msra.mxu0 0
    %1583 = vmatprep.subr.bf16.mxu0 0
    %1584 = vmatpush1.bf16.msra.mxu0 %v1230
    %1585 = vmatprep.subr.bf16.mxu0 0
    %1586 = vmatpush2.bf16.msra.mxu0 0
    %1587 = vmatprep.subr.bf16.mxu0 0
    %1588 = vmatpush2.bf16.msra.mxu0 0
    %1589 = vmatprep.subr.bf16.mxu0 0
    %1590 = vmatpush2.bf16.msra.mxu0 0
    %1591 = vmatprep.subr.bf16.mxu0 0
    %1592 = vmatpush2.bf16.msra.mxu0 0
    %1593 = vmatprep.subr.bf16.mxu0 0
    %1594 = vmatpush2.bf16.msra.mxu0 0
    %1595 = vmatprep.subr.bf16.mxu0 0
    %1596 = vmatpush2.bf16.msra.mxu0 0
    %1597 = vmatprep.subr.bf16.mxu0 0
    %1598 = vmatpush2.bf16.msra.mxu0 0
    %1599 = vmatprep.subr.bf16.mxu0 0
    %1600 = vmatpush2.bf16.msra.mxu0 0
    %1601 = vmatprep.mubr.bf16.mxu0 0
    %1602 = vmatmul.mubr.bf16.gmra.mxu0 %v1567
    %v1603 = vpop.f32.mrf.mxu0
    %v1604 = vadd.f32 0.0, %v1603
    %v1605 = vpop.f32.mrf.mxu0
    %v1606 = vpop.f32.mrf.mxu0
    %v1607 = vadd.f32 0.0, %v1606
    %v1608 = vpop.f32.mrf.mxu0
    %1609 = vdwg.mxu0
    %v1611 = vsel %vm1429, %v1520, 0
    %1613 = vmatprep.subr.bf16.mxu0 0
    %1614 = vmatpush1.bf16.msra.mxu0 0
    %1615 = vmatprep.subr.bf16.mxu0 0
    %1616 = vmatpush1.bf16.msra.mxu0 0
    %1617 = vmatprep.subr.bf16.mxu0 0
    %1618 = vmatpush1.bf16.msra.mxu0 0
    %1619 = vmatprep.subr.bf16.mxu0 0
    %1620 = vmatpush1.bf16.msra.mxu0 0
    %1621 = vmatprep.subr.bf16.mxu0 0
    %1622 = vmatpush1.bf16.msra.mxu0 0
    %1623 = vmatprep.subr.bf16.mxu0 0
    %1624 = vmatpush1.bf16.msra.mxu0 0
    %1625 = vmatprep.subr.bf16.mxu0 0
    %1626 = vmatpush1.bf16.msra.mxu0 0
    %1627 = vmatprep.subr.bf16.mxu0 0
    %1628 = vmatpush1.bf16.msra.mxu0 %v1234
    %1629 = vmatprep.subr.bf16.mxu0 0
    %1630 = vmatpush2.bf16.msra.mxu0 0
    %1631 = vmatprep.subr.bf16.mxu0 0
    %1632 = vmatpush2.bf16.msra.mxu0 0
    %1633 = vmatprep.subr.bf16.mxu0 0
    %1634 = vmatpush2.bf16.msra.mxu0 0
    %1635 = vmatprep.subr.bf16.mxu0 0
    %1636 = vmatpush2.bf16.msra.mxu0 0
    %1637 = vmatprep.subr.bf16.mxu0 0
    %1638 = vmatpush2.bf16.msra.mxu0 0
    %1639 = vmatprep.subr.bf16.mxu0 0
    %1640 = vmatpush2.bf16.msra.mxu0 0
    %1641 = vmatprep.subr.bf16.mxu0 0
    %1642 = vmatpush2.bf16.msra.mxu0 0
    %1643 = vmatprep.subr.bf16.mxu0 0
    %1644 = vmatpush2.bf16.msra.mxu0 0
    %1645 = vmatprep.mubr.bf16.mxu0 0
    %1646 = vmatmul.mubr.bf16.gmra.mxu0 %v1611
    %v1647 = vpop.f32.mrf.mxu0
    %v1648 = vadd.f32 0.0, %v1647
    %v1649 = vpop.f32.mrf.mxu0
    %v1650 = vpop.f32.mrf.mxu0
    %v1651 = vadd.f32 0.0, %v1650
    %v1652 = vpop.f32.mrf.mxu0
    %1653 = vdwg.mxu0
    %v1655 = vsel %vm1429, %v1521, 0
    %1657 = vmatprep.subr.bf16.mxu0 0
    %1658 = vmatpush1.bf16.msra.mxu0 0
    %1659 = vmatprep.subr.bf16.mxu0 0
    %1660 = vmatpush1.bf16.msra.mxu0 0
    %1661 = vmatprep.subr.bf16.mxu0 0
    %1662 = vmatpush1.bf16.msra.mxu0 0
    %1663 = vmatprep.subr.bf16.mxu0 0
    %1664 = vmatpush1.bf16.msra.mxu0 0
    %1665 = vmatprep.subr.bf16.mxu0 0
    %1666 = vmatpush1.bf16.msra.mxu0 0
    %1667 = vmatprep.subr.bf16.mxu0 0
    %1668 = vmatpush1.bf16.msra.mxu0 0
    %1669 = vmatprep.subr.bf16.mxu0 0
    %1670 = vmatpush1.bf16.msra.mxu0 0
    %1671 = vmatprep.subr.bf16.mxu0 0
    %1672 = vmatpush1.bf16.msra.mxu0 %v1238
    %1673 = vmatprep.subr.bf16.mxu0 0
    %1674 = vmatpush2.bf16.msra.mxu0 0
    %1675 = vmatprep.subr.bf16.mxu0 0
    %1676 = vmatpush2.bf16.msra.mxu0 0
    %1677 = vmatprep.subr.bf16.mxu0 0
    %1678 = vmatpush2.bf16.msra.mxu0 0
    %1679 = vmatprep.subr.bf16.mxu0 0
    %1680 = vmatpush2.bf16.msra.mxu0 0
    %1681 = vmatprep.subr.bf16.mxu0 0
    %1682 = vmatpush2.bf16.msra.mxu0 0
    %1683 = vmatprep.subr.bf16.mxu0 0
    %1684 = vmatpush2.bf16.msra.mxu0 0
    %1685 = vmatprep.subr.bf16.mxu0 0
    %1686 = vmatpush2.bf16.msra.mxu0 0
    %1687 = vmatprep.subr.bf16.mxu0 0
    %1688 = vmatpush2.bf16.msra.mxu0 0
    %1689 = vmatprep.mubr.bf16.mxu0 0
    %1690 = vmatmul.mubr.bf16.gmra.mxu0 %v1655
    %v1691 = vpop.f32.mrf.mxu0
    %v1692 = vadd.f32 0.0, %v1691
    %v1693 = vpop.f32.mrf.mxu0
    %v1694 = vpop.f32.mrf.mxu0
    %v1695 = vadd.f32 0.0, %v1694
    %v1696 = vpop.f32.mrf.mxu0
    %1697 = vdwg.mxu0
    %v1698 = vcombine.low %v1560, %v1648
    %v1699 = vcombine.high %v1560, %v1648
    %v1701 = vunpack.c.l.s4 1983009808
    %v1702 = vunpack.c.0.s8 %v1701
    %v1703 = vlaneseq
    %v1704 = vshrl.u32 %v1703, 7
    %v1705 = vsub.s32 %v1702, %v1704
    %v1706 = vrot.slane %v1698, %v1705
    %v1708 = vunpack.c.l.s4 1983009808
    %v1709 = vunpack.c.0.s8 %v1708
    %v1710 = vlaneseq
    %v1711 = vshrl.u32 %v1710, 7
    %v1712 = vsub.s32 %v1709, %v1711
    %v1713 = vrot.slane %v1699, %v1712
    %v1714 = vcombine.low %v1604, %v1692
    %v1715 = vcombine.high %v1604, %v1692
    %v1717 = vunpack.c.l.s4 1983009808
    %v1718 = vunpack.c.0.s8 %v1717
    %v1719 = vlaneseq
    %v1720 = vshrl.u32 %v1719, 7
    %v1721 = vsub.s32 %v1718, %v1720
    %v1722 = vrot.slane %v1714, %v1721
    %v1724 = vunpack.c.l.s4 1983009808
    %v1725 = vunpack.c.0.s8 %v1724
    %v1726 = vlaneseq
    %v1727 = vshrl.u32 %v1726, 7
    %v1728 = vsub.s32 %v1725, %v1727
    %v1729 = vrot.slane %v1715, %v1728
    %v1730 = vcombine.low %v1706, %v1722
    %v1731 = vcombine.high %v1706, %v1722
    %v1733 = vunpack.c.l.s4 1934713408
    %v1734 = vunpack.c.0.s8 %v1733
    %v1735 = vlaneseq
    %v1736 = vshrl.u32 %v1735, 7
    %v1737 = vsub.s32 %v1734, %v1736
    %v1738 = vrot.slane %v1730, %v1737
    %v1740 = vunpack.c.l.s4 1934713408
    %v1741 = vunpack.c.0.s8 %v1740
    %v1742 = vlaneseq
    %v1743 = vshrl.u32 %v1742, 7
    %v1744 = vsub.s32 %v1741, %v1743
    %v1745 = vrot.slane %v1731, %v1744
    %v1746 = vcombine.low %v1713, %v1729
    %v1747 = vcombine.high %v1713, %v1729
    %v1749 = vunpack.c.l.s4 1934713408
    %v1750 = vunpack.c.0.s8 %v1749
    %v1751 = vlaneseq
    %v1752 = vshrl.u32 %v1751, 7
    %v1753 = vsub.s32 %v1750, %v1752
    %v1754 = vrot.slane %v1746, %v1753
    %v1756 = vunpack.c.l.s4 1934713408
    %v1757 = vunpack.c.0.s8 %v1756
    %v1758 = vlaneseq
    %v1759 = vshrl.u32 %v1758, 7
    %v1760 = vsub.s32 %v1757, %v1759
    %v1761 = vrot.slane %v1747, %v1760
    %v1762 = vcombine.high %v1738, 0.0
    %v1763 = vcombine.high %v1745, 0.0
    %v1764 = vcombine.high %v1754, 0.0
    %v1765 = vcombine.high %v1761, 0.0
    %v1766 = vcombine.low %v1563, %v1651
    %v1767 = vcombine.high %v1563, %v1651
    %v1769 = vunpack.c.l.s4 1983009808
    %v1770 = vunpack.c.0.s8 %v1769
    %v1771 = vlaneseq
    %v1772 = vshrl.u32 %v1771, 7
    %v1773 = vsub.s32 %v1770, %v1772
    %v1774 = vrot.slane %v1766, %v1773
    %v1776 = vunpack.c.l.s4 1983009808
    %v1777 = vunpack.c.0.s8 %v1776
    %v1778 = vlaneseq
    %v1779 = vshrl.u32 %v1778, 7
    %v1780 = vsub.s32 %v1777, %v1779
    %v1781 = vrot.slane %v1767, %v1780
    %v1782 = vcombine.low %v1607, %v1695
    %v1783 = vcombine.high %v1607, %v1695
    %v1785 = vunpack.c.l.s4 1983009808
    %v1786 = vunpack.c.0.s8 %v1785
    %v1787 = vlaneseq
    %v1788 = vshrl.u32 %v1787, 7
    %v1789 = vsub.s32 %v1786, %v1788
    %v1790 = vrot.slane %v1782, %v1789
    %v1792 = vunpack.c.l.s4 1983009808
    %v1793 = vunpack.c.0.s8 %v1792
    %v1794 = vlaneseq
    %v1795 = vshrl.u32 %v1794, 7
    %v1796 = vsub.s32 %v1793, %v1795
    %v1797 = vrot.slane %v1783, %v1796
    %v1798 = vcombine.low %v1774, %v1790
    %v1799 = vcombine.high %v1774, %v1790
    %v1801 = vunpack.c.l.s4 1934713408
    %v1802 = vunpack.c.0.s8 %v1801
    %v1803 = vlaneseq
    %v1804 = vshrl.u32 %v1803, 7
    %v1805 = vsub.s32 %v1802, %v1804
    %v1806 = vrot.slane %v1798, %v1805
    %v1808 = vunpack.c.l.s4 1934713408
    %v1809 = vunpack.c.0.s8 %v1808
    %v1810 = vlaneseq
    %v1811 = vshrl.u32 %v1810, 7
    %v1812 = vsub.s32 %v1809, %v1811
    %v1813 = vrot.slane %v1799, %v1812
    %v1814 = vcombine.low %v1781, %v1797
    %v1815 = vcombine.high %v1781, %v1797
    %v1817 = vunpack.c.l.s4 1934713408
    %v1818 = vunpack.c.0.s8 %v1817
    %v1819 = vlaneseq
    %v1820 = vshrl.u32 %v1819, 7
    %v1821 = vsub.s32 %v1818, %v1820
    %v1822 = vrot.slane %v1814, %v1821
    %v1824 = vunpack.c.l.s4 1934713408
    %v1825 = vunpack.c.0.s8 %v1824
    %v1826 = vlaneseq
    %v1827 = vshrl.u32 %v1826, 7
    %v1828 = vsub.s32 %v1825, %v1827
    %v1829 = vrot.slane %v1815, %v1828
    %v1830 = vcombine.high %v1806, 0.0
    %v1831 = vcombine.high %v1813, 0.0
    %v1832 = vcombine.high %v1822, 0.0
    %v1833 = vcombine.high %v1829, 0.0
    %v1834 = vcombine.low %v1738, %v1745
    %v1836 = vunpack.c.l.s4 1983009808
    %v1837 = vunpack.c.0.s8 %v1836
    %v1838 = vlaneseq
    %v1839 = vshrl.u32 %v1838, 7
    %v1840 = vsub.s32 %v1837, %v1839
    %v1841 = vrot.slane %v1834, %v1840
    %v1842 = vcombine.low %v1762, %v1763
    %v1844 = vunpack.c.l.s4 1983009808
    %v1845 = vunpack.c.0.s8 %v1844
    %v1846 = vlaneseq
    %v1847 = vshrl.u32 %v1846, 7
    %v1848 = vsub.s32 %v1845, %v1847
    %v1849 = vrot.slane %v1842, %v1848
    %v1850 = vcombine.low %v1754, %v1761
    %v1852 = vunpack.c.l.s4 1983009808
    %v1853 = vunpack.c.0.s8 %v1852
    %v1854 = vlaneseq
    %v1855 = vshrl.u32 %v1854, 7
    %v1856 = vsub.s32 %v1853, %v1855
    %v1857 = vrot.slane %v1850, %v1856
    %v1858 = vcombine.low %v1764, %v1765
    %v1860 = vunpack.c.l.s4 1983009808
    %v1861 = vunpack.c.0.s8 %v1860
    %v1862 = vlaneseq
    %v1863 = vshrl.u32 %v1862, 7
    %v1864 = vsub.s32 %v1861, %v1863
    %v1865 = vrot.slane %v1858, %v1864
    %v1866 = vcombine.low %v1841, %v1849
    %v1867 = vcombine.high %v1841, %v1849
    %v1869 = vunpack.c.l.s4 1934713408
    %v1870 = vunpack.c.0.s8 %v1869
    %v1871 = vlaneseq
    %v1872 = vshrl.u32 %v1871, 7
    %v1873 = vsub.s32 %v1870, %v1872
    %v1874 = vrot.slane %v1866, %v1873
    %v1876 = vunpack.c.l.s4 1934713408
    %v1877 = vunpack.c.0.s8 %v1876
    %v1878 = vlaneseq
    %v1879 = vshrl.u32 %v1878, 7
    %v1880 = vsub.s32 %v1877, %v1879
    %v1881 = vrot.slane %v1867, %v1880
    %v1882 = vcombine.low %v1857, %v1865
    %v1883 = vcombine.high %v1857, %v1865
    %v1885 = vunpack.c.l.s4 1934713408
    %v1886 = vunpack.c.0.s8 %v1885
    %v1887 = vlaneseq
    %v1888 = vshrl.u32 %v1887, 7
    %v1889 = vsub.s32 %v1886, %v1888
    %v1890 = vrot.slane %v1882, %v1889
    %v1892 = vunpack.c.l.s4 1934713408
    %v1893 = vunpack.c.0.s8 %v1892
    %v1894 = vlaneseq
    %v1895 = vshrl.u32 %v1894, 7
    %v1896 = vsub.s32 %v1893, %v1895
    %v1897 = vrot.slane %v1883, %v1896
    %v1898 = vcombine.low %v1874, %v1890
    %v1899 = vcombine.high %v1874, %v1890
    %v1900 = vcombine.low %v1881, %v1897
    %v1901 = vcombine.high %v1881, %v1897
    %v1902 = vcombine.low %v1806, %v1813
    %v1904 = vunpack.c.l.s4 1983009808
    %v1905 = vunpack.c.0.s8 %v1904
    %v1906 = vlaneseq
    %v1907 = vshrl.u32 %v1906, 7
    %v1908 = vsub.s32 %v1905, %v1907
    %v1909 = vrot.slane %v1902, %v1908
    %v1910 = vcombine.low %v1830, %v1831
    %v1912 = vunpack.c.l.s4 1983009808
    %v1913 = vunpack.c.0.s8 %v1912
    %v1914 = vlaneseq
    %v1915 = vshrl.u32 %v1914, 7
    %v1916 = vsub.s32 %v1913, %v1915
    %v1917 = vrot.slane %v1910, %v1916
    %v1918 = vcombine.low %v1822, %v1829
    %v1920 = vunpack.c.l.s4 1983009808
    %v1921 = vunpack.c.0.s8 %v1920
    %v1922 = vlaneseq
    %v1923 = vshrl.u32 %v1922, 7
    %v1924 = vsub.s32 %v1921, %v1923
    %v1925 = vrot.slane %v1918, %v1924
    %v1926 = vcombine.low %v1832, %v1833
    %v1928 = vunpack.c.l.s4 1983009808
    %v1929 = vunpack.c.0.s8 %v1928
    %v1930 = vlaneseq
    %v1931 = vshrl.u32 %v1930, 7
    %v1932 = vsub.s32 %v1929, %v1931
    %v1933 = vrot.slane %v1926, %v1932
    %v1934 = vcombine.low %v1909, %v1917
    %v1935 = vcombine.high %v1909, %v1917
    %v1937 = vunpack.c.l.s4 1934713408
    %v1938 = vunpack.c.0.s8 %v1937
    %v1939 = vlaneseq
    %v1940 = vshrl.u32 %v1939, 7
    %v1941 = vsub.s32 %v1938, %v1940
    %v1942 = vrot.slane %v1934, %v1941
    %v1944 = vunpack.c.l.s4 1934713408
    %v1945 = vunpack.c.0.s8 %v1944
    %v1946 = vlaneseq
    %v1947 = vshrl.u32 %v1946, 7
    %v1948 = vsub.s32 %v1945, %v1947
    %v1949 = vrot.slane %v1935, %v1948
    %v1950 = vcombine.low %v1925, %v1933
    %v1951 = vcombine.high %v1925, %v1933
    %v1953 = vunpack.c.l.s4 1934713408
    %v1954 = vunpack.c.0.s8 %v1953
    %v1955 = vlaneseq
    %v1956 = vshrl.u32 %v1955, 7
    %v1957 = vsub.s32 %v1954, %v1956
    %v1958 = vrot.slane %v1950, %v1957
    %v1960 = vunpack.c.l.s4 1934713408
    %v1961 = vunpack.c.0.s8 %v1960
    %v1962 = vlaneseq
    %v1963 = vshrl.u32 %v1962, 7
    %v1964 = vsub.s32 %v1961, %v1963
    %v1965 = vrot.slane %v1951, %v1964
    %v1966 = vcombine.low %v1942, %v1958
    %v1967 = vcombine.high %v1942, %v1958
    %v1968 = vcombine.low %v1949, %v1965
    %v1969 = vcombine.high %v1949, %v1965
    %1972 = vrot.lane.b32.xlu0 %v1899, 32
    %v1973 = vpop.permute.xlu0 %1972
    %1974 = vrot.lane.b32.xlu0 %v1967, 32
    %v1975 = vpop.permute.xlu0 %1974
    %1980 = vrot.lane.b32.xlu0 %v1900, 64
    %v1981 = vpop.permute.xlu0 %1980
    %1982 = vrot.lane.b32.xlu0 %v1968, 64
    %v1983 = vpop.permute.xlu0 %1982
    %1988 = vrot.lane.b32.xlu0 %v1901, 96
    %v1989 = vpop.permute.xlu0 %1988
    %1990 = vrot.lane.b32.xlu0 %v1969, 96
    %v1991 = vpop.permute.xlu0 %1990
    %v1994 = vsel %vm1240, %v1898, %v1973
    %v1995 = vsel %vm1240, %v1966, %v1975
    %vm1996 = vcmask 523264
    %v1997 = vsel %vm1996, %v1994, %v1981
    %v1998 = vsel %vm1996, %v1995, %v1983
    %vm1999 = vcmask 785408
    %v2000 = vsel %vm1999, %v1997, %v1989
    %v2001 = vsel %vm1999, %v1998, %v1991
    %v2002 = vpack.c.bf16 %v2001, %v2000
    %v2003 = vld [vmem:[#allocation10] sm:$0xf]
    %v2004 = vld [vmem:[#allocation10 + $0x4] sm:$0xf]
    %v2005 = vld [vmem:[#allocation10 + $0x8] sm:$0xf]
    %v2006 = vld [vmem:[#allocation10 + $0xc] sm:$0xf]
    %v2007 = vld [vmem:[#allocation10 + $0x10] sm:$0xf]
    %v2008 = vld [vmem:[#allocation10 + $0x14] sm:$0xf]
    %v2009 = vld [vmem:[#allocation10 + $0x18] sm:$0xf]
    %v2010 = vld [vmem:[#allocation10 + $0x1c] sm:$0xf]
    %v2011 = vld [vmem:[#allocation10 + $0x20] sm:$0xf]
    %v2012 = vld [vmem:[#allocation10 + $0x24] sm:$0xf]
    %v2013 = vld [vmem:[#allocation10 + $0x28] sm:$0xf]
    %v2014 = vld [vmem:[#allocation10 + $0x2c] sm:$0xf]
    %v2015 = vld [vmem:[#allocation10 + $0x30] sm:$0xf]
    %v2016 = vld [vmem:[#allocation10 + $0x34] sm:$0xf]
    %v2017 = vld [vmem:[#allocation10 + $0x38] sm:$0xf]
    %v2018 = vld [vmem:[#allocation10 + $0x3c] sm:$0xf]
    %v2019 = vld [vmem:[#allocation7 + $0x3] sm:$0x1]
    %v2020 = vlaneseq
    %v2021 = vshrl.u32 %v2020, 7
    %v2022 = vsub.s32 0, %v2021
    %v2023 = vrot.slane %v2019, %v2022
    %v2040 = vunpack.c.l.b16 %v2003
    %v2041 = vunpack.c.l.b16 %v2004
    %v2042 = vunpack.c.l.b16 %v2005
    %v2043 = vunpack.c.l.b16 %v2006
    %v2044 = vunpack.c.l.b16 %v2007
    %v2045 = vunpack.c.l.b16 %v2008
    %v2046 = vunpack.c.l.b16 %v2009
    %v2047 = vunpack.c.l.b16 %v2010
    %v2048 = vunpack.c.l.b16 %v2011
    %v2049 = vunpack.c.l.b16 %v2012
    %v2050 = vunpack.c.l.b16 %v2013
    %v2051 = vunpack.c.l.b16 %v2014
    %v2052 = vunpack.c.l.b16 %v2015
    %v2053 = vunpack.c.l.b16 %v2016
    %v2054 = vunpack.c.l.b16 %v2017
    %v2055 = vunpack.c.l.b16 %v2018
    %v2056 = vpack.c.b16 %v2041, %v2040
    %v2057 = vpack.c.b16 %v2043, %v2042
    %v2058 = vpack.c.b16 %v2045, %v2044
    %v2059 = vpack.c.b16 %v2047, %v2046
    %v2060 = vpack.c.b16 %v2049, %v2048
    %v2061 = vpack.c.b16 %v2051, %v2050
    %v2062 = vpack.c.b16 %v2053, %v2052
    %v2063 = vpack.c.b16 %v2055, %v2054
    %2072 = vmatprep.subr.bf16.mxu0 0
    %2073 = vmatpush1.bf16.msra.mxu0 %v2063
    %2074 = vmatprep.subr.bf16.mxu0 0
    %2075 = vmatpush1.bf16.msra.mxu0 %v2062
    %2076 = vmatprep.subr.bf16.mxu0 0
    %2077 = vmatpush1.bf16.msra.mxu0 %v2061
    %2078 = vmatprep.subr.bf16.mxu0 0
    %2079 = vmatpush1.bf16.msra.mxu0 %v2060
    %2080 = vmatprep.subr.bf16.mxu0 0
    %2081 = vmatpush1.bf16.msra.mxu0 %v2059
    %2082 = vmatprep.subr.bf16.mxu0 0
    %2083 = vmatpush1.bf16.msra.mxu0 %v2058
    %2084 = vmatprep.subr.bf16.mxu0 0
    %2085 = vmatpush1.bf16.msra.mxu0 %v2057
    %2086 = vmatprep.subr.bf16.mxu0 0
    %2087 = vmatpush1.bf16.msra.mxu0 %v2056
    %2088 = vmatprep.subr.bf16.mxu0 0
    %2089 = vmatpush2.bf16.msra.mxu0 0
    %2090 = vmatprep.subr.bf16.mxu0 0
    %2091 = vmatpush2.bf16.msra.mxu0 0
    %2092 = vmatprep.subr.bf16.mxu0 0
    %2093 = vmatpush2.bf16.msra.mxu0 0
    %2094 = vmatprep.subr.bf16.mxu0 0
    %2095 = vmatpush2.bf16.msra.mxu0 0
    %2096 = vmatprep.subr.bf16.mxu0 0
    %2097 = vmatpush2.bf16.msra.mxu0 0
    %2098 = vmatprep.subr.bf16.mxu0 0
    %2099 = vmatpush2.bf16.msra.mxu0 0
    %2100 = vmatprep.subr.bf16.mxu0 0
    %2101 = vmatpush2.bf16.msra.mxu0 0
    %2102 = vmatprep.subr.bf16.mxu0 0
    %2103 = vmatpush2.bf16.msra.mxu0 0
    %2104 = vmatprep.mubr.bf16.mxu0 0
    %2105 = vmatmul.mubr.bf16.gmra.mxu0 %v2002
    %v2106 = vpop.f32.mrf.mxu0
    %v2107 = vadd.f32 %v2023, %v2106
    %v2108 = vpop.f32.mrf.mxu0
    %v2109 = vpop.f32.mrf.mxu0
    %v2110 = vadd.f32 %v2023, %v2109
    %v2111 = vpop.f32.mrf.mxu0
    %2112 = vdwg.mxu0
    %v2113 = vadd.f32 %v156, %v2107
    %v2114 = vadd.f32 %v157, %v2110
    %v2115 = vld [vmem:[#allocation7 + $0x7] sm:$0x1]
    %v2116 = vld [vmem:[#allocation7 + $0x8] sm:$0x1]
    %2117 = vadd.xlane.f32.xlu0 %v2113
    %v2118 = vpop.xlane.xlu0 %2117
    %2119 = vadd.xlane.f32.xlu0 %v2114
    %v2120 = vpop.xlane.xlu0 %2119
    %v2121 = vrcp.pop 128.0
    %v2122 = vmul.f32 %v2118, %v2121
    %v2123 = vmul.f32 %v2120, %v2121
    %v2124 = vsub.f32 %v2113, %v2122
    %v2125 = vsub.f32 %v2114, %v2123
    %v2126 = vmul.f32 %v2124, %v2124
    %v2127 = vmul.f32 %v2125, %v2125
    %2128 = vadd.xlane.f32.xlu0 %v2126
    %v2129 = vpop.xlane.xlu0 %2128
    %2130 = vadd.xlane.f32.xlu0 %v2127
    %v2131 = vpop.xlane.xlu0 %2130
    %v2132 = vmul.f32 %v2129, %v2121
    %v2133 = vmul.f32 %v2131, %v2121
    %v2134 = vadd.f32 %v2132, 1e-05
    %v2135 = vadd.f32 %v2133, 1e-05
    %v2136 = vrsqrt.pop %v2134
    %v2137 = vrsqrt.pop %v2135
    %v2138 = vmul.f32 %v2124, %v2136
    %v2139 = vmul.f32 %v2125, %v2137
    %v2140 = vlaneseq
    %v2141 = vshrl.u32 %v2140, 7
    %v2142 = vsub.s32 0, %v2141
    %v2143 = vrot.slane %v2115, %v2142
    %v2144 = vmul.f32 %v2138, %v2143
    %v2145 = vmul.f32 %v2139, %v2143
    %v2146 = vlaneseq
    %v2147 = vshrl.u32 %v2146, 7
    %v2148 = vsub.s32 0, %v2147
    %v2149 = vrot.slane %v2116, %v2148
    %v2150 = vadd.f32 %v2144, %v2149
    %v2151 = vadd.f32 %v2145, %v2149
    %v2152 = vpack.c.bf16 %v2151, %v2150
    %v2153 = vld [vmem:[#allocation11] sm:$0xff]
    %v2154 = vld [vmem:[#allocation11 + $0x8] sm:$0xff]
    %v2155 = vld [vmem:[#allocation11 + $0x10] sm:$0xff]
    %v2156 = vld [vmem:[#allocation11 + $0x18] sm:$0xff]
    %v2157 = vld [vmem:[#allocation11 + $0x20] sm:$0xff]
    %v2158 = vld [vmem:[#allocation11 + $0x28] sm:$0xff]
    %v2159 = vld [vmem:[#allocation11 + $0x30] sm:$0xff]
    %v2160 = vld [vmem:[#allocation11 + $0x38] sm:$0xff]
    %v2161 = vld [vmem:[#allocation11 + $0x40] sm:$0xff]
    %v2162 = vld [vmem:[#allocation11 + $0x48] sm:$0xff]
    %v2163 = vld [vmem:[#allocation11 + $0x50] sm:$0xff]
    %v2164 = vld [vmem:[#allocation11 + $0x58] sm:$0xff]
    %v2165 = vld [vmem:[#allocation11 + $0x60] sm:$0xff]
    %v2166 = vld [vmem:[#allocation11 + $0x68] sm:$0xff]
    %v2167 = vld [vmem:[#allocation11 + $0x70] sm:$0xff]
    %v2168 = vld [vmem:[#allocation11 + $0x78] sm:$0xff]
    %v2185 = vunpack.c.l.b16 %v2153
    %v2186 = vunpack.c.h.b16 %v2153
    %v2187 = vunpack.c.l.b16 %v2154
    %v2188 = vunpack.c.h.b16 %v2154
    %v2189 = vunpack.c.l.b16 %v2155
    %v2190 = vunpack.c.h.b16 %v2155
    %v2191 = vunpack.c.l.b16 %v2156
    %v2192 = vunpack.c.h.b16 %v2156
    %v2193 = vunpack.c.l.b16 %v2157
    %v2194 = vunpack.c.h.b16 %v2157
    %v2195 = vunpack.c.l.b16 %v2158
    %v2196 = vunpack.c.h.b16 %v2158
    %v2197 = vunpack.c.l.b16 %v2159
    %v2198 = vunpack.c.h.b16 %v2159
    %v2199 = vunpack.c.l.b16 %v2160
    %v2200 = vunpack.c.h.b16 %v2160
    %v2201 = vunpack.c.l.b16 %v2161
    %v2202 = vunpack.c.h.b16 %v2161
    %v2203 = vunpack.c.l.b16 %v2162
    %v2204 = vunpack.c.h.b16 %v2162
    %v2205 = vunpack.c.l.b16 %v2163
    %v2206 = vunpack.c.h.b16 %v2163
    %v2207 = vunpack.c.l.b16 %v2164
    %v2208 = vunpack.c.h.b16 %v2164
    %v2209 = vunpack.c.l.b16 %v2165
    %v2210 = vunpack.c.h.b16 %v2165
    %v2211 = vunpack.c.l.b16 %v2166
    %v2212 = vunpack.c.h.b16 %v2166
    %v2213 = vunpack.c.l.b16 %v2167
    %v2214 = vunpack.c.h.b16 %v2167
    %v2215 = vunpack.c.l.b16 %v2168
    %v2216 = vunpack.c.h.b16 %v2168
    %v2217 = vpack.c.b16 %v2187, %v2185
    %v2218 = vpack.c.b16 %v2188, %v2186
    %v2219 = vpack.c.b16 %v2191, %v2189
    %v2220 = vpack.c.b16 %v2192, %v2190
    %v2221 = vpack.c.b16 %v2195, %v2193
    %v2222 = vpack.c.b16 %v2196, %v2194
    %v2223 = vpack.c.b16 %v2199, %v2197
    %v2224 = vpack.c.b16 %v2200, %v2198
    %v2225 = vpack.c.b16 %v2203, %v2201
    %v2226 = vpack.c.b16 %v2204, %v2202
    %v2227 = vpack.c.b16 %v2207, %v2205
    %v2228 = vpack.c.b16 %v2208, %v2206
    %v2229 = vpack.c.b16 %v2211, %v2209
    %v2230 = vpack.c.b16 %v2212, %v2210
    %v2231 = vpack.c.b16 %v2215, %v2213
    %v2232 = vpack.c.b16 %v2216, %v2214
    %2249 = vmatprep.subr.bf16.mxu0 %v2232
    %2250 = vmatpush1.bf16.msra.mxu0 %v2231
    %2251 = vmatprep.subr.bf16.mxu0 %v2230
    %2252 = vmatpush1.bf16.msra.mxu0 %v2229
    %2253 = vmatprep.subr.bf16.mxu0 %v2228
    %2254 = vmatpush1.bf16.msra.mxu0 %v2227
    %2255 = vmatprep.subr.bf16.mxu0 %v2226
    %2256 = vmatpush1.bf16.msra.mxu0 %v2225
    %2257 = vmatprep.subr.bf16.mxu0 %v2224
    %2258 = vmatpush1.bf16.msra.mxu0 %v2223
    %2259 = vmatprep.subr.bf16.mxu0 %v2222
    %2260 = vmatpush1.bf16.msra.mxu0 %v2221
    %2261 = vmatprep.subr.bf16.mxu0 %v2220
    %2262 = vmatpush1.bf16.msra.mxu0 %v2219
    %2263 = vmatprep.subr.bf16.mxu0 %v2218
    %2264 = vmatpush1.bf16.msra.mxu0 %v2217
    %2265 = vmatprep.subr.bf16.mxu0 0
    %2266 = vmatpush2.bf16.msra.mxu0 0
    %2267 = vmatprep.subr.bf16.mxu0 0
    %2268 = vmatpush2.bf16.msra.mxu0 0
    %2269 = vmatprep.subr.bf16.mxu0 0
    %2270 = vmatpush2.bf16.msra.mxu0 0
    %2271 = vmatprep.subr.bf16.mxu0 0
    %2272 = vmatpush2.bf16.msra.mxu0 0
    %2273 = vmatprep.subr.bf16.mxu0 0
    %2274 = vmatpush2.bf16.msra.mxu0 0
    %2275 = vmatprep.subr.bf16.mxu0 0
    %2276 = vmatpush2.bf16.msra.mxu0 0
    %2277 = vmatprep.subr.bf16.mxu0 0
    %2278 = vmatpush2.bf16.msra.mxu0 0
    %2279 = vmatprep.subr.bf16.mxu0 0
    %2280 = vmatpush2.bf16.msra.mxu0 0
    %2281 = vmatprep.mubr.bf16.mxu0 0
    %2282 = vmatmul.mubr.bf16.gmra.mxu0 %v2152
    %v2283 = vpop.f32.mrf.mxu0
    %v2284 = vadd.f32 0.0, %v2283
    %v2285 = vpop.f32.mrf.mxu0
    %v2286 = vadd.f32 0.0, %v2285
    %v2287 = vpop.f32.mrf.mxu0
    %v2288 = vadd.f32 0.0, %v2287
    %v2289 = vpop.f32.mrf.mxu0
    %v2290 = vadd.f32 0.0, %v2289
    %2291 = vdwg.mxu0
    %v2292 = vld [vmem:[#allocation7 + $0x4] sm:$0x1]
    %v2293 = vlaneseq
    %v2294 = vshrl.u32 %v2293, 7
    %v2295 = vsub.s32 0, %v2294
    %v2296 = vrot.slane %v2292, %v2295
    %v2297 = vadd.f32 %v2284, %v2296
    %v2298 = vadd.f32 %v2288, %v2296
    %v2299 = vmax.f32 %v2297, 0.0
    %v2300 = vmax.f32 %v2298, 0.0
    %v2301 = vld [vmem:[#allocation7 + $0x5] sm:$0x1]
    %v2302 = vlaneseq
    %v2303 = vshrl.u32 %v2302, 7
    %v2304 = vsub.s32 0, %v2303
    %v2305 = vrot.slane %v2301, %v2304
    %v2306 = vadd.f32 %v2286, %v2305
    %v2307 = vadd.f32 %v2290, %v2305
    %v2308 = vmax.f32 %v2306, 0.0
    %v2309 = vmax.f32 %v2307, 0.0
    %v2310 = vpack.c.bf16 %v2300, %v2299
    %v2311 = vpack.c.bf16 %v2309, %v2308
    %v2312 = vld [vmem:[#allocation13] sm:$0xf]
    %v2313 = vld [vmem:[#allocation13 + $0x4] sm:$0xf]
    %v2314 = vld [vmem:[#allocation13 + $0x8] sm:$0xf]
    %v2315 = vld [vmem:[#allocation13 + $0xc] sm:$0xf]
    %v2316 = vld [vmem:[#allocation13 + $0x10] sm:$0xf]
    %v2317 = vld [vmem:[#allocation13 + $0x14] sm:$0xf]
    %v2318 = vld [vmem:[#allocation13 + $0x18] sm:$0xf]
    %v2319 = vld [vmem:[#allocation13 + $0x1c] sm:$0xf]
    %v2320 = vld [vmem:[#allocation13 + $0x20] sm:$0xf]
    %v2321 = vld [vmem:[#allocation13 + $0x24] sm:$0xf]
    %v2322 = vld [vmem:[#allocation13 + $0x28] sm:$0xf]
    %v2323 = vld [vmem:[#allocation13 + $0x2c] sm:$0xf]
    %v2324 = vld [vmem:[#allocation13 + $0x30] sm:$0xf]
    %v2325 = vld [vmem:[#allocation13 + $0x34] sm:$0xf]
    %v2326 = vld [vmem:[#allocation13 + $0x38] sm:$0xf]
    %v2327 = vld [vmem:[#allocation13 + $0x3c] sm:$0xf]
    %v2328 = vld [vmem:[#allocation13 + $0x40] sm:$0xf]
    %v2329 = vld [vmem:[#allocation13 + $0x44] sm:$0xf]
    %v2330 = vld [vmem:[#allocation13 + $0x48] sm:$0xf]
    %v2331 = vld [vmem:[#allocation13 + $0x4c] sm:$0xf]
    %v2332 = vld [vmem:[#allocation13 + $0x50] sm:$0xf]
    %v2333 = vld [vmem:[#allocation13 + $0x54] sm:$0xf]
    %v2334 = vld [vmem:[#allocation13 + $0x58] sm:$0xf]
    %v2335 = vld [vmem:[#allocation13 + $0x5c] sm:$0xf]
    %v2336 = vld [vmem:[#allocation13 + $0x60] sm:$0xf]
    %v2337 = vld [vmem:[#allocation13 + $0x64] sm:$0xf]
    %v2338 = vld [vmem:[#allocation13 + $0x68] sm:$0xf]
    %v2339 = vld [vmem:[#allocation13 + $0x6c] sm:$0xf]
    %v2340 = vld [vmem:[#allocation13 + $0x70] sm:$0xf]
    %v2341 = vld [vmem:[#allocation13 + $0x74] sm:$0xf]
    %v2342 = vld [vmem:[#allocation13 + $0x78] sm:$0xf]
    %v2343 = vld [vmem:[#allocation13 + $0x7c] sm:$0xf]
    %v2344 = vld [vmem:[#allocation7 + $0x6] sm:$0x1]
    %v2345 = vlaneseq
    %v2346 = vshrl.u32 %v2345, 7
    %v2347 = vsub.s32 0, %v2346
    %v2348 = vrot.slane %v2344, %v2347
    %v2381 = vunpack.c.l.b16 %v2312
    %v2382 = vunpack.c.l.b16 %v2313
    %v2383 = vunpack.c.l.b16 %v2314
    %v2384 = vunpack.c.l.b16 %v2315
    %v2385 = vunpack.c.l.b16 %v2316
    %v2386 = vunpack.c.l.b16 %v2317
    %v2387 = vunpack.c.l.b16 %v2318
    %v2388 = vunpack.c.l.b16 %v2319
    %v2389 = vunpack.c.l.b16 %v2320
    %v2390 = vunpack.c.l.b16 %v2321
    %v2391 = vunpack.c.l.b16 %v2322
    %v2392 = vunpack.c.l.b16 %v2323
    %v2393 = vunpack.c.l.b16 %v2324
    %v2394 = vunpack.c.l.b16 %v2325
    %v2395 = vunpack.c.l.b16 %v2326
    %v2396 = vunpack.c.l.b16 %v2327
    %v2397 = vunpack.c.l.b16 %v2328
    %v2398 = vunpack.c.l.b16 %v2329
    %v2399 = vunpack.c.l.b16 %v2330
    %v2400 = vunpack.c.l.b16 %v2331
    %v2401 = vunpack.c.l.b16 %v2332
    %v2402 = vunpack.c.l.b16 %v2333
    %v2403 = vunpack.c.l.b16 %v2334
    %v2404 = vunpack.c.l.b16 %v2335
    %v2405 = vunpack.c.l.b16 %v2336
    %v2406 = vunpack.c.l.b16 %v2337
    %v2407 = vunpack.c.l.b16 %v2338
    %v2408 = vunpack.c.l.b16 %v2339
    %v2409 = vunpack.c.l.b16 %v2340
    %v2410 = vunpack.c.l.b16 %v2341
    %v2411 = vunpack.c.l.b16 %v2342
    %v2412 = vunpack.c.l.b16 %v2343
    %v2413 = vpack.c.b16 %v2382, %v2381
    %v2414 = vpack.c.b16 %v2384, %v2383
    %v2415 = vpack.c.b16 %v2386, %v2385
    %v2416 = vpack.c.b16 %v2388, %v2387
    %v2417 = vpack.c.b16 %v2390, %v2389
    %v2418 = vpack.c.b16 %v2392, %v2391
    %v2419 = vpack.c.b16 %v2394, %v2393
    %v2420 = vpack.c.b16 %v2396, %v2395
    %v2421 = vpack.c.b16 %v2398, %v2397
    %v2422 = vpack.c.b16 %v2400, %v2399
    %v2423 = vpack.c.b16 %v2402, %v2401
    %v2424 = vpack.c.b16 %v2404, %v2403
    %v2425 = vpack.c.b16 %v2406, %v2405
    %v2426 = vpack.c.b16 %v2408, %v2407
    %v2427 = vpack.c.b16 %v2410, %v2409
    %v2428 = vpack.c.b16 %v2412, %v2411
    %2445 = vmatprep.subr.bf16.mxu0 0
    %2446 = vmatpush1.bf16.msra.mxu0 %v2420
    %2447 = vmatprep.subr.bf16.mxu0 0
    %2448 = vmatpush1.bf16.msra.mxu0 %v2419
    %2449 = vmatprep.subr.bf16.mxu0 0
    %2450 = vmatpush1.bf16.msra.mxu0 %v2418
    %2451 = vmatprep.subr.bf16.mxu0 0
    %2452 = vmatpush1.bf16.msra.mxu0 %v2417
    %2453 = vmatprep.subr.bf16.mxu0 0
    %2454 = vmatpush1.bf16.msra.mxu0 %v2416
    %2455 = vmatprep.subr.bf16.mxu0 0
    %2456 = vmatpush1.bf16.msra.mxu0 %v2415
    %2457 = vmatprep.subr.bf16.mxu0 0
    %2458 = vmatpush1.bf16.msra.mxu0 %v2414
    %2459 = vmatprep.subr.bf16.mxu0 0
    %2460 = vmatpush1.bf16.msra.mxu0 %v2413
    %2461 = vmatprep.subr.bf16.mxu0 0
    %2462 = vmatpush2.bf16.msra.mxu0 %v2428
    %2463 = vmatprep.subr.bf16.mxu0 0
    %2464 = vmatpush2.bf16.msra.mxu0 %v2427
    %2465 = vmatprep.subr.bf16.mxu0 0
    %2466 = vmatpush2.bf16.msra.mxu0 %v2426
    %2467 = vmatprep.subr.bf16.mxu0 0
    %2468 = vmatpush2.bf16.msra.mxu0 %v2425
    %2469 = vmatprep.subr.bf16.mxu0 0
    %2470 = vmatpush2.bf16.msra.mxu0 %v2424
    %2471 = vmatprep.subr.bf16.mxu0 0
    %2472 = vmatpush2.bf16.msra.mxu0 %v2423
    %2473 = vmatprep.subr.bf16.mxu0 0
    %2474 = vmatpush2.bf16.msra.mxu0 %v2422
    %2475 = vmatprep.subr.bf16.mxu0 0
    %2476 = vmatpush2.bf16.msra.mxu0 %v2421
    %2477 = vmatprep.mubr.bf16.mxu0 %v2311
    %2478 = vmatmul.mubr.bf16.gmra.mxu0 %v2310
    %v2479 = vpop.f32.mrf.mxu0
    %v2480 = vadd.f32 %v2348, %v2479
    %v2481 = vpop.f32.mrf.mxu0
    %v2482 = vpop.f32.mrf.mxu0
    %v2483 = vadd.f32 %v2348, %v2482
    %v2484 = vpop.f32.mrf.mxu0
    %2485 = vdwg.mxu0
    %v2486 = vadd.f32 %v2150, %v2480
    %v2487 = vadd.f32 %v2151, %v2483
    %v2488 = vld [vmem:[#allocation7 + $0x9] sm:$0x1]
    %v2489 = vld [vmem:[#allocation7 + $0xa] sm:$0x1]
    %2490 = vadd.xlane.f32.xlu0 %v2486
    %v2491 = vpop.xlane.xlu0 %2490
    %2492 = vadd.xlane.f32.xlu0 %v2487
    %v2493 = vpop.xlane.xlu0 %2492
    %v2494 = vmul.f32 %v2491, %v2121
    %v2495 = vmul.f32 %v2493, %v2121
    %v2496 = vsub.f32 %v2486, %v2494
    %v2497 = vsub.f32 %v2487, %v2495
    %v2498 = vmul.f32 %v2496, %v2496
    %v2499 = vmul.f32 %v2497, %v2497
    %2500 = vadd.xlane.f32.xlu0 %v2498
    %v2501 = vpop.xlane.xlu0 %2500
    %2502 = vadd.xlane.f32.xlu0 %v2499
    %v2503 = vpop.xlane.xlu0 %2502
    %v2504 = vmul.f32 %v2501, %v2121
    %v2505 = vmul.f32 %v2503, %v2121
    %v2506 = vadd.f32 %v2504, 1e-05
    %v2507 = vadd.f32 %v2505, 1e-05
    %v2508 = vrsqrt.pop %v2506
    %v2509 = vrsqrt.pop %v2507
    %v2510 = vmul.f32 %v2496, %v2508
    %v2511 = vmul.f32 %v2497, %v2509
    %v2512 = vlaneseq
    %v2513 = vshrl.u32 %v2512, 7
    %v2514 = vsub.s32 0, %v2513
    %v2515 = vrot.slane %v2488, %v2514
    %v2516 = vmul.f32 %v2510, %v2515
    %v2517 = vmul.f32 %v2511, %v2515
    %v2518 = vlaneseq
    %v2519 = vshrl.u32 %v2518, 7
    %v2520 = vsub.s32 0, %v2519
    %v2521 = vrot.slane %v2489, %v2520
    %v2522 = vadd.f32 %v2516, %v2521
    %v2523 = vadd.f32 %v2517, %v2521
    %v2524 = vpack.c.bf16 %v2523, %v2522
    %s2525 = scalar_lea.vmem [#allocation8], 192
    %v2526 = vld [vmem:[%s2525] sm:$0xff]
    %v2527 = vld [vmem:[%s2525 + $0x8] sm:$0xf]
    %v2528 = vld [vmem:[%s2525 + $0xc] sm:$0xff]
    %v2529 = vld [vmem:[%s2525 + $0x14] sm:$0xf]
    %v2530 = vld [vmem:[%s2525 + $0x18] sm:$0xff]
    %v2531 = vld [vmem:[%s2525 + $0x20] sm:$0xf]
    %v2532 = vld [vmem:[%s2525 + $0x24] sm:$0xff]
    %v2533 = vld [vmem:[%s2525 + $0x2c] sm:$0xf]
    %v2534 = vld [vmem:[%s2525 + $0x30] sm:$0xff]
    %v2535 = vld [vmem:[%s2525 + $0x38] sm:$0xf]
    %v2536 = vld [vmem:[%s2525 + $0x3c] sm:$0xff]
    %v2537 = vld [vmem:[%s2525 + $0x44] sm:$0xf]
    %v2538 = vld [vmem:[%s2525 + $0x48] sm:$0xff]
    %v2539 = vld [vmem:[%s2525 + $0x50] sm:$0xf]
    %v2540 = vld [vmem:[%s2525 + $0x54] sm:$0xff]
    %v2541 = vld [vmem:[%s2525 + $0x5c] sm:$0xf]
    %v2542 = vld [vmem:[%s2525 + $0x60] sm:$0xff]
    %v2543 = vld [vmem:[%s2525 + $0x68] sm:$0xf]
    %v2544 = vld [vmem:[%s2525 + $0x6c] sm:$0xff]
    %v2545 = vld [vmem:[%s2525 + $0x74] sm:$0xf]
    %v2546 = vld [vmem:[%s2525 + $0x78] sm:$0xff]
    %v2547 = vld [vmem:[%s2525 + $0x80] sm:$0xf]
    %v2548 = vld [vmem:[%s2525 + $0x84] sm:$0xff]
    %v2549 = vld [vmem:[%s2525 + $0x8c] sm:$0xf]
    %v2550 = vld [vmem:[%s2525 + $0x90] sm:$0xff]
    %v2551 = vld [vmem:[%s2525 + $0x98] sm:$0xf]
    %v2552 = vld [vmem:[%s2525 + $0x9c] sm:$0xff]
    %v2553 = vld [vmem:[%s2525 + $0xa4] sm:$0xf]
    %v2554 = vld [vmem:[%s2525 + $0xa8] sm:$0xff]
    %v2555 = vld [vmem:[%s2525 + $0xb0] sm:$0xf]
    %v2556 = vld [vmem:[%s2525 + $0xb4] sm:$0xff]
    %v2557 = vld [vmem:[%s2525 + $0xbc] sm:$0xf]
    %v2590 = vunpack.c.l.b16 %v2526
    %v2591 = vunpack.c.h.b16 %v2526
    %v2592 = vunpack.c.l.b16 %v2527
    %v2593 = vunpack.c.l.b16 %v2528
    %v2594 = vunpack.c.h.b16 %v2528
    %v2595 = vunpack.c.l.b16 %v2529
    %v2596 = vunpack.c.l.b16 %v2530
    %v2597 = vunpack.c.h.b16 %v2530
    %v2598 = vunpack.c.l.b16 %v2531
    %v2599 = vunpack.c.l.b16 %v2532
    %v2600 = vunpack.c.h.b16 %v2532
    %v2601 = vunpack.c.l.b16 %v2533
    %v2602 = vunpack.c.l.b16 %v2534
    %v2603 = vunpack.c.h.b16 %v2534
    %v2604 = vunpack.c.l.b16 %v2535
    %v2605 = vunpack.c.l.b16 %v2536
    %v2606 = vunpack.c.h.b16 %v2536
    %v2607 = vunpack.c.l.b16 %v2537
    %v2608 = vunpack.c.l.b16 %v2538
    %v2609 = vunpack.c.h.b16 %v2538
    %v2610 = vunpack.c.l.b16 %v2539
    %v2611 = vunpack.c.l.b16 %v2540
    %v2612 = vunpack.c.h.b16 %v2540
    %v2613 = vunpack.c.l.b16 %v2541
    %v2614 = vunpack.c.l.b16 %v2542
    %v2615 = vunpack.c.h.b16 %v2542
    %v2616 = vunpack.c.l.b16 %v2543
    %v2617 = vunpack.c.l.b16 %v2544
    %v2618 = vunpack.c.h.b16 %v2544
    %v2619 = vunpack.c.l.b16 %v2545
    %v2620 = vunpack.c.l.b16 %v2546
    %v2621 = vunpack.c.h.b16 %v2546
    %v2622 = vunpack.c.l.b16 %v2547
    %v2623 = vunpack.c.l.b16 %v2548
    %v2624 = vunpack.c.h.b16 %v2548
    %v2625 = vunpack.c.l.b16 %v2549
    %v2626 = vunpack.c.l.b16 %v2550
    %v2627 = vunpack.c.h.b16 %v2550
    %v2628 = vunpack.c.l.b16 %v2551
    %v2629 = vunpack.c.l.b16 %v2552
    %v2630 = vunpack.c.h.b16 %v2552
    %v2631 = vunpack.c.l.b16 %v2553
    %v2632 = vunpack.c.l.b16 %v2554
    %v2633 = vunpack.c.h.b16 %v2554
    %v2634 = vunpack.c.l.b16 %v2555
    %v2635 = vunpack.c.l.b16 %v2556
    %v2636 = vunpack.c.h.b16 %v2556
    %v2637 = vunpack.c.l.b16 %v2557
    %v2638 = vpack.c.b16 %v2593, %v2590
    %v2639 = vpack.c.b16 %v2594, %v2591
    %v2640 = vpack.c.b16 %v2595, %v2592
    %v2641 = vpack.c.b16 %v2599, %v2596
    %v2642 = vpack.c.b16 %v2600, %v2597
    %v2643 = vpack.c.b16 %v2601, %v2598
    %v2644 = vpack.c.b16 %v2605, %v2602
    %v2645 = vpack.c.b16 %v2606, %v2603
    %v2646 = vpack.c.b16 %v2607, %v2604
    %v2647 = vpack.c.b16 %v2611, %v2608
    %v2648 = vpack.c.b16 %v2612, %v2609
    %v2649 = vpack.c.b16 %v2613, %v2610
    %v2650 = vpack.c.b16 %v2617, %v2614
    %v2651 = vpack.c.b16 %v2618, %v2615
    %v2652 = vpack.c.b16 %v2619, %v2616
    %v2653 = vpack.c.b16 %v2623, %v2620
    %v2654 = vpack.c.b16 %v2624, %v2621
    %v2655 = vpack.c.b16 %v2625, %v2622
    %v2656 = vpack.c.b16 %v2629, %v2626
    %v2657 = vpack.c.b16 %v2630, %v2627
    %v2658 = vpack.c.b16 %v2631, %v2628
    %v2659 = vpack.c.b16 %v2635, %v2632
    %v2660 = vpack.c.b16 %v2636, %v2633
    %v2661 = vpack.c.b16 %v2637, %v2634
    %2686 = vmatprep.subr.bf16.mxu0 %v2660
    %2687 = vmatpush1.bf16.msra.mxu0 %v2659
    %2688 = vmatprep.subr.bf16.mxu0 %v2657
    %2689 = vmatpush1.bf16.msra.mxu0 %v2656
    %2690 = vmatprep.subr.bf16.mxu0 %v2654
    %2691 = vmatpush1.bf16.msra.mxu0 %v2653
    %2692 = vmatprep.subr.bf16.mxu0 %v2651
    %2693 = vmatpush1.bf16.msra.mxu0 %v2650
    %2694 = vmatprep.subr.bf16.mxu0 %v2648
    %2695 = vmatpush1.bf16.msra.mxu0 %v2647
    %2696 = vmatprep.subr.bf16.mxu0 %v2645
    %2697 = vmatpush1.bf16.msra.mxu0 %v2644
    %2698 = vmatprep.subr.bf16.mxu0 %v2642
    %2699 = vmatpush1.bf16.msra.mxu0 %v2641
    %2700 = vmatprep.subr.bf16.mxu0 %v2639
    %2701 = vmatpush1.bf16.msra.mxu0 %v2638
    %2702 = vmatprep.subr.bf16.mxu0 0
    %2703 = vmatpush2.bf16.msra.mxu0 0
    %2704 = vmatprep.subr.bf16.mxu0 0
    %2705 = vmatpush2.bf16.msra.mxu0 0
    %2706 = vmatprep.subr.bf16.mxu0 0
    %2707 = vmatpush2.bf16.msra.mxu0 0
    %2708 = vmatprep.subr.bf16.mxu0 0
    %2709 = vmatpush2.bf16.msra.mxu0 0
    %2710 = vmatprep.subr.bf16.mxu0 0
    %2711 = vmatpush2.bf16.msra.mxu0 0
    %2712 = vmatprep.subr.bf16.mxu0 0
    %2713 = vmatpush2.bf16.msra.mxu0 0
    %2714 = vmatprep.subr.bf16.mxu0 0
    %2715 = vmatpush2.bf16.msra.mxu0 0
    %2716 = vmatprep.subr.bf16.mxu0 0
    %2717 = vmatpush2.bf16.msra.mxu0 0
    %2718 = vmatprep.mubr.bf16.mxu0 0
    %2719 = vmatmul.mubr.bf16.gmra.mxu0 %v2524
    %v2720 = vpop.f32.mrf.mxu0
    %v2721 = vadd.f32 0.0, %v2720
    %v2722 = vpop.f32.mrf.mxu0
    %v2723 = vadd.f32 0.0, %v2722
    %v2724 = vpop.f32.mrf.mxu0
    %v2725 = vadd.f32 0.0, %v2724
    %v2726 = vpop.f32.mrf.mxu0
    %v2727 = vadd.f32 0.0, %v2726
    %2728 = vdwg.mxu0
    %2729 = vmatprep.subr.bf16.mxu0 0
    %2730 = vmatpush1.bf16.msra.mxu0 %v2661
    %2731 = vmatprep.subr.bf16.mxu0 0
    %2732 = vmatpush1.bf16.msra.mxu0 %v2658
    %2733 = vmatprep.subr.bf16.mxu0 0
    %2734 = vmatpush1.bf16.msra.mxu0 %v2655
    %2735 = vmatprep.subr.bf16.mxu0 0
    %2736 = vmatpush1.bf16.msra.mxu0 %v2652
    %2737 = vmatprep.subr.bf16.mxu0 0
    %2738 = vmatpush1.bf16.msra.mxu0 %v2649
    %2739 = vmatprep.subr.bf16.mxu0 0
    %2740 = vmatpush1.bf16.msra.mxu0 %v2646
    %2741 = vmatprep.subr.bf16.mxu0 0
    %2742 = vmatpush1.bf16.msra.mxu0 %v2643
    %2743 = vmatprep.subr.bf16.mxu0 0
    %2744 = vmatpush1.bf16.msra.mxu0 %v2640
    %2745 = vmatprep.subr.bf16.mxu0 0
    %2746 = vmatpush2.bf16.msra.mxu0 0
    %2747 = vmatprep.subr.bf16.mxu0 0
    %2748 = vmatpush2.bf16.msra.mxu0 0
    %2749 = vmatprep.subr.bf16.mxu0 0
    %2750 = vmatpush2.bf16.msra.mxu0 0
    %2751 = vmatprep.subr.bf16.mxu0 0
    %2752 = vmatpush2.bf16.msra.mxu0 0
    %2753 = vmatprep.subr.bf16.mxu0 0
    %2754 = vmatpush2.bf16.msra.mxu0 0
    %2755 = vmatprep.subr.bf16.mxu0 0
    %2756 = vmatpush2.bf16.msra.mxu0 0
    %2757 = vmatprep.subr.bf16.mxu0 0
    %2758 = vmatpush2.bf16.msra.mxu0 0
    %2759 = vmatprep.subr.bf16.mxu0 0
    %2760 = vmatpush2.bf16.msra.mxu0 0
    %2761 = vmatprep.mubr.bf16.mxu0 0
    %2762 = vmatmul.mubr.bf16.gmra.mxu0 %v2524
    %v2763 = vpop.f32.mrf.mxu0
    %v2764 = vadd.f32 0.0, %v2763
    %v2765 = vpop.f32.mrf.mxu0
    %v2766 = vpop.f32.mrf.mxu0
    %v2767 = vadd.f32 0.0, %v2766
    %v2768 = vpop.f32.mrf.mxu0
    %2769 = vdwg.mxu0
    %v2770 = vld [vmem:[#allocation7 + $0xb] sm:$0x1]
    %v2771 = vlaneseq
    %v2772 = vshrl.u32 %v2771, 7
    %v2773 = vsub.s32 0, %v2772
    %v2774 = vrot.slane %v2770, %v2773
    %v2775 = vadd.f32 %v2721, %v2774
    %v2776 = vadd.f32 %v2725, %v2774
    %v2777 = vld [vmem:[#allocation7 + $0xc] sm:$0x1]
    %v2778 = vlaneseq
    %v2779 = vshrl.u32 %v2778, 7
    %v2780 = vsub.s32 0, %v2779
    %v2781 = vrot.slane %v2777, %v2780
    %v2782 = vadd.f32 %v2723, %v2781
    %v2783 = vadd.f32 %v2727, %v2781
    %v2784 = vld [vmem:[#allocation7 + $0xd] sm:$0x1]
    %v2785 = vlaneseq
    %v2786 = vshrl.u32 %v2785, 7
    %v2787 = vsub.s32 0, %v2786
    %v2788 = vrot.slane %v2784, %v2787
    %v2789 = vadd.f32 %v2764, %v2788
    %v2790 = vadd.f32 %v2767, %v2788
    %v2791 = vpack.c.bf16 %v2776, %v2775
    %2793 = vrot.lane.b32.xlu0 %v2791, 96
    %v2794 = vpop.permute.xlu0 %2793
    %2795 = vrot.lane.b32.xlu0 %v2791, 64
    %v2796 = vpop.permute.xlu0 %2795
    %2797 = vrot.lane.b32.xlu0 %v2791, 32
    %v2798 = vpop.permute.xlu0 %2797
    %v2801 = vpack.i.b16 %v2794, %v2791
    %v2803 = vshrl.u32 %v2791, 16
    %v2804 = vshrl.u32 %v2794, 16
    %v2805 = vpack.i.b16 %v2804, %v2803
    %v2809 = vpack.i.b16 %v2798, %v2796
    %v2811 = vshrl.u32 %v2796, 16
    %v2812 = vshrl.u32 %v2798, 16
    %v2813 = vpack.i.b16 %v2812, %v2811
    %v2815 = vcombine.high %v2801, %v451
    %v2817 = vunpack.c.l.s4 1983009808
    %v2818 = vunpack.c.0.s8 %v2817
    %v2819 = vlaneseq
    %v2820 = vshrl.u32 %v2819, 7
    %v2821 = vsub.s32 %v2818, %v2820
    %v2822 = vrot.slane %v2801, %v2821
    %v2824 = vunpack.c.l.s4 1983009808
    %v2825 = vunpack.c.0.s8 %v2824
    %v2826 = vlaneseq
    %v2827 = vshrl.u32 %v2826, 7
    %v2828 = vsub.s32 %v2825, %v2827
    %v2829 = vrot.slane %v2815, %v2828
    %v2830 = vcombine.high %v2809, %v451
    %v2832 = vunpack.c.l.s4 1983009808
    %v2833 = vunpack.c.0.s8 %v2832
    %v2834 = vlaneseq
    %v2835 = vshrl.u32 %v2834, 7
    %v2836 = vsub.s32 %v2833, %v2835
    %v2837 = vrot.slane %v2809, %v2836
    %v2839 = vunpack.c.l.s4 1983009808
    %v2840 = vunpack.c.0.s8 %v2839
    %v2841 = vlaneseq
    %v2842 = vshrl.u32 %v2841, 7
    %v2843 = vsub.s32 %v2840, %v2842
    %v2844 = vrot.slane %v2830, %v2843
    %v2845 = vcombine.low %v2822, %v2837
    %v2846 = vcombine.high %v2822, %v2837
    %v2848 = vunpack.c.l.s4 1934713408
    %v2849 = vunpack.c.0.s8 %v2848
    %v2850 = vlaneseq
    %v2851 = vshrl.u32 %v2850, 7
    %v2852 = vsub.s32 %v2849, %v2851
    %v2853 = vrot.slane %v2845, %v2852
    %v2855 = vunpack.c.l.s4 1934713408
    %v2856 = vunpack.c.0.s8 %v2855
    %v2857 = vlaneseq
    %v2858 = vshrl.u32 %v2857, 7
    %v2859 = vsub.s32 %v2856, %v2858
    %v2860 = vrot.slane %v2846, %v2859
    %v2861 = vcombine.low %v2829, %v2844
    %v2862 = vcombine.high %v2829, %v2844
    %v2864 = vunpack.c.l.s4 1934713408
    %v2865 = vunpack.c.0.s8 %v2864
    %v2866 = vlaneseq
    %v2867 = vshrl.u32 %v2866, 7
    %v2868 = vsub.s32 %v2865, %v2867
    %v2869 = vrot.slane %v2861, %v2868
    %v2871 = vunpack.c.l.s4 1934713408
    %v2872 = vunpack.c.0.s8 %v2871
    %v2873 = vlaneseq
    %v2874 = vshrl.u32 %v2873, 7
    %v2875 = vsub.s32 %v2872, %v2874
    %v2876 = vrot.slane %v2862, %v2875
    %v2877 = vcombine.high %v2853, 0
    %v2878 = vcombine.high %v2860, 0
    %v2879 = vcombine.high %v2869, 0
    %v2880 = vcombine.high %v2876, 0
    %v2881 = vcombine.high %v2805, %v454
    %v2883 = vunpack.c.l.s4 1983009808
    %v2884 = vunpack.c.0.s8 %v2883
    %v2885 = vlaneseq
    %v2886 = vshrl.u32 %v2885, 7
    %v2887 = vsub.s32 %v2884, %v2886
    %v2888 = vrot.slane %v2805, %v2887
    %v2890 = vunpack.c.l.s4 1983009808
    %v2891 = vunpack.c.0.s8 %v2890
    %v2892 = vlaneseq
    %v2893 = vshrl.u32 %v2892, 7
    %v2894 = vsub.s32 %v2891, %v2893
    %v2895 = vrot.slane %v2881, %v2894
    %v2896 = vcombine.high %v2813, %v454
    %v2898 = vunpack.c.l.s4 1983009808
    %v2899 = vunpack.c.0.s8 %v2898
    %v2900 = vlaneseq
    %v2901 = vshrl.u32 %v2900, 7
    %v2902 = vsub.s32 %v2899, %v2901
    %v2903 = vrot.slane %v2813, %v2902
    %v2905 = vunpack.c.l.s4 1983009808
    %v2906 = vunpack.c.0.s8 %v2905
    %v2907 = vlaneseq
    %v2908 = vshrl.u32 %v2907, 7
    %v2909 = vsub.s32 %v2906, %v2908
    %v2910 = vrot.slane %v2896, %v2909
    %v2911 = vcombine.low %v2888, %v2903
    %v2912 = vcombine.high %v2888, %v2903
    %v2914 = vunpack.c.l.s4 1934713408
    %v2915 = vunpack.c.0.s8 %v2914
    %v2916 = vlaneseq
    %v2917 = vshrl.u32 %v2916, 7
    %v2918 = vsub.s32 %v2915, %v2917
    %v2919 = vrot.slane %v2911, %v2918
    %v2921 = vunpack.c.l.s4 1934713408
    %v2922 = vunpack.c.0.s8 %v2921
    %v2923 = vlaneseq
    %v2924 = vshrl.u32 %v2923, 7
    %v2925 = vsub.s32 %v2922, %v2924
    %v2926 = vrot.slane %v2912, %v2925
    %v2927 = vcombine.low %v2895, %v2910
    %v2928 = vcombine.high %v2895, %v2910
    %v2930 = vunpack.c.l.s4 1934713408
    %v2931 = vunpack.c.0.s8 %v2930
    %v2932 = vlaneseq
    %v2933 = vshrl.u32 %v2932, 7
    %v2934 = vsub.s32 %v2931, %v2933
    %v2935 = vrot.slane %v2927, %v2934
    %v2937 = vunpack.c.l.s4 1934713408
    %v2938 = vunpack.c.0.s8 %v2937
    %v2939 = vlaneseq
    %v2940 = vshrl.u32 %v2939, 7
    %v2941 = vsub.s32 %v2938, %v2940
    %v2942 = vrot.slane %v2928, %v2941
    %v2943 = vcombine.high %v2919, 0
    %v2944 = vcombine.high %v2926, 0
    %v2945 = vcombine.high %v2935, 0
    %v2946 = vcombine.high %v2942, 0
    %v2947 = vcombine.low %v2853, %v2860
    %v2949 = vunpack.c.l.s4 1983009808
    %v2950 = vunpack.c.0.s8 %v2949
    %v2951 = vlaneseq
    %v2952 = vshrl.u32 %v2951, 7
    %v2953 = vsub.s32 %v2950, %v2952
    %v2954 = vrot.slane %v2947, %v2953
    %v2955 = vcombine.low %v2877, %v2878
    %v2957 = vunpack.c.l.s4 1983009808
    %v2958 = vunpack.c.0.s8 %v2957
    %v2959 = vlaneseq
    %v2960 = vshrl.u32 %v2959, 7
    %v2961 = vsub.s32 %v2958, %v2960
    %v2962 = vrot.slane %v2955, %v2961
    %v2963 = vcombine.low %v2869, %v2876
    %v2965 = vunpack.c.l.s4 1983009808
    %v2966 = vunpack.c.0.s8 %v2965
    %v2967 = vlaneseq
    %v2968 = vshrl.u32 %v2967, 7
    %v2969 = vsub.s32 %v2966, %v2968
    %v2970 = vrot.slane %v2963, %v2969
    %v2971 = vcombine.low %v2879, %v2880
    %v2973 = vunpack.c.l.s4 1983009808
    %v2974 = vunpack.c.0.s8 %v2973
    %v2975 = vlaneseq
    %v2976 = vshrl.u32 %v2975, 7
    %v2977 = vsub.s32 %v2974, %v2976
    %v2978 = vrot.slane %v2971, %v2977
    %v2979 = vcombine.low %v2954, %v2962
    %v2981 = vunpack.c.l.s4 1934713408
    %v2982 = vunpack.c.0.s8 %v2981
    %v2983 = vlaneseq
    %v2984 = vshrl.u32 %v2983, 7
    %v2985 = vsub.s32 %v2982, %v2984
    %v2986 = vrot.slane %v2979, %v2985
    %v2987 = vcombine.low %v2970, %v2978
    %v2989 = vunpack.c.l.s4 1934713408
    %v2990 = vunpack.c.0.s8 %v2989
    %v2991 = vlaneseq
    %v2992 = vshrl.u32 %v2991, 7
    %v2993 = vsub.s32 %v2990, %v2992
    %v2994 = vrot.slane %v2987, %v2993
    %v2995 = vcombine.low %v2986, %v2994
    %v2996 = vcombine.high %v2986, %v2994
    %v2997 = vcombine.low %v2919, %v2926
    %v2999 = vunpack.c.l.s4 1983009808
    %v3000 = vunpack.c.0.s8 %v2999
    %v3001 = vlaneseq
    %v3002 = vshrl.u32 %v3001, 7
    %v3003 = vsub.s32 %v3000, %v3002
    %v3004 = vrot.slane %v2997, %v3003
    %v3005 = vcombine.low %v2943, %v2944
    %v3007 = vunpack.c.l.s4 1983009808
    %v3008 = vunpack.c.0.s8 %v3007
    %v3009 = vlaneseq
    %v3010 = vshrl.u32 %v3009, 7
    %v3011 = vsub.s32 %v3008, %v3010
    %v3012 = vrot.slane %v3005, %v3011
    %v3013 = vcombine.low %v2935, %v2942
    %v3015 = vunpack.c.l.s4 1983009808
    %v3016 = vunpack.c.0.s8 %v3015
    %v3017 = vlaneseq
    %v3018 = vshrl.u32 %v3017, 7
    %v3019 = vsub.s32 %v3016, %v3018
    %v3020 = vrot.slane %v3013, %v3019
    %v3021 = vcombine.low %v2945, %v2946
    %v3023 = vunpack.c.l.s4 1983009808
    %v3024 = vunpack.c.0.s8 %v3023
    %v3025 = vlaneseq
    %v3026 = vshrl.u32 %v3025, 7
    %v3027 = vsub.s32 %v3024, %v3026
    %v3028 = vrot.slane %v3021, %v3027
    %v3029 = vcombine.low %v3004, %v3012
    %v3031 = vunpack.c.l.s4 1934713408
    %v3032 = vunpack.c.0.s8 %v3031
    %v3033 = vlaneseq
    %v3034 = vshrl.u32 %v3033, 7
    %v3035 = vsub.s32 %v3032, %v3034
    %v3036 = vrot.slane %v3029, %v3035
    %v3037 = vcombine.low %v3020, %v3028
    %v3039 = vunpack.c.l.s4 1934713408
    %v3040 = vunpack.c.0.s8 %v3039
    %v3041 = vlaneseq
    %v3042 = vshrl.u32 %v3041, 7
    %v3043 = vsub.s32 %v3040, %v3042
    %v3044 = vrot.slane %v3037, %v3043
    %v3045 = vcombine.low %v3036, %v3044
    %v3046 = vcombine.high %v3036, %v3044
    %v3049 = vpack.i.b16 %v3045, %v2995
    %v3050 = vshrl.u32 %v2995, 16
    %v3051 = vshrl.u32 %v3045, 16
    %v3052 = vpack.i.b16 %v3051, %v3050
    %v3055 = vpack.i.b16 %v3046, %v2996
    %v3056 = vshrl.u32 %v2996, 16
    %v3057 = vshrl.u32 %v3046, 16
    %v3058 = vpack.i.b16 %v3057, %v3056
    %v3059 = vpack.c.bf16 %v2783, %v2782
    %3061 = vrot.lane.b32.xlu0 %v3059, 96
    %v3062 = vpop.permute.xlu0 %3061
    %3063 = vrot.lane.b32.xlu0 %v3059, 64
    %v3064 = vpop.permute.xlu0 %3063
    %3065 = vrot.lane.b32.xlu0 %v3059, 32
    %v3066 = vpop.permute.xlu0 %3065
    %v3069 = vpack.i.b16 %v3062, %v3059
    %v3071 = vshrl.u32 %v3059, 16
    %v3072 = vshrl.u32 %v3062, 16
    %v3073 = vpack.i.b16 %v3072, %v3071
    %v3077 = vpack.i.b16 %v3066, %v3064
    %v3079 = vshrl.u32 %v3064, 16
    %v3080 = vshrl.u32 %v3066, 16
    %v3081 = vpack.i.b16 %v3080, %v3079
    %v3083 = vcombine.high %v3069, %v451
    %v3085 = vunpack.c.l.s4 1983009808
    %v3086 = vunpack.c.0.s8 %v3085
    %v3087 = vlaneseq
    %v3088 = vshrl.u32 %v3087, 7
    %v3089 = vsub.s32 %v3086, %v3088
    %v3090 = vrot.slane %v3069, %v3089
    %v3092 = vunpack.c.l.s4 1983009808
    %v3093 = vunpack.c.0.s8 %v3092
    %v3094 = vlaneseq
    %v3095 = vshrl.u32 %v3094, 7
    %v3096 = vsub.s32 %v3093, %v3095
    %v3097 = vrot.slane %v3083, %v3096
    %v3098 = vcombine.high %v3077, %v451
    %v3100 = vunpack.c.l.s4 1983009808
    %v3101 = vunpack.c.0.s8 %v3100
    %v3102 = vlaneseq
    %v3103 = vshrl.u32 %v3102, 7
    %v3104 = vsub.s32 %v3101, %v3103
    %v3105 = vrot.slane %v3077, %v3104
    %v3107 = vunpack.c.l.s4 1983009808
    %v3108 = vunpack.c.0.s8 %v3107
    %v3109 = vlaneseq
    %v3110 = vshrl.u32 %v3109, 7
    %v3111 = vsub.s32 %v3108, %v3110
    %v3112 = vrot.slane %v3098, %v3111
    %v3113 = vcombine.low %v3090, %v3105
    %v3114 = vcombine.high %v3090, %v3105
    %v3116 = vunpack.c.l.s4 1934713408
    %v3117 = vunpack.c.0.s8 %v3116
    %v3118 = vlaneseq
    %v3119 = vshrl.u32 %v3118, 7
    %v3120 = vsub.s32 %v3117, %v3119
    %v3121 = vrot.slane %v3113, %v3120
    %v3123 = vunpack.c.l.s4 1934713408
    %v3124 = vunpack.c.0.s8 %v3123
    %v3125 = vlaneseq
    %v3126 = vshrl.u32 %v3125, 7
    %v3127 = vsub.s32 %v3124, %v3126
    %v3128 = vrot.slane %v3114, %v3127
    %v3129 = vcombine.low %v3097, %v3112
    %v3130 = vcombine.high %v3097, %v3112
    %v3132 = vunpack.c.l.s4 1934713408
    %v3133 = vunpack.c.0.s8 %v3132
    %v3134 = vlaneseq
    %v3135 = vshrl.u32 %v3134, 7
    %v3136 = vsub.s32 %v3133, %v3135
    %v3137 = vrot.slane %v3129, %v3136
    %v3139 = vunpack.c.l.s4 1934713408
    %v3140 = vunpack.c.0.s8 %v3139
    %v3141 = vlaneseq
    %v3142 = vshrl.u32 %v3141, 7
    %v3143 = vsub.s32 %v3140, %v3142
    %v3144 = vrot.slane %v3130, %v3143
    %v3145 = vcombine.high %v3121, 0
    %v3146 = vcombine.high %v3128, 0
    %v3147 = vcombine.high %v3137, 0
    %v3148 = vcombine.high %v3144, 0
    %v3149 = vcombine.high %v3073, %v454
    %v3151 = vunpack.c.l.s4 1983009808
    %v3152 = vunpack.c.0.s8 %v3151
    %v3153 = vlaneseq
    %v3154 = vshrl.u32 %v3153, 7
    %v3155 = vsub.s32 %v3152, %v3154
    %v3156 = vrot.slane %v3073, %v3155
    %v3158 = vunpack.c.l.s4 1983009808
    %v3159 = vunpack.c.0.s8 %v3158
    %v3160 = vlaneseq
    %v3161 = vshrl.u32 %v3160, 7
    %v3162 = vsub.s32 %v3159, %v3161
    %v3163 = vrot.slane %v3149, %v3162
    %v3164 = vcombine.high %v3081, %v454
    %v3166 = vunpack.c.l.s4 1983009808
    %v3167 = vunpack.c.0.s8 %v3166
    %v3168 = vlaneseq
    %v3169 = vshrl.u32 %v3168, 7
    %v3170 = vsub.s32 %v3167, %v3169
    %v3171 = vrot.slane %v3081, %v3170
    %v3173 = vunpack.c.l.s4 1983009808
    %v3174 = vunpack.c.0.s8 %v3173
    %v3175 = vlaneseq
    %v3176 = vshrl.u32 %v3175, 7
    %v3177 = vsub.s32 %v3174, %v3176
    %v3178 = vrot.slane %v3164, %v3177
    %v3179 = vcombine.low %v3156, %v3171
    %v3180 = vcombine.high %v3156, %v3171
    %v3182 = vunpack.c.l.s4 1934713408
    %v3183 = vunpack.c.0.s8 %v3182
    %v3184 = vlaneseq
    %v3185 = vshrl.u32 %v3184, 7
    %v3186 = vsub.s32 %v3183, %v3185
    %v3187 = vrot.slane %v3179, %v3186
    %v3189 = vunpack.c.l.s4 1934713408
    %v3190 = vunpack.c.0.s8 %v3189
    %v3191 = vlaneseq
    %v3192 = vshrl.u32 %v3191, 7
    %v3193 = vsub.s32 %v3190, %v3192
    %v3194 = vrot.slane %v3180, %v3193
    %v3195 = vcombine.low %v3163, %v3178
    %v3196 = vcombine.high %v3163, %v3178
    %v3198 = vunpack.c.l.s4 1934713408
    %v3199 = vunpack.c.0.s8 %v3198
    %v3200 = vlaneseq
    %v3201 = vshrl.u32 %v3200, 7
    %v3202 = vsub.s32 %v3199, %v3201
    %v3203 = vrot.slane %v3195, %v3202
    %v3205 = vunpack.c.l.s4 1934713408
    %v3206 = vunpack.c.0.s8 %v3205
    %v3207 = vlaneseq
    %v3208 = vshrl.u32 %v3207, 7
    %v3209 = vsub.s32 %v3206, %v3208
    %v3210 = vrot.slane %v3196, %v3209
    %v3211 = vcombine.high %v3187, 0
    %v3212 = vcombine.high %v3194, 0
    %v3213 = vcombine.high %v3203, 0
    %v3214 = vcombine.high %v3210, 0
    %v3215 = vcombine.low %v3121, %v3128
    %v3217 = vunpack.c.l.s4 1983009808
    %v3218 = vunpack.c.0.s8 %v3217
    %v3219 = vlaneseq
    %v3220 = vshrl.u32 %v3219, 7
    %v3221 = vsub.s32 %v3218, %v3220
    %v3222 = vrot.slane %v3215, %v3221
    %v3223 = vcombine.low %v3145, %v3146
    %v3225 = vunpack.c.l.s4 1983009808
    %v3226 = vunpack.c.0.s8 %v3225
    %v3227 = vlaneseq
    %v3228 = vshrl.u32 %v3227, 7
    %v3229 = vsub.s32 %v3226, %v3228
    %v3230 = vrot.slane %v3223, %v3229
    %v3231 = vcombine.low %v3137, %v3144
    %v3233 = vunpack.c.l.s4 1983009808
    %v3234 = vunpack.c.0.s8 %v3233
    %v3235 = vlaneseq
    %v3236 = vshrl.u32 %v3235, 7
    %v3237 = vsub.s32 %v3234, %v3236
    %v3238 = vrot.slane %v3231, %v3237
    %v3239 = vcombine.low %v3147, %v3148
    %v3241 = vunpack.c.l.s4 1983009808
    %v3242 = vunpack.c.0.s8 %v3241
    %v3243 = vlaneseq
    %v3244 = vshrl.u32 %v3243, 7
    %v3245 = vsub.s32 %v3242, %v3244
    %v3246 = vrot.slane %v3239, %v3245
    %v3247 = vcombine.low %v3222, %v3230
    %v3249 = vunpack.c.l.s4 1934713408
    %v3250 = vunpack.c.0.s8 %v3249
    %v3251 = vlaneseq
    %v3252 = vshrl.u32 %v3251, 7
    %v3253 = vsub.s32 %v3250, %v3252
    %v3254 = vrot.slane %v3247, %v3253
    %v3255 = vcombine.low %v3238, %v3246
    %v3257 = vunpack.c.l.s4 1934713408
    %v3258 = vunpack.c.0.s8 %v3257
    %v3259 = vlaneseq
    %v3260 = vshrl.u32 %v3259, 7
    %v3261 = vsub.s32 %v3258, %v3260
    %v3262 = vrot.slane %v3255, %v3261
    %v3263 = vcombine.low %v3254, %v3262
    %v3264 = vcombine.high %v3254, %v3262
    %v3265 = vcombine.low %v3187, %v3194
    %v3267 = vunpack.c.l.s4 1983009808
    %v3268 = vunpack.c.0.s8 %v3267
    %v3269 = vlaneseq
    %v3270 = vshrl.u32 %v3269, 7
    %v3271 = vsub.s32 %v3268, %v3270
    %v3272 = vrot.slane %v3265, %v3271
    %v3273 = vcombine.low %v3211, %v3212
    %v3275 = vunpack.c.l.s4 1983009808
    %v3276 = vunpack.c.0.s8 %v3275
    %v3277 = vlaneseq
    %v3278 = vshrl.u32 %v3277, 7
    %v3279 = vsub.s32 %v3276, %v3278
    %v3280 = vrot.slane %v3273, %v3279
    %v3281 = vcombine.low %v3203, %v3210
    %v3283 = vunpack.c.l.s4 1983009808
    %v3284 = vunpack.c.0.s8 %v3283
    %v3285 = vlaneseq
    %v3286 = vshrl.u32 %v3285, 7
    %v3287 = vsub.s32 %v3284, %v3286
    %v3288 = vrot.slane %v3281, %v3287
    %v3289 = vcombine.low %v3213, %v3214
    %v3291 = vunpack.c.l.s4 1983009808
    %v3292 = vunpack.c.0.s8 %v3291
    %v3293 = vlaneseq
    %v3294 = vshrl.u32 %v3293, 7
    %v3295 = vsub.s32 %v3292, %v3294
    %v3296 = vrot.slane %v3289, %v3295
    %v3297 = vcombine.low %v3272, %v3280
    %v3299 = vunpack.c.l.s4 1934713408
    %v3300 = vunpack.c.0.s8 %v3299
    %v3301 = vlaneseq
    %v3302 = vshrl.u32 %v3301, 7
    %v3303 = vsub.s32 %v3300, %v3302
    %v3304 = vrot.slane %v3297, %v3303
    %v3305 = vcombine.low %v3288, %v3296
    %v3307 = vunpack.c.l.s4 1934713408
    %v3308 = vunpack.c.0.s8 %v3307
    %v3309 = vlaneseq
    %v3310 = vshrl.u32 %v3309, 7
    %v3311 = vsub.s32 %v3308, %v3310
    %v3312 = vrot.slane %v3305, %v3311
    %v3313 = vcombine.low %v3304, %v3312
    %v3314 = vcombine.high %v3304, %v3312
    %v3317 = vpack.i.b16 %v3313, %v3263
    %v3318 = vshrl.u32 %v3263, 16
    %v3319 = vshrl.u32 %v3313, 16
    %v3320 = vpack.i.b16 %v3319, %v3318
    %v3323 = vpack.i.b16 %v3314, %v3264
    %v3324 = vshrl.u32 %v3264, 16
    %v3325 = vshrl.u32 %v3314, 16
    %v3326 = vpack.i.b16 %v3325, %v3324
    %v3327 = vpack.c.bf16 %v2790, %v2789
    %3329 = vrot.lane.b32.xlu0 %v3327, 96
    %v3330 = vpop.permute.xlu0 %3329
    %3331 = vrot.lane.b32.xlu0 %v3327, 64
    %v3332 = vpop.permute.xlu0 %3331
    %3333 = vrot.lane.b32.xlu0 %v3327, 32
    %v3334 = vpop.permute.xlu0 %3333
    %v3337 = vpack.i.b16 %v3330, %v3327
    %v3339 = vshrl.u32 %v3327, 16
    %v3340 = vshrl.u32 %v3330, 16
    %v3341 = vpack.i.b16 %v3340, %v3339
    %v3345 = vpack.i.b16 %v3334, %v3332
    %v3347 = vshrl.u32 %v3332, 16
    %v3348 = vshrl.u32 %v3334, 16
    %v3349 = vpack.i.b16 %v3348, %v3347
    %v3351 = vcombine.high %v3337, %v451
    %v3353 = vunpack.c.l.s4 1983009808
    %v3354 = vunpack.c.0.s8 %v3353
    %v3355 = vlaneseq
    %v3356 = vshrl.u32 %v3355, 7
    %v3357 = vsub.s32 %v3354, %v3356
    %v3358 = vrot.slane %v3337, %v3357
    %v3360 = vunpack.c.l.s4 1983009808
    %v3361 = vunpack.c.0.s8 %v3360
    %v3362 = vlaneseq
    %v3363 = vshrl.u32 %v3362, 7
    %v3364 = vsub.s32 %v3361, %v3363
    %v3365 = vrot.slane %v3351, %v3364
    %v3366 = vcombine.high %v3345, %v451
    %v3368 = vunpack.c.l.s4 1983009808
    %v3369 = vunpack.c.0.s8 %v3368
    %v3370 = vlaneseq
    %v3371 = vshrl.u32 %v3370, 7
    %v3372 = vsub.s32 %v3369, %v3371
    %v3373 = vrot.slane %v3345, %v3372
    %v3375 = vunpack.c.l.s4 1983009808
    %v3376 = vunpack.c.0.s8 %v3375
    %v3377 = vlaneseq
    %v3378 = vshrl.u32 %v3377, 7
    %v3379 = vsub.s32 %v3376, %v3378
    %v3380 = vrot.slane %v3366, %v3379
    %v3381 = vcombine.low %v3358, %v3373
    %v3382 = vcombine.high %v3358, %v3373
    %v3384 = vunpack.c.l.s4 1934713408
    %v3385 = vunpack.c.0.s8 %v3384
    %v3386 = vlaneseq
    %v3387 = vshrl.u32 %v3386, 7
    %v3388 = vsub.s32 %v3385, %v3387
    %v3389 = vrot.slane %v3381, %v3388
    %v3391 = vunpack.c.l.s4 1934713408
    %v3392 = vunpack.c.0.s8 %v3391
    %v3393 = vlaneseq
    %v3394 = vshrl.u32 %v3393, 7
    %v3395 = vsub.s32 %v3392, %v3394
    %v3396 = vrot.slane %v3382, %v3395
    %v3397 = vcombine.low %v3365, %v3380
    %v3398 = vcombine.high %v3365, %v3380
    %v3400 = vunpack.c.l.s4 1934713408
    %v3401 = vunpack.c.0.s8 %v3400
    %v3402 = vlaneseq
    %v3403 = vshrl.u32 %v3402, 7
    %v3404 = vsub.s32 %v3401, %v3403
    %v3405 = vrot.slane %v3397, %v3404
    %v3407 = vunpack.c.l.s4 1934713408
    %v3408 = vunpack.c.0.s8 %v3407
    %v3409 = vlaneseq
    %v3410 = vshrl.u32 %v3409, 7
    %v3411 = vsub.s32 %v3408, %v3410
    %v3412 = vrot.slane %v3398, %v3411
    %v3413 = vcombine.high %v3389, 0
    %v3414 = vcombine.high %v3396, 0
    %v3415 = vcombine.high %v3405, 0
    %v3416 = vcombine.high %v3412, 0
    %v3417 = vcombine.high %v3341, %v454
    %v3419 = vunpack.c.l.s4 1983009808
    %v3420 = vunpack.c.0.s8 %v3419
    %v3421 = vlaneseq
    %v3422 = vshrl.u32 %v3421, 7
    %v3423 = vsub.s32 %v3420, %v3422
    %v3424 = vrot.slane %v3341, %v3423
    %v3426 = vunpack.c.l.s4 1983009808
    %v3427 = vunpack.c.0.s8 %v3426
    %v3428 = vlaneseq
    %v3429 = vshrl.u32 %v3428, 7
    %v3430 = vsub.s32 %v3427, %v3429
    %v3431 = vrot.slane %v3417, %v3430
    %v3432 = vcombine.high %v3349, %v454
    %v3434 = vunpack.c.l.s4 1983009808
    %v3435 = vunpack.c.0.s8 %v3434
    %v3436 = vlaneseq
    %v3437 = vshrl.u32 %v3436, 7
    %v3438 = vsub.s32 %v3435, %v3437
    %v3439 = vrot.slane %v3349, %v3438
    %v3441 = vunpack.c.l.s4 1983009808
    %v3442 = vunpack.c.0.s8 %v3441
    %v3443 = vlaneseq
    %v3444 = vshrl.u32 %v3443, 7
    %v3445 = vsub.s32 %v3442, %v3444
    %v3446 = vrot.slane %v3432, %v3445
    %v3447 = vcombine.low %v3424, %v3439
    %v3448 = vcombine.high %v3424, %v3439
    %v3450 = vunpack.c.l.s4 1934713408
    %v3451 = vunpack.c.0.s8 %v3450
    %v3452 = vlaneseq
    %v3453 = vshrl.u32 %v3452, 7
    %v3454 = vsub.s32 %v3451, %v3453
    %v3455 = vrot.slane %v3447, %v3454
    %v3457 = vunpack.c.l.s4 1934713408
    %v3458 = vunpack.c.0.s8 %v3457
    %v3459 = vlaneseq
    %v3460 = vshrl.u32 %v3459, 7
    %v3461 = vsub.s32 %v3458, %v3460
    %v3462 = vrot.slane %v3448, %v3461
    %v3463 = vcombine.low %v3431, %v3446
    %v3464 = vcombine.high %v3431, %v3446
    %v3466 = vunpack.c.l.s4 1934713408
    %v3467 = vunpack.c.0.s8 %v3466
    %v3468 = vlaneseq
    %v3469 = vshrl.u32 %v3468, 7
    %v3470 = vsub.s32 %v3467, %v3469
    %v3471 = vrot.slane %v3463, %v3470
    %v3473 = vunpack.c.l.s4 1934713408
    %v3474 = vunpack.c.0.s8 %v3473
    %v3475 = vlaneseq
    %v3476 = vshrl.u32 %v3475, 7
    %v3477 = vsub.s32 %v3474, %v3476
    %v3478 = vrot.slane %v3464, %v3477
    %v3479 = vcombine.high %v3455, 0
    %v3480 = vcombine.high %v3462, 0
    %v3481 = vcombine.high %v3471, 0
    %v3482 = vcombine.high %v3478, 0
    %v3483 = vcombine.low %v3389, %v3396
    %v3485 = vunpack.c.l.s4 1983009808
    %v3486 = vunpack.c.0.s8 %v3485
    %v3487 = vlaneseq
    %v3488 = vshrl.u32 %v3487, 7
    %v3489 = vsub.s32 %v3486, %v3488
    %v3490 = vrot.slane %v3483, %v3489
    %v3491 = vcombine.low %v3413, %v3414
    %v3493 = vunpack.c.l.s4 1983009808
    %v3494 = vunpack.c.0.s8 %v3493
    %v3495 = vlaneseq
    %v3496 = vshrl.u32 %v3495, 7
    %v3497 = vsub.s32 %v3494, %v3496
    %v3498 = vrot.slane %v3491, %v3497
    %v3499 = vcombine.low %v3405, %v3412
    %v3501 = vunpack.c.l.s4 1983009808
    %v3502 = vunpack.c.0.s8 %v3501
    %v3503 = vlaneseq
    %v3504 = vshrl.u32 %v3503, 7
    %v3505 = vsub.s32 %v3502, %v3504
    %v3506 = vrot.slane %v3499, %v3505
    %v3507 = vcombine.low %v3415, %v3416
    %v3509 = vunpack.c.l.s4 1983009808
    %v3510 = vunpack.c.0.s8 %v3509
    %v3511 = vlaneseq
    %v3512 = vshrl.u32 %v3511, 7
    %v3513 = vsub.s32 %v3510, %v3512
    %v3514 = vrot.slane %v3507, %v3513
    %v3515 = vcombine.low %v3490, %v3498
    %v3517 = vunpack.c.l.s4 1934713408
    %v3518 = vunpack.c.0.s8 %v3517
    %v3519 = vlaneseq
    %v3520 = vshrl.u32 %v3519, 7
    %v3521 = vsub.s32 %v3518, %v3520
    %v3522 = vrot.slane %v3515, %v3521
    %v3523 = vcombine.low %v3506, %v3514
    %v3525 = vunpack.c.l.s4 1934713408
    %v3526 = vunpack.c.0.s8 %v3525
    %v3527 = vlaneseq
    %v3528 = vshrl.u32 %v3527, 7
    %v3529 = vsub.s32 %v3526, %v3528
    %v3530 = vrot.slane %v3523, %v3529
    %v3531 = vcombine.low %v3522, %v3530
    %v3532 = vcombine.high %v3522, %v3530
    %v3533 = vcombine.low %v3455, %v3462
    %v3535 = vunpack.c.l.s4 1983009808
    %v3536 = vunpack.c.0.s8 %v3535
    %v3537 = vlaneseq
    %v3538 = vshrl.u32 %v3537, 7
    %v3539 = vsub.s32 %v3536, %v3538
    %v3540 = vrot.slane %v3533, %v3539
    %v3541 = vcombine.low %v3479, %v3480
    %v3543 = vunpack.c.l.s4 1983009808
    %v3544 = vunpack.c.0.s8 %v3543
    %v3545 = vlaneseq
    %v3546 = vshrl.u32 %v3545, 7
    %v3547 = vsub.s32 %v3544, %v3546
    %v3548 = vrot.slane %v3541, %v3547
    %v3549 = vcombine.low %v3471, %v3478
    %v3551 = vunpack.c.l.s4 1983009808
    %v3552 = vunpack.c.0.s8 %v3551
    %v3553 = vlaneseq
    %v3554 = vshrl.u32 %v3553, 7
    %v3555 = vsub.s32 %v3552, %v3554
    %v3556 = vrot.slane %v3549, %v3555
    %v3557 = vcombine.low %v3481, %v3482
    %v3559 = vunpack.c.l.s4 1983009808
    %v3560 = vunpack.c.0.s8 %v3559
    %v3561 = vlaneseq
    %v3562 = vshrl.u32 %v3561, 7
    %v3563 = vsub.s32 %v3560, %v3562
    %v3564 = vrot.slane %v3557, %v3563
    %v3565 = vcombine.low %v3540, %v3548
    %v3567 = vunpack.c.l.s4 1934713408
    %v3568 = vunpack.c.0.s8 %v3567
    %v3569 = vlaneseq
    %v3570 = vshrl.u32 %v3569, 7
    %v3571 = vsub.s32 %v3568, %v3570
    %v3572 = vrot.slane %v3565, %v3571
    %v3573 = vcombine.low %v3556, %v3564
    %v3575 = vunpack.c.l.s4 1934713408
    %v3576 = vunpack.c.0.s8 %v3575
    %v3577 = vlaneseq
    %v3578 = vshrl.u32 %v3577, 7
    %v3579 = vsub.s32 %v3576, %v3578
    %v3580 = vrot.slane %v3573, %v3579
    %v3581 = vcombine.low %v3572, %v3580
    %v3582 = vcombine.high %v3572, %v3580
    %v3585 = vpack.i.b16 %v3581, %v3531
    %v3587 = vshrl.u32 %v3531, 16
    %v3588 = vshrl.u32 %v3581, 16
    %v3589 = vpack.i.b16 %v3588, %v3587
    %v3593 = vpack.i.b16 %v3582, %v3532
    %v3595 = vshrl.u32 %v3532, 16
    %v3596 = vshrl.u32 %v3582, 16
    %v3597 = vpack.i.b16 %v3596, %v3595
    %v3600 = vsel %vm1240, %v3049, 0
    %v3603 = vsel %vm1240, %v3317, 0
    %3605 = vmatprep.subr.bf16.mxu0 0
    %3606 = vmatpush1.bf16.xpose.msra.mxu0 0
    %3607 = vmatprep.subr.bf16.mxu0 0
    %3608 = vmatpush1.bf16.xpose.msra.mxu0 0
    %3609 = vmatprep.subr.bf16.mxu0 0
    %3610 = vmatpush1.bf16.xpose.msra.mxu0 0
    %3611 = vmatprep.subr.bf16.mxu0 0
    %3612 = vmatpush1.bf16.xpose.msra.mxu0 0
    %3613 = vmatprep.subr.bf16.mxu0 0
    %3614 = vmatpush1.bf16.xpose.msra.mxu0 0
    %3615 = vmatprep.subr.bf16.mxu0 0
    %3616 = vmatpush1.bf16.xpose.msra.mxu0 0
    %3617 = vmatprep.subr.bf16.mxu0 0
    %3618 = vmatpush1.bf16.xpose.msra.mxu0 0
    %3619 = vmatprep.subr.bf16.mxu0 0
    %3620 = vmatpush1.bf16.xpose.msra.mxu0 %v3603
    %3621 = vmatprep.subr.bf16.mxu0 0
    %3622 = vmatpush2.bf16.xpose.msra.mxu0 0
    %3623 = vmatprep.subr.bf16.mxu0 0
    %3624 = vmatpush2.bf16.xpose.msra.mxu0 0
    %3625 = vmatprep.subr.bf16.mxu0 0
    %3626 = vmatpush2.bf16.xpose.msra.mxu0 0
    %3627 = vmatprep.subr.bf16.mxu0 0
    %3628 = vmatpush2.bf16.xpose.msra.mxu0 0
    %3629 = vmatprep.subr.bf16.mxu0 0
    %3630 = vmatpush2.bf16.xpose.msra.mxu0 0
    %3631 = vmatprep.subr.bf16.mxu0 0
    %3632 = vmatpush2.bf16.xpose.msra.mxu0 0
    %3633 = vmatprep.subr.bf16.mxu0 0
    %3634 = vmatpush2.bf16.xpose.msra.mxu0 0
    %3635 = vmatprep.subr.bf16.mxu0 0
    %3636 = vmatpush2.bf16.xpose.msra.mxu0 0
    %3637 = vmatprep.mubr.bf16.mxu0 0
    %3638 = vmatmul.mubr.bf16.gmra.mxu0 %v3600
    %v3639 = vpop.f32.mrf.mxu0
    %v3640 = vadd.f32 %v158, %v3639
    %v3641 = vpop.f32.mrf.mxu0
    %v3642 = vpop.f32.mrf.mxu0
    %v3643 = vadd.f32 %v159, %v3642
    %v3644 = vpop.f32.mrf.mxu0
    %3645 = vdwg.mxu0
    %v3647 = vsel %vm1240, %v3052, 0
    %v3650 = vsel %vm1240, %v3320, 0
    %3652 = vmatprep.subr.bf16.mxu0 0
    %3653 = vmatpush1.bf16.xpose.msra.mxu0 0
    %3654 = vmatprep.subr.bf16.mxu0 0
    %3655 = vmatpush1.bf16.xpose.msra.mxu0 0
    %3656 = vmatprep.subr.bf16.mxu0 0
    %3657 = vmatpush1.bf16.xpose.msra.mxu0 0
    %3658 = vmatprep.subr.bf16.mxu0 0
    %3659 = vmatpush1.bf16.xpose.msra.mxu0 0
    %3660 = vmatprep.subr.bf16.mxu0 0
    %3661 = vmatpush1.bf16.xpose.msra.mxu0 0
    %3662 = vmatprep.subr.bf16.mxu0 0
    %3663 = vmatpush1.bf16.xpose.msra.mxu0 0
    %3664 = vmatprep.subr.bf16.mxu0 0
    %3665 = vmatpush1.bf16.xpose.msra.mxu0 0
    %3666 = vmatprep.subr.bf16.mxu0 0
    %3667 = vmatpush1.bf16.xpose.msra.mxu0 %v3650
    %3668 = vmatprep.subr.bf16.mxu0 0
    %3669 = vmatpush2.bf16.xpose.msra.mxu0 0
    %3670 = vmatprep.subr.bf16.mxu0 0
    %3671 = vmatpush2.bf16.xpose.msra.mxu0 0
    %3672 = vmatprep.subr.bf16.mxu0 0
    %3673 = vmatpush2.bf16.xpose.msra.mxu0 0
    %3674 = vmatprep.subr.bf16.mxu0 0
    %3675 = vmatpush2.bf16.xpose.msra.mxu0 0
    %3676 = vmatprep.subr.bf16.mxu0 0
    %3677 = vmatpush2.bf16.xpose.msra.mxu0 0
    %3678 = vmatprep.subr.bf16.mxu0 0
    %3679 = vmatpush2.bf16.xpose.msra.mxu0 0
    %3680 = vmatprep.subr.bf16.mxu0 0
    %3681 = vmatpush2.bf16.xpose.msra.mxu0 0
    %3682 = vmatprep.subr.bf16.mxu0 0
    %3683 = vmatpush2.bf16.xpose.msra.mxu0 0
    %3684 = vmatprep.mubr.bf16.mxu0 0
    %3685 = vmatmul.mubr.bf16.gmra.mxu0 %v3647
    %v3686 = vpop.f32.mrf.mxu0
    %v3687 = vadd.f32 %v158, %v3686
    %v3688 = vpop.f32.mrf.mxu0
    %v3689 = vpop.f32.mrf.mxu0
    %v3690 = vadd.f32 %v159, %v3689
    %v3691 = vpop.f32.mrf.mxu0
    %3692 = vdwg.mxu0
    %v3694 = vsel %vm1240, %v3055, 0
    %v3697 = vsel %vm1240, %v3323, 0
    %3699 = vmatprep.subr.bf16.mxu0 0
    %3700 = vmatpush1.bf16.xpose.msra.mxu0 0
    %3701 = vmatprep.subr.bf16.mxu0 0
    %3702 = vmatpush1.bf16.xpose.msra.mxu0 0
    %3703 = vmatprep.subr.bf16.mxu0 0
    %3704 = vmatpush1.bf16.xpose.msra.mxu0 0
    %3705 = vmatprep.subr.bf16.mxu0 0
    %3706 = vmatpush1.bf16.xpose.msra.mxu0 0
    %3707 = vmatprep.subr.bf16.mxu0 0
    %3708 = vmatpush1.bf16.xpose.msra.mxu0 0
    %3709 = vmatprep.subr.bf16.mxu0 0
    %3710 = vmatpush1.bf16.xpose.msra.mxu0 0
    %3711 = vmatprep.subr.bf16.mxu0 0
    %3712 = vmatpush1.bf16.xpose.msra.mxu0 0
    %3713 = vmatprep.subr.bf16.mxu0 0
    %3714 = vmatpush1.bf16.xpose.msra.mxu0 %v3697
    %3715 = vmatprep.subr.bf16.mxu0 0
    %3716 = vmatpush2.bf16.xpose.msra.mxu0 0
    %3717 = vmatprep.subr.bf16.mxu0 0
    %3718 = vmatpush2.bf16.xpose.msra.mxu0 0
    %3719 = vmatprep.subr.bf16.mxu0 0
    %3720 = vmatpush2.bf16.xpose.msra.mxu0 0
    %3721 = vmatprep.subr.bf16.mxu0 0
    %3722 = vmatpush2.bf16.xpose.msra.mxu0 0
    %3723 = vmatprep.subr.bf16.mxu0 0
    %3724 = vmatpush2.bf16.xpose.msra.mxu0 0
    %3725 = vmatprep.subr.bf16.mxu0 0
    %3726 = vmatpush2.bf16.xpose.msra.mxu0 0
    %3727 = vmatprep.subr.bf16.mxu0 0
    %3728 = vmatpush2.bf16.xpose.msra.mxu0 0
    %3729 = vmatprep.subr.bf16.mxu0 0
    %3730 = vmatpush2.bf16.xpose.msra.mxu0 0
    %3731 = vmatprep.mubr.bf16.mxu0 0
    %3732 = vmatmul.mubr.bf16.gmra.mxu0 %v3694
    %v3733 = vpop.f32.mrf.mxu0
    %v3734 = vadd.f32 %v158, %v3733
    %v3735 = vpop.f32.mrf.mxu0
    %v3736 = vpop.f32.mrf.mxu0
    %v3737 = vadd.f32 %v159, %v3736
    %v3738 = vpop.f32.mrf.mxu0
    %3739 = vdwg.mxu0
    %v3741 = vsel %vm1240, %v3058, 0
    %v3744 = vsel %vm1240, %v3326, 0
    %3746 = vmatprep.subr.bf16.mxu0 0
    %3747 = vmatpush1.bf16.xpose.msra.mxu0 0
    %3748 = vmatprep.subr.bf16.mxu0 0
    %3749 = vmatpush1.bf16.xpose.msra.mxu0 0
    %3750 = vmatprep.subr.bf16.mxu0 0
    %3751 = vmatpush1.bf16.xpose.msra.mxu0 0
    %3752 = vmatprep.subr.bf16.mxu0 0
    %3753 = vmatpush1.bf16.xpose.msra.mxu0 0
    %3754 = vmatprep.subr.bf16.mxu0 0
    %3755 = vmatpush1.bf16.xpose.msra.mxu0 0
    %3756 = vmatprep.subr.bf16.mxu0 0
    %3757 = vmatpush1.bf16.xpose.msra.mxu0 0
    %3758 = vmatprep.subr.bf16.mxu0 0
    %3759 = vmatpush1.bf16.xpose.msra.mxu0 0
    %3760 = vmatprep.subr.bf16.mxu0 0
    %3761 = vmatpush1.bf16.xpose.msra.mxu0 %v3744
    %3762 = vmatprep.subr.bf16.mxu0 0
    %3763 = vmatpush2.bf16.xpose.msra.mxu0 0
    %3764 = vmatprep.subr.bf16.mxu0 0
    %3765 = vmatpush2.bf16.xpose.msra.mxu0 0
    %3766 = vmatprep.subr.bf16.mxu0 0
    %3767 = vmatpush2.bf16.xpose.msra.mxu0 0
    %3768 = vmatprep.subr.bf16.mxu0 0
    %3769 = vmatpush2.bf16.xpose.msra.mxu0 0
    %3770 = vmatprep.subr.bf16.mxu0 0
    %3771 = vmatpush2.bf16.xpose.msra.mxu0 0
    %3772 = vmatprep.subr.bf16.mxu0 0
    %3773 = vmatpush2.bf16.xpose.msra.mxu0 0
    %3774 = vmatprep.subr.bf16.mxu0 0
    %3775 = vmatpush2.bf16.xpose.msra.mxu0 0
    %3776 = vmatprep.subr.bf16.mxu0 0
    %3777 = vmatpush2.bf16.xpose.msra.mxu0 0
    %3778 = vmatprep.mubr.bf16.mxu0 0
    %3779 = vmatmul.mubr.bf16.gmra.mxu0 %v3741
    %v3780 = vpop.f32.mrf.mxu0
    %v3781 = vadd.f32 %v158, %v3780
    %v3782 = vpop.f32.mrf.mxu0
    %v3783 = vpop.f32.mrf.mxu0
    %v3784 = vadd.f32 %v159, %v3783
    %v3785 = vpop.f32.mrf.mxu0
    %3786 = vdwg.mxu0
    %v3787 = vsel %vm1429, %v3640, -inf
    %3788 = vmax.xlane.f32.xlu0 %v3787
    %v3789 = vpop.xlane.xlu0 %3788
    %v3790 = vsel %vm1429, %v3643, -inf
    %3791 = vmax.xlane.f32.xlu0 %v3790
    %v3792 = vpop.xlane.xlu0 %3791
    %v3793 = vsel %vm1429, %v3687, -inf
    %3794 = vmax.xlane.f32.xlu0 %v3793
    %v3795 = vpop.xlane.xlu0 %3794
    %v3796 = vsel %vm1429, %v3690, -inf
    %3797 = vmax.xlane.f32.xlu0 %v3796
    %v3798 = vpop.xlane.xlu0 %3797
    %v3799 = vsel %vm1429, %v3734, -inf
    %3800 = vmax.xlane.f32.xlu0 %v3799
    %v3801 = vpop.xlane.xlu0 %3800
    %v3802 = vsel %vm1429, %v3737, -inf
    %3803 = vmax.xlane.f32.xlu0 %v3802
    %v3804 = vpop.xlane.xlu0 %3803
    %v3805 = vsel %vm1429, %v3781, -inf
    %3806 = vmax.xlane.f32.xlu0 %v3805
    %v3807 = vpop.xlane.xlu0 %3806
    %v3808 = vsel %vm1429, %v3784, -inf
    %3809 = vmax.xlane.f32.xlu0 %v3808
    %v3810 = vpop.xlane.xlu0 %3809
    %v3811 = vsub.f32 %v3640, %v3789
    %v3812 = vsub.f32 %v3643, %v3792
    %v3813 = vsub.f32 %v3687, %v3795
    %v3814 = vsub.f32 %v3690, %v3798
    %v3815 = vsub.f32 %v3734, %v3801
    %v3816 = vsub.f32 %v3737, %v3804
    %v3817 = vsub.f32 %v3781, %v3807
    %v3818 = vsub.f32 %v3784, %v3810
    %v3819 = vmul.f32 %v3811, 1.442695
    %v3820 = vpow.pop %v3819
    %v3821 = vmul.f32 %v3812, 1.442695
    %v3822 = vpow.pop %v3821
    %v3823 = vmul.f32 %v3813, 1.442695
    %v3824 = vpow.pop %v3823
    %v3825 = vmul.f32 %v3814, 1.442695
    %v3826 = vpow.pop %v3825
    %v3827 = vmul.f32 %v3815, 1.442695
    %v3828 = vpow.pop %v3827
    %v3829 = vmul.f32 %v3816, 1.442695
    %v3830 = vpow.pop %v3829
    %v3831 = vmul.f32 %v3817, 1.442695
    %v3832 = vpow.pop %v3831
    %v3833 = vmul.f32 %v3818, 1.442695
    %v3834 = vpow.pop %v3833
    %v3835 = vsel %vm1429, %v3820, 0.0
    %3836 = vadd.xlane.f32.xlu0 %v3835
    %v3837 = vpop.xlane.xlu0 %3836
    %v3838 = vsel %vm1429, %v3822, 0.0
    %3839 = vadd.xlane.f32.xlu0 %v3838
    %v3840 = vpop.xlane.xlu0 %3839
    %v3841 = vsel %vm1429, %v3824, 0.0
    %3842 = vadd.xlane.f32.xlu0 %v3841
    %v3843 = vpop.xlane.xlu0 %3842
    %v3844 = vsel %vm1429, %v3826, 0.0
    %3845 = vadd.xlane.f32.xlu0 %v3844
    %v3846 = vpop.xlane.xlu0 %3845
    %v3847 = vsel %vm1429, %v3828, 0.0
    %3848 = vadd.xlane.f32.xlu0 %v3847
    %v3849 = vpop.xlane.xlu0 %3848
    %v3850 = vsel %vm1429, %v3830, 0.0
    %3851 = vadd.xlane.f32.xlu0 %v3850
    %v3852 = vpop.xlane.xlu0 %3851
    %v3853 = vsel %vm1429, %v3832, 0.0
    %3854 = vadd.xlane.f32.xlu0 %v3853
    %v3855 = vpop.xlane.xlu0 %3854
    %v3856 = vsel %vm1429, %v3834, 0.0
    %3857 = vadd.xlane.f32.xlu0 %v3856
    %v3858 = vpop.xlane.xlu0 %3857
    %v3859 = vrcp.pop %v3837
    %v3860 = vrcp.pop %v3840
    %v3861 = vrcp.pop %v3843
    %v3862 = vrcp.pop %v3846
    %v3863 = vrcp.pop %v3849
    %v3864 = vrcp.pop %v3852
    %v3865 = vrcp.pop %v3855
    %v3866 = vrcp.pop %v3858
    %v3867 = vmul.f32 %v3820, %v3859
    %v3868 = vmul.f32 %v3822, %v3860
    %v3869 = vmul.f32 %v3824, %v3861
    %v3870 = vmul.f32 %v3826, %v3862
    %v3871 = vmul.f32 %v3828, %v3863
    %v3872 = vmul.f32 %v3830, %v3864
    %v3873 = vmul.f32 %v3832, %v3865
    %v3874 = vmul.f32 %v3834, %v3866
    %v3875 = vpack.c.bf16 %v3868, %v3867
    %v3876 = vpack.c.bf16 %v3870, %v3869
    %v3877 = vpack.c.bf16 %v3872, %v3871
    %v3878 = vpack.c.bf16 %v3874, %v3873
    %v3880 = vsel %vm1429, %v3875, 0
    %3882 = vmatprep.subr.bf16.mxu0 0
    %3883 = vmatpush1.bf16.msra.mxu0 0
    %3884 = vmatprep.subr.bf16.mxu0 0
    %3885 = vmatpush1.bf16.msra.mxu0 0
    %3886 = vmatprep.subr.bf16.mxu0 0
    %3887 = vmatpush1.bf16.msra.mxu0 0
    %3888 = vmatprep.subr.bf16.mxu0 0
    %3889 = vmatpush1.bf16.msra.mxu0 0
    %3890 = vmatprep.subr.bf16.mxu0 0
    %3891 = vmatpush1.bf16.msra.mxu0 0
    %3892 = vmatprep.subr.bf16.mxu0 0
    %3893 = vmatpush1.bf16.msra.mxu0 0
    %3894 = vmatprep.subr.bf16.mxu0 0
    %3895 = vmatpush1.bf16.msra.mxu0 0
    %3896 = vmatprep.subr.bf16.mxu0 0
    %3897 = vmatpush1.bf16.msra.mxu0 %v3585
    %3898 = vmatprep.subr.bf16.mxu0 0
    %3899 = vmatpush2.bf16.msra.mxu0 0
    %3900 = vmatprep.subr.bf16.mxu0 0
    %3901 = vmatpush2.bf16.msra.mxu0 0
    %3902 = vmatprep.subr.bf16.mxu0 0
    %3903 = vmatpush2.bf16.msra.mxu0 0
    %3904 = vmatprep.subr.bf16.mxu0 0
    %3905 = vmatpush2.bf16.msra.mxu0 0
    %3906 = vmatprep.subr.bf16.mxu0 0
    %3907 = vmatpush2.bf16.msra.mxu0 0
    %3908 = vmatprep.subr.bf16.mxu0 0
    %3909 = vmatpush2.bf16.msra.mxu0 0
    %3910 = vmatprep.subr.bf16.mxu0 0
    %3911 = vmatpush2.bf16.msra.mxu0 0
    %3912 = vmatprep.subr.bf16.mxu0 0
    %3913 = vmatpush2.bf16.msra.mxu0 0
    %3914 = vmatprep.mubr.bf16.mxu0 0
    %3915 = vmatmul.mubr.bf16.gmra.mxu0 %v3880
    %v3916 = vpop.f32.mrf.mxu0
    %v3917 = vadd.f32 0.0, %v3916
    %v3918 = vpop.f32.mrf.mxu0
    %v3919 = vpop.f32.mrf.mxu0
    %v3920 = vadd.f32 0.0, %v3919
    %v3921 = vpop.f32.mrf.mxu0
    %3922 = vdwg.mxu0
    %v3924 = vsel %vm1429, %v3876, 0
    %3926 = vmatprep.subr.bf16.mxu0 0
    %3927 = vmatpush1.bf16.msra.mxu0 0
    %3928 = vmatprep.subr.bf16.mxu0 0
    %3929 = vmatpush1.bf16.msra.mxu0 0
    %3930 = vmatprep.subr.bf16.mxu0 0
    %3931 = vmatpush1.bf16.msra.mxu0 0
    %3932 = vmatprep.subr.bf16.mxu0 0
    %3933 = vmatpush1.bf16.msra.mxu0 0
    %3934 = vmatprep.subr.bf16.mxu0 0
    %3935 = vmatpush1.bf16.msra.mxu0 0
    %3936 = vmatprep.subr.bf16.mxu0 0
    %3937 = vmatpush1.bf16.msra.mxu0 0
    %3938 = vmatprep.subr.bf16.mxu0 0
    %3939 = vmatpush1.bf16.msra.mxu0 0
    %3940 = vmatprep.subr.bf16.mxu0 0
    %3941 = vmatpush1.bf16.msra.mxu0 %v3589
    %3942 = vmatprep.subr.bf16.mxu0 0
    %3943 = vmatpush2.bf16.msra.mxu0 0
    %3944 = vmatprep.subr.bf16.mxu0 0
    %3945 = vmatpush2.bf16.msra.mxu0 0
    %3946 = vmatprep.subr.bf16.mxu0 0
    %3947 = vmatpush2.bf16.msra.mxu0 0
    %3948 = vmatprep.subr.bf16.mxu0 0
    %3949 = vmatpush2.bf16.msra.mxu0 0
    %3950 = vmatprep.subr.bf16.mxu0 0
    %3951 = vmatpush2.bf16.msra.mxu0 0
    %3952 = vmatprep.subr.bf16.mxu0 0
    %3953 = vmatpush2.bf16.msra.mxu0 0
    %3954 = vmatprep.subr.bf16.mxu0 0
    %3955 = vmatpush2.bf16.msra.mxu0 0
    %3956 = vmatprep.subr.bf16.mxu0 0
    %3957 = vmatpush2.bf16.msra.mxu0 0
    %3958 = vmatprep.mubr.bf16.mxu0 0
    %3959 = vmatmul.mubr.bf16.gmra.mxu0 %v3924
    %v3960 = vpop.f32.mrf.mxu0
    %v3961 = vadd.f32 0.0, %v3960
    %v3962 = vpop.f32.mrf.mxu0
    %v3963 = vpop.f32.mrf.mxu0
    %v3964 = vadd.f32 0.0, %v3963
    %v3965 = vpop.f32.mrf.mxu0
    %3966 = vdwg.mxu0
    %v3968 = vsel %vm1429, %v3877, 0
    %3970 = vmatprep.subr.bf16.mxu0 0
    %3971 = vmatpush1.bf16.msra.mxu0 0
    %3972 = vmatprep.subr.bf16.mxu0 0
    %3973 = vmatpush1.bf16.msra.mxu0 0
    %3974 = vmatprep.subr.bf16.mxu0 0
    %3975 = vmatpush1.bf16.msra.mxu0 0
    %3976 = vmatprep.subr.bf16.mxu0 0
    %3977 = vmatpush1.bf16.msra.mxu0 0
    %3978 = vmatprep.subr.bf16.mxu0 0
    %3979 = vmatpush1.bf16.msra.mxu0 0
    %3980 = vmatprep.subr.bf16.mxu0 0
    %3981 = vmatpush1.bf16.msra.mxu0 0
    %3982 = vmatprep.subr.bf16.mxu0 0
    %3983 = vmatpush1.bf16.msra.mxu0 0
    %3984 = vmatprep.subr.bf16.mxu0 0
    %3985 = vmatpush1.bf16.msra.mxu0 %v3593
    %3986 = vmatprep.subr.bf16.mxu0 0
    %3987 = vmatpush2.bf16.msra.mxu0 0
    %3988 = vmatprep.subr.bf16.mxu0 0
    %3989 = vmatpush2.bf16.msra.mxu0 0
    %3990 = vmatprep.subr.bf16.mxu0 0
    %3991 = vmatpush2.bf16.msra.mxu0 0
    %3992 = vmatprep.subr.bf16.mxu0 0
    %3993 = vmatpush2.bf16.msra.mxu0 0
    %3994 = vmatprep.subr.bf16.mxu0 0
    %3995 = vmatpush2.bf16.msra.mxu0 0
    %3996 = vmatprep.subr.bf16.mxu0 0
    %3997 = vmatpush2.bf16.msra.mxu0 0
    %3998 = vmatprep.subr.bf16.mxu0 0
    %3999 = vmatpush2.bf16.msra.mxu0 0
    %4000 = vmatprep.subr.bf16.mxu0 0
    %4001 = vmatpush2.bf16.msra.mxu0 0
    %4002 = vmatprep.mubr.bf16.mxu0 0
    %4003 = vmatmul.mubr.bf16.gmra.mxu0 %v3968
    %v4004 = vpop.f32.mrf.mxu0
    %v4005 = vadd.f32 0.0, %v4004
    %v4006 = vpop.f32.mrf.mxu0
    %v4007 = vpop.f32.mrf.mxu0
    %v4008 = vadd.f32 0.0, %v4007
    %v4009 = vpop.f32.mrf.mxu0
    %4010 = vdwg.mxu0
    %v4012 = vsel %vm1429, %v3878, 0
    %4014 = vmatprep.subr.bf16.mxu0 0
    %4015 = vmatpush1.bf16.msra.mxu0 0
    %4016 = vmatprep.subr.bf16.mxu0 0
    %4017 = vmatpush1.bf16.msra.mxu0 0
    %4018 = vmatprep.subr.bf16.mxu0 0
    %4019 = vmatpush1.bf16.msra.mxu0 0
    %4020 = vmatprep.subr.bf16.mxu0 0
    %4021 = vmatpush1.bf16.msra.mxu0 0
    %4022 = vmatprep.subr.bf16.mxu0 0
    %4023 = vmatpush1.bf16.msra.mxu0 0
    %4024 = vmatprep.subr.bf16.mxu0 0
    %4025 = vmatpush1.bf16.msra.mxu0 0
    %4026 = vmatprep.subr.bf16.mxu0 0
    %4027 = vmatpush1.bf16.msra.mxu0 0
    %4028 = vmatprep.subr.bf16.mxu0 0
    %4029 = vmatpush1.bf16.msra.mxu0 %v3597
    %4030 = vmatprep.subr.bf16.mxu0 0
    %4031 = vmatpush2.bf16.msra.mxu0 0
    %4032 = vmatprep.subr.bf16.mxu0 0
    %4033 = vmatpush2.bf16.msra.mxu0 0
    %4034 = vmatprep.subr.bf16.mxu0 0
    %4035 = vmatpush2.bf16.msra.mxu0 0
    %4036 = vmatprep.subr.bf16.mxu0 0
    %4037 = vmatpush2.bf16.msra.mxu0 0
    %4038 = vmatprep.subr.bf16.mxu0 0
    %4039 = vmatpush2.bf16.msra.mxu0 0
    %4040 = vmatprep.subr.bf16.mxu0 0
    %4041 = vmatpush2.bf16.msra.mxu0 0
    %4042 = vmatprep.subr.bf16.mxu0 0
    %4043 = vmatpush2.bf16.msra.mxu0 0
    %4044 = vmatprep.subr.bf16.mxu0 0
    %4045 = vmatpush2.bf16.msra.mxu0 0
    %4046 = vmatprep.mubr.bf16.mxu0 0
    %4047 = vmatmul.mubr.bf16.gmra.mxu0 %v4012
    %v4048 = vpop.f32.mrf.mxu0
    %v4049 = vadd.f32 0.0, %v4048
    %v4050 = vpop.f32.mrf.mxu0
    %v4051 = vpop.f32.mrf.mxu0
    %v4052 = vadd.f32 0.0, %v4051
    %v4053 = vpop.f32.mrf.mxu0
    %4054 = vdwg.mxu0
    %v4055 = vcombine.low %v3917, %v4005
    %v4056 = vcombine.high %v3917, %v4005
    %v4058 = vunpack.c.l.s4 1983009808
    %v4059 = vunpack.c.0.s8 %v4058
    %v4060 = vlaneseq
    %v4061 = vshrl.u32 %v4060, 7
    %v4062 = vsub.s32 %v4059, %v4061
    %v4063 = vrot.slane %v4055, %v4062
    %v4065 = vunpack.c.l.s4 1983009808
    %v4066 = vunpack.c.0.s8 %v4065
    %v4067 = vlaneseq
    %v4068 = vshrl.u32 %v4067, 7
    %v4069 = vsub.s32 %v4066, %v4068
    %v4070 = vrot.slane %v4056, %v4069
    %v4071 = vcombine.low %v3961, %v4049
    %v4072 = vcombine.high %v3961, %v4049
    %v4074 = vunpack.c.l.s4 1983009808
    %v4075 = vunpack.c.0.s8 %v4074
    %v4076 = vlaneseq
    %v4077 = vshrl.u32 %v4076, 7
    %v4078 = vsub.s32 %v4075, %v4077
    %v4079 = vrot.slane %v4071, %v4078
    %v4081 = vunpack.c.l.s4 1983009808
    %v4082 = vunpack.c.0.s8 %v4081
    %v4083 = vlaneseq
    %v4084 = vshrl.u32 %v4083, 7
    %v4085 = vsub.s32 %v4082, %v4084
    %v4086 = vrot.slane %v4072, %v4085
    %v4087 = vcombine.low %v4063, %v4079
    %v4088 = vcombine.high %v4063, %v4079
    %v4090 = vunpack.c.l.s4 1934713408
    %v4091 = vunpack.c.0.s8 %v4090
    %v4092 = vlaneseq
    %v4093 = vshrl.u32 %v4092, 7
    %v4094 = vsub.s32 %v4091, %v4093
    %v4095 = vrot.slane %v4087, %v4094
    %v4097 = vunpack.c.l.s4 1934713408
    %v4098 = vunpack.c.0.s8 %v4097
    %v4099 = vlaneseq
    %v4100 = vshrl.u32 %v4099, 7
    %v4101 = vsub.s32 %v4098, %v4100
    %v4102 = vrot.slane %v4088, %v4101
    %v4103 = vcombine.low %v4070, %v4086
    %v4104 = vcombine.high %v4070, %v4086
    %v4106 = vunpack.c.l.s4 1934713408
    %v4107 = vunpack.c.0.s8 %v4106
    %v4108 = vlaneseq
    %v4109 = vshrl.u32 %v4108, 7
    %v4110 = vsub.s32 %v4107, %v4109
    %v4111 = vrot.slane %v4103, %v4110
    %v4113 = vunpack.c.l.s4 1934713408
    %v4114 = vunpack.c.0.s8 %v4113
    %v4115 = vlaneseq
    %v4116 = vshrl.u32 %v4115, 7
    %v4117 = vsub.s32 %v4114, %v4116
    %v4118 = vrot.slane %v4104, %v4117
    %v4119 = vcombine.high %v4095, 0.0
    %v4120 = vcombine.high %v4102, 0.0
    %v4121 = vcombine.high %v4111, 0.0
    %v4122 = vcombine.high %v4118, 0.0
    %v4123 = vcombine.low %v3920, %v4008
    %v4124 = vcombine.high %v3920, %v4008
    %v4126 = vunpack.c.l.s4 1983009808
    %v4127 = vunpack.c.0.s8 %v4126
    %v4128 = vlaneseq
    %v4129 = vshrl.u32 %v4128, 7
    %v4130 = vsub.s32 %v4127, %v4129
    %v4131 = vrot.slane %v4123, %v4130
    %v4133 = vunpack.c.l.s4 1983009808
    %v4134 = vunpack.c.0.s8 %v4133
    %v4135 = vlaneseq
    %v4136 = vshrl.u32 %v4135, 7
    %v4137 = vsub.s32 %v4134, %v4136
    %v4138 = vrot.slane %v4124, %v4137
    %v4139 = vcombine.low %v3964, %v4052
    %v4140 = vcombine.high %v3964, %v4052
    %v4142 = vunpack.c.l.s4 1983009808
    %v4143 = vunpack.c.0.s8 %v4142
    %v4144 = vlaneseq
    %v4145 = vshrl.u32 %v4144, 7
    %v4146 = vsub.s32 %v4143, %v4145
    %v4147 = vrot.slane %v4139, %v4146
    %v4149 = vunpack.c.l.s4 1983009808
    %v4150 = vunpack.c.0.s8 %v4149
    %v4151 = vlaneseq
    %v4152 = vshrl.u32 %v4151, 7
    %v4153 = vsub.s32 %v4150, %v4152
    %v4154 = vrot.slane %v4140, %v4153
    %v4155 = vcombine.low %v4131, %v4147
    %v4156 = vcombine.high %v4131, %v4147
    %v4158 = vunpack.c.l.s4 1934713408
    %v4159 = vunpack.c.0.s8 %v4158
    %v4160 = vlaneseq
    %v4161 = vshrl.u32 %v4160, 7
    %v4162 = vsub.s32 %v4159, %v4161
    %v4163 = vrot.slane %v4155, %v4162
    %v4165 = vunpack.c.l.s4 1934713408
    %v4166 = vunpack.c.0.s8 %v4165
    %v4167 = vlaneseq
    %v4168 = vshrl.u32 %v4167, 7
    %v4169 = vsub.s32 %v4166, %v4168
    %v4170 = vrot.slane %v4156, %v4169
    %v4171 = vcombine.low %v4138, %v4154
    %v4172 = vcombine.high %v4138, %v4154
    %v4174 = vunpack.c.l.s4 1934713408
    %v4175 = vunpack.c.0.s8 %v4174
    %v4176 = vlaneseq
    %v4177 = vshrl.u32 %v4176, 7
    %v4178 = vsub.s32 %v4175, %v4177
    %v4179 = vrot.slane %v4171, %v4178
    %v4181 = vunpack.c.l.s4 1934713408
    %v4182 = vunpack.c.0.s8 %v4181
    %v4183 = vlaneseq
    %v4184 = vshrl.u32 %v4183, 7
    %v4185 = vsub.s32 %v4182, %v4184
    %v4186 = vrot.slane %v4172, %v4185
    %v4187 = vcombine.high %v4163, 0.0
    %v4188 = vcombine.high %v4170, 0.0
    %v4189 = vcombine.high %v4179, 0.0
    %v4190 = vcombine.high %v4186, 0.0
    %v4191 = vcombine.low %v4095, %v4102
    %v4193 = vunpack.c.l.s4 1983009808
    %v4194 = vunpack.c.0.s8 %v4193
    %v4195 = vlaneseq
    %v4196 = vshrl.u32 %v4195, 7
    %v4197 = vsub.s32 %v4194, %v4196
    %v4198 = vrot.slane %v4191, %v4197
    %v4199 = vcombine.low %v4119, %v4120
    %v4201 = vunpack.c.l.s4 1983009808
    %v4202 = vunpack.c.0.s8 %v4201
    %v4203 = vlaneseq
    %v4204 = vshrl.u32 %v4203, 7
    %v4205 = vsub.s32 %v4202, %v4204
    %v4206 = vrot.slane %v4199, %v4205
    %v4207 = vcombine.low %v4111, %v4118
    %v4209 = vunpack.c.l.s4 1983009808
    %v4210 = vunpack.c.0.s8 %v4209
    %v4211 = vlaneseq
    %v4212 = vshrl.u32 %v4211, 7
    %v4213 = vsub.s32 %v4210, %v4212
    %v4214 = vrot.slane %v4207, %v4213
    %v4215 = vcombine.low %v4121, %v4122
    %v4217 = vunpack.c.l.s4 1983009808
    %v4218 = vunpack.c.0.s8 %v4217
    %v4219 = vlaneseq
    %v4220 = vshrl.u32 %v4219, 7
    %v4221 = vsub.s32 %v4218, %v4220
    %v4222 = vrot.slane %v4215, %v4221
    %v4223 = vcombine.low %v4198, %v4206
    %v4224 = vcombine.high %v4198, %v4206
    %v4226 = vunpack.c.l.s4 1934713408
    %v4227 = vunpack.c.0.s8 %v4226
    %v4228 = vlaneseq
    %v4229 = vshrl.u32 %v4228, 7
    %v4230 = vsub.s32 %v4227, %v4229
    %v4231 = vrot.slane %v4223, %v4230
    %v4233 = vunpack.c.l.s4 1934713408
    %v4234 = vunpack.c.0.s8 %v4233
    %v4235 = vlaneseq
    %v4236 = vshrl.u32 %v4235, 7
    %v4237 = vsub.s32 %v4234, %v4236
    %v4238 = vrot.slane %v4224, %v4237
    %v4239 = vcombine.low %v4214, %v4222
    %v4240 = vcombine.high %v4214, %v4222
    %v4242 = vunpack.c.l.s4 1934713408
    %v4243 = vunpack.c.0.s8 %v4242
    %v4244 = vlaneseq
    %v4245 = vshrl.u32 %v4244, 7
    %v4246 = vsub.s32 %v4243, %v4245
    %v4247 = vrot.slane %v4239, %v4246
    %v4249 = vunpack.c.l.s4 1934713408
    %v4250 = vunpack.c.0.s8 %v4249
    %v4251 = vlaneseq
    %v4252 = vshrl.u32 %v4251, 7
    %v4253 = vsub.s32 %v4250, %v4252
    %v4254 = vrot.slane %v4240, %v4253
    %v4255 = vcombine.low %v4231, %v4247
    %v4256 = vcombine.high %v4231, %v4247
    %v4257 = vcombine.low %v4238, %v4254
    %v4258 = vcombine.high %v4238, %v4254
    %v4259 = vcombine.low %v4163, %v4170
    %v4261 = vunpack.c.l.s4 1983009808
    %v4262 = vunpack.c.0.s8 %v4261
    %v4263 = vlaneseq
    %v4264 = vshrl.u32 %v4263, 7
    %v4265 = vsub.s32 %v4262, %v4264
    %v4266 = vrot.slane %v4259, %v4265
    %v4267 = vcombine.low %v4187, %v4188
    %v4269 = vunpack.c.l.s4 1983009808
    %v4270 = vunpack.c.0.s8 %v4269
    %v4271 = vlaneseq
    %v4272 = vshrl.u32 %v4271, 7
    %v4273 = vsub.s32 %v4270, %v4272
    %v4274 = vrot.slane %v4267, %v4273
    %v4275 = vcombine.low %v4179, %v4186
    %v4277 = vunpack.c.l.s4 1983009808
    %v4278 = vunpack.c.0.s8 %v4277
    %v4279 = vlaneseq
    %v4280 = vshrl.u32 %v4279, 7
    %v4281 = vsub.s32 %v4278, %v4280
    %v4282 = vrot.slane %v4275, %v4281
    %v4283 = vcombine.low %v4189, %v4190
    %v4285 = vunpack.c.l.s4 1983009808
    %v4286 = vunpack.c.0.s8 %v4285
    %v4287 = vlaneseq
    %v4288 = vshrl.u32 %v4287, 7
    %v4289 = vsub.s32 %v4286, %v4288
    %v4290 = vrot.slane %v4283, %v4289
    %v4291 = vcombine.low %v4266, %v4274
    %v4292 = vcombine.high %v4266, %v4274
    %v4294 = vunpack.c.l.s4 1934713408
    %v4295 = vunpack.c.0.s8 %v4294
    %v4296 = vlaneseq
    %v4297 = vshrl.u32 %v4296, 7
    %v4298 = vsub.s32 %v4295, %v4297
    %v4299 = vrot.slane %v4291, %v4298
    %v4301 = vunpack.c.l.s4 1934713408
    %v4302 = vunpack.c.0.s8 %v4301
    %v4303 = vlaneseq
    %v4304 = vshrl.u32 %v4303, 7
    %v4305 = vsub.s32 %v4302, %v4304
    %v4306 = vrot.slane %v4292, %v4305
    %v4307 = vcombine.low %v4282, %v4290
    %v4308 = vcombine.high %v4282, %v4290
    %v4310 = vunpack.c.l.s4 1934713408
    %v4311 = vunpack.c.0.s8 %v4310
    %v4312 = vlaneseq
    %v4313 = vshrl.u32 %v4312, 7
    %v4314 = vsub.s32 %v4311, %v4313
    %v4315 = vrot.slane %v4307, %v4314
    %v4317 = vunpack.c.l.s4 1934713408
    %v4318 = vunpack.c.0.s8 %v4317
    %v4319 = vlaneseq
    %v4320 = vshrl.u32 %v4319, 7
    %v4321 = vsub.s32 %v4318, %v4320
    %v4322 = vrot.slane %v4308, %v4321
    %v4323 = vcombine.low %v4299, %v4315
    %v4324 = vcombine.high %v4299, %v4315
    %v4325 = vcombine.low %v4306, %v4322
    %v4326 = vcombine.high %v4306, %v4322
    %4329 = vrot.lane.b32.xlu0 %v4256, 32
    %v4330 = vpop.permute.xlu0 %4329
    %4331 = vrot.lane.b32.xlu0 %v4324, 32
    %v4332 = vpop.permute.xlu0 %4331
    %4337 = vrot.lane.b32.xlu0 %v4257, 64
    %v4338 = vpop.permute.xlu0 %4337
    %4339 = vrot.lane.b32.xlu0 %v4325, 64
    %v4340 = vpop.permute.xlu0 %4339
    %4345 = vrot.lane.b32.xlu0 %v4258, 96
    %v4346 = vpop.permute.xlu0 %4345
    %4347 = vrot.lane.b32.xlu0 %v4326, 96
    %v4348 = vpop.permute.xlu0 %4347
    %v4351 = vsel %vm1240, %v4255, %v4330
    %v4352 = vsel %vm1240, %v4323, %v4332
    %v4353 = vsel %vm1996, %v4351, %v4338
    %v4354 = vsel %vm1996, %v4352, %v4340
    %v4355 = vsel %vm1999, %v4353, %v4346
    %v4356 = vsel %vm1999, %v4354, %v4348
    %v4357 = vpack.c.bf16 %v4356, %v4355
    %s4358 = scalar_lea.vmem [#allocation10], 64
    %v4359 = vld [vmem:[%s4358] sm:$0xf]
    %v4360 = vld [vmem:[%s4358 + $0x4] sm:$0xf]
    %v4361 = vld [vmem:[%s4358 + $0x8] sm:$0xf]
    %v4362 = vld [vmem:[%s4358 + $0xc] sm:$0xf]
    %v4363 = vld [vmem:[%s4358 + $0x10] sm:$0xf]
    %v4364 = vld [vmem:[%s4358 + $0x14] sm:$0xf]
    %v4365 = vld [vmem:[%s4358 + $0x18] sm:$0xf]
    %v4366 = vld [vmem:[%s4358 + $0x1c] sm:$0xf]
    %v4367 = vld [vmem:[%s4358 + $0x20] sm:$0xf]
    %v4368 = vld [vmem:[%s4358 + $0x24] sm:$0xf]
    %v4369 = vld [vmem:[%s4358 + $0x28] sm:$0xf]
    %v4370 = vld [vmem:[%s4358 + $0x2c] sm:$0xf]
    %v4371 = vld [vmem:[%s4358 + $0x30] sm:$0xf]
    %v4372 = vld [vmem:[%s4358 + $0x34] sm:$0xf]
    %v4373 = vld [vmem:[%s4358 + $0x38] sm:$0xf]
    %v4374 = vld [vmem:[%s4358 + $0x3c] sm:$0xf]
    %v4375 = vld [vmem:[#allocation7 + $0xe] sm:$0x1]
    %v4376 = vlaneseq
    %v4377 = vshrl.u32 %v4376, 7
    %v4378 = vsub.s32 0, %v4377
    %v4379 = vrot.slane %v4375, %v4378
    %v4396 = vunpack.c.l.b16 %v4359
    %v4397 = vunpack.c.l.b16 %v4360
    %v4398 = vunpack.c.l.b16 %v4361
    %v4399 = vunpack.c.l.b16 %v4362
    %v4400 = vunpack.c.l.b16 %v4363
    %v4401 = vunpack.c.l.b16 %v4364
    %v4402 = vunpack.c.l.b16 %v4365
    %v4403 = vunpack.c.l.b16 %v4366
    %v4404 = vunpack.c.l.b16 %v4367
    %v4405 = vunpack.c.l.b16 %v4368
    %v4406 = vunpack.c.l.b16 %v4369
    %v4407 = vunpack.c.l.b16 %v4370
    %v4408 = vunpack.c.l.b16 %v4371
    %v4409 = vunpack.c.l.b16 %v4372
    %v4410 = vunpack.c.l.b16 %v4373
    %v4411 = vunpack.c.l.b16 %v4374
    %v4412 = vpack.c.b16 %v4397, %v4396
    %v4413 = vpack.c.b16 %v4399, %v4398
    %v4414 = vpack.c.b16 %v4401, %v4400
    %v4415 = vpack.c.b16 %v4403, %v4402
    %v4416 = vpack.c.b16 %v4405, %v4404
    %v4417 = vpack.c.b16 %v4407, %v4406
    %v4418 = vpack.c.b16 %v4409, %v4408
    %v4419 = vpack.c.b16 %v4411, %v4410
    %4428 = vmatprep.subr.bf16.mxu0 0
    %4429 = vmatpush1.bf16.msra.mxu0 %v4419
    %4430 = vmatprep.subr.bf16.mxu0 0
    %4431 = vmatpush1.bf16.msra.mxu0 %v4418
    %4432 = vmatprep.subr.bf16.mxu0 0
    %4433 = vmatpush1.bf16.msra.mxu0 %v4417
    %4434 = vmatprep.subr.bf16.mxu0 0
    %4435 = vmatpush1.bf16.msra.mxu0 %v4416
    %4436 = vmatprep.subr.bf16.mxu0 0
    %4437 = vmatpush1.bf16.msra.mxu0 %v4415
    %4438 = vmatprep.subr.bf16.mxu0 0
    %4439 = vmatpush1.bf16.msra.mxu0 %v4414
    %4440 = vmatprep.subr.bf16.mxu0 0
    %4441 = vmatpush1.bf16.msra.mxu0 %v4413
    %4442 = vmatprep.subr.bf16.mxu0 0
    %4443 = vmatpush1.bf16.msra.mxu0 %v4412
    %4444 = vmatprep.subr.bf16.mxu0 0
    %4445 = vmatpush2.bf16.msra.mxu0 0
    %4446 = vmatprep.subr.bf16.mxu0 0
    %4447 = vmatpush2.bf16.msra.mxu0 0
    %4448 = vmatprep.subr.bf16.mxu0 0
    %4449 = vmatpush2.bf16.msra.mxu0 0
    %4450 = vmatprep.subr.bf16.mxu0 0
    %4451 = vmatpush2.bf16.msra.mxu0 0
    %4452 = vmatprep.subr.bf16.mxu0 0
    %4453 = vmatpush2.bf16.msra.mxu0 0
    %4454 = vmatprep.subr.bf16.mxu0 0
    %4455 = vmatpush2.bf16.msra.mxu0 0
    %4456 = vmatprep.subr.bf16.mxu0 0
    %4457 = vmatpush2.bf16.msra.mxu0 0
    %4458 = vmatprep.subr.bf16.mxu0 0
    %4459 = vmatpush2.bf16.msra.mxu0 0
    %4460 = vmatprep.mubr.bf16.mxu0 0
    %4461 = vmatmul.mubr.bf16.gmra.mxu0 %v4357
    %v4462 = vpop.f32.mrf.mxu0
    %v4463 = vadd.f32 %v4379, %v4462
    %v4464 = vpop.f32.mrf.mxu0
    %v4465 = vpop.f32.mrf.mxu0
    %v4466 = vadd.f32 %v4379, %v4465
    %v4467 = vpop.f32.mrf.mxu0
    %4468 = vdwg.mxu0
    %v4469 = vadd.f32 %v2522, %v4463
    %v4470 = vadd.f32 %v2523, %v4466
    %v4471 = vld [vmem:[#allocation7 + $0x12] sm:$0x1]
    %v4472 = vld [vmem:[#allocation7 + $0x13] sm:$0x1]
    %4473 = vadd.xlane.f32.xlu0 %v4469
    %v4474 = vpop.xlane.xlu0 %4473
    %4475 = vadd.xlane.f32.xlu0 %v4470
    %v4476 = vpop.xlane.xlu0 %4475
    %v4477 = vmul.f32 %v4474, %v2121
    %v4478 = vmul.f32 %v4476, %v2121
    %v4479 = vsub.f32 %v4469, %v4477
    %v4480 = vsub.f32 %v4470, %v4478
    %v4481 = vmul.f32 %v4479, %v4479
    %v4482 = vmul.f32 %v4480, %v4480
    %4483 = vadd.xlane.f32.xlu0 %v4481
    %v4484 = vpop.xlane.xlu0 %4483
    %4485 = vadd.xlane.f32.xlu0 %v4482
    %v4486 = vpop.xlane.xlu0 %4485
    %v4487 = vmul.f32 %v4484, %v2121
    %v4488 = vmul.f32 %v4486, %v2121
    %v4489 = vadd.f32 %v4487, 1e-05
    %v4490 = vadd.f32 %v4488, 1e-05
    %v4491 = vrsqrt.pop %v4489
    %v4492 = vrsqrt.pop %v4490
    %v4493 = vmul.f32 %v4479, %v4491
    %v4494 = vmul.f32 %v4480, %v4492
    %v4495 = vlaneseq
    %v4496 = vshrl.u32 %v4495, 7
    %v4497 = vsub.s32 0, %v4496
    %v4498 = vrot.slane %v4471, %v4497
    %v4499 = vmul.f32 %v4493, %v4498
    %v4500 = vmul.f32 %v4494, %v4498
    %v4501 = vlaneseq
    %v4502 = vshrl.u32 %v4501, 7
    %v4503 = vsub.s32 0, %v4502
    %v4504 = vrot.slane %v4472, %v4503
    %v4505 = vadd.f32 %v4499, %v4504
    %v4506 = vadd.f32 %v4500, %v4504
    %v4507 = vpack.c.bf16 %v4506, %v4505
    %s4508 = scalar_lea.vmem [#allocation11], 128
    %v4509 = vld [vmem:[%s4508] sm:$0xff]
    %v4510 = vld [vmem:[%s4508 + $0x8] sm:$0xff]
    %v4511 = vld [vmem:[%s4508 + $0x10] sm:$0xff]
    %v4512 = vld [vmem:[%s4508 + $0x18] sm:$0xff]
    %v4513 = vld [vmem:[%s4508 + $0x20] sm:$0xff]
    %v4514 = vld [vmem:[%s4508 + $0x28] sm:$0xff]
    %v4515 = vld [vmem:[%s4508 + $0x30] sm:$0xff]
    %v4516 = vld [vmem:[%s4508 + $0x38] sm:$0xff]
    %v4517 = vld [vmem:[%s4508 + $0x40] sm:$0xff]
    %v4518 = vld [vmem:[%s4508 + $0x48] sm:$0xff]
    %v4519 = vld [vmem:[%s4508 + $0x50] sm:$0xff]
    %v4520 = vld [vmem:[%s4508 + $0x58] sm:$0xff]
    %v4521 = vld [vmem:[%s4508 + $0x60] sm:$0xff]
    %v4522 = vld [vmem:[%s4508 + $0x68] sm:$0xff]
    %v4523 = vld [vmem:[%s4508 + $0x70] sm:$0xff]
    %v4524 = vld [vmem:[%s4508 + $0x78] sm:$0xff]
    %v4541 = vunpack.c.l.b16 %v4509
    %v4542 = vunpack.c.h.b16 %v4509
    %v4543 = vunpack.c.l.b16 %v4510
    %v4544 = vunpack.c.h.b16 %v4510
    %v4545 = vunpack.c.l.b16 %v4511
    %v4546 = vunpack.c.h.b16 %v4511
    %v4547 = vunpack.c.l.b16 %v4512
    %v4548 = vunpack.c.h.b16 %v4512
    %v4549 = vunpack.c.l.b16 %v4513
    %v4550 = vunpack.c.h.b16 %v4513
    %v4551 = vunpack.c.l.b16 %v4514
    %v4552 = vunpack.c.h.b16 %v4514
    %v4553 = vunpack.c.l.b16 %v4515
    %v4554 = vunpack.c.h.b16 %v4515
    %v4555 = vunpack.c.l.b16 %v4516
    %v4556 = vunpack.c.h.b16 %v4516
    %v4557 = vunpack.c.l.b16 %v4517
    %v4558 = vunpack.c.h.b16 %v4517
    %v4559 = vunpack.c.l.b16 %v4518
    %v4560 = vunpack.c.h.b16 %v4518
    %v4561 = vunpack.c.l.b16 %v4519
    %v4562 = vunpack.c.h.b16 %v4519
    %v4563 = vunpack.c.l.b16 %v4520
    %v4564 = vunpack.c.h.b16 %v4520
    %v4565 = vunpack.c.l.b16 %v4521
    %v4566 = vunpack.c.h.b16 %v4521
    %v4567 = vunpack.c.l.b16 %v4522
    %v4568 = vunpack.c.h.b16 %v4522
    %v4569 = vunpack.c.l.b16 %v4523
    %v4570 = vunpack.c.h.b16 %v4523
    %v4571 = vunpack.c.l.b16 %v4524
    %v4572 = vunpack.c.h.b16 %v4524
    %v4573 = vpack.c.b16 %v4543, %v4541
    %v4574 = vpack.c.b16 %v4544, %v4542
    %v4575 = vpack.c.b16 %v4547, %v4545
    %v4576 = vpack.c.b16 %v4548, %v4546
    %v4577 = vpack.c.b16 %v4551, %v4549
    %v4578 = vpack.c.b16 %v4552, %v4550
    %v4579 = vpack.c.b16 %v4555, %v4553
    %v4580 = vpack.c.b16 %v4556, %v4554
    %v4581 = vpack.c.b16 %v4559, %v4557
    %v4582 = vpack.c.b16 %v4560, %v4558
    %v4583 = vpack.c.b16 %v4563, %v4561
    %v4584 = vpack.c.b16 %v4564, %v4562
    %v4585 = vpack.c.b16 %v4567, %v4565
    %v4586 = vpack.c.b16 %v4568, %v4566
    %v4587 = vpack.c.b16 %v4571, %v4569
    %v4588 = vpack.c.b16 %v4572, %v4570
    %4605 = vmatprep.subr.bf16.mxu0 %v4588
    %4606 = vmatpush1.bf16.msra.mxu0 %v4587
    %4607 = vmatprep.subr.bf16.mxu0 %v4586
    %4608 = vmatpush1.bf16.msra.mxu0 %v4585
    %4609 = vmatprep.subr.bf16.mxu0 %v4584
    %4610 = vmatpush1.bf16.msra.mxu0 %v4583
    %4611 = vmatprep.subr.bf16.mxu0 %v4582
    %4612 = vmatpush1.bf16.msra.mxu0 %v4581
    %4613 = vmatprep.subr.bf16.mxu0 %v4580
    %4614 = vmatpush1.bf16.msra.mxu0 %v4579
    %4615 = vmatprep.subr.bf16.mxu0 %v4578
    %4616 = vmatpush1.bf16.msra.mxu0 %v4577
    %4617 = vmatprep.subr.bf16.mxu0 %v4576
    %4618 = vmatpush1.bf16.msra.mxu0 %v4575
    %4619 = vmatprep.subr.bf16.mxu0 %v4574
    %4620 = vmatpush1.bf16.msra.mxu0 %v4573
    %4621 = vmatprep.subr.bf16.mxu0 0
    %4622 = vmatpush2.bf16.msra.mxu0 0
    %4623 = vmatprep.subr.bf16.mxu0 0
    %4624 = vmatpush2.bf16.msra.mxu0 0
    %4625 = vmatprep.subr.bf16.mxu0 0
    %4626 = vmatpush2.bf16.msra.mxu0 0
    %4627 = vmatprep.subr.bf16.mxu0 0
    %4628 = vmatpush2.bf16.msra.mxu0 0
    %4629 = vmatprep.subr.bf16.mxu0 0
    %4630 = vmatpush2.bf16.msra.mxu0 0
    %4631 = vmatprep.subr.bf16.mxu0 0
    %4632 = vmatpush2.bf16.msra.mxu0 0
    %4633 = vmatprep.subr.bf16.mxu0 0
    %4634 = vmatpush2.bf16.msra.mxu0 0
    %4635 = vmatprep.subr.bf16.mxu0 0
    %4636 = vmatpush2.bf16.msra.mxu0 0
    %4637 = vmatprep.mubr.bf16.mxu0 0
    %4638 = vmatmul.mubr.bf16.gmra.mxu0 %v4507
    %v4639 = vpop.f32.mrf.mxu0
    %v4640 = vadd.f32 0.0, %v4639
    %v4641 = vpop.f32.mrf.mxu0
    %v4642 = vadd.f32 0.0, %v4641
    %v4643 = vpop.f32.mrf.mxu0
    %v4644 = vadd.f32 0.0, %v4643
    %v4645 = vpop.f32.mrf.mxu0
    %v4646 = vadd.f32 0.0, %v4645
    %4647 = vdwg.mxu0
    %v4648 = vld [vmem:[#allocation7 + $0xf] sm:$0x1]
    %v4649 = vlaneseq
    %v4650 = vshrl.u32 %v4649, 7
    %v4651 = vsub.s32 0, %v4650
    %v4652 = vrot.slane %v4648, %v4651
    %v4653 = vadd.f32 %v4640, %v4652
    %v4654 = vadd.f32 %v4644, %v4652
    %v4655 = vmax.f32 %v4653, 0.0
    %v4656 = vmax.f32 %v4654, 0.0
    %v4657 = vld [vmem:[#allocation7 + $0x10] sm:$0x1]
    %v4658 = vlaneseq
    %v4659 = vshrl.u32 %v4658, 7
    %v4660 = vsub.s32 0, %v4659
    %v4661 = vrot.slane %v4657, %v4660
    %v4662 = vadd.f32 %v4642, %v4661
    %v4663 = vadd.f32 %v4646, %v4661
    %v4664 = vmax.f32 %v4662, 0.0
    %v4665 = vmax.f32 %v4663, 0.0
    %v4666 = vpack.c.bf16 %v4656, %v4655
    %v4667 = vpack.c.bf16 %v4665, %v4664
    %s4668 = scalar_lea.vmem [#allocation13], 128
    %v4669 = vld [vmem:[%s4668] sm:$0xf]
    %v4670 = vld [vmem:[%s4668 + $0x4] sm:$0xf]
    %v4671 = vld [vmem:[%s4668 + $0x8] sm:$0xf]
    %v4672 = vld [vmem:[%s4668 + $0xc] sm:$0xf]
    %v4673 = vld [vmem:[%s4668 + $0x10] sm:$0xf]
    %v4674 = vld [vmem:[%s4668 + $0x14] sm:$0xf]
    %v4675 = vld [vmem:[%s4668 + $0x18] sm:$0xf]
    %v4676 = vld [vmem:[%s4668 + $0x1c] sm:$0xf]
    %v4677 = vld [vmem:[%s4668 + $0x20] sm:$0xf]
    %v4678 = vld [vmem:[%s4668 + $0x24] sm:$0xf]
    %v4679 = vld [vmem:[%s4668 + $0x28] sm:$0xf]
    %v4680 = vld [vmem:[%s4668 + $0x2c] sm:$0xf]
    %v4681 = vld [vmem:[%s4668 + $0x30] sm:$0xf]
    %v4682 = vld [vmem:[%s4668 + $0x34] sm:$0xf]
    %v4683 = vld [vmem:[%s4668 + $0x38] sm:$0xf]
    %v4684 = vld [vmem:[%s4668 + $0x3c] sm:$0xf]
    %v4685 = vld [vmem:[%s4668 + $0x40] sm:$0xf]
    %v4686 = vld [vmem:[%s4668 + $0x44] sm:$0xf]
    %v4687 = vld [vmem:[%s4668 + $0x48] sm:$0xf]
    %v4688 = vld [vmem:[%s4668 + $0x4c] sm:$0xf]
    %v4689 = vld [vmem:[%s4668 + $0x50] sm:$0xf]
    %v4690 = vld [vmem:[%s4668 + $0x54] sm:$0xf]
    %v4691 = vld [vmem:[%s4668 + $0x58] sm:$0xf]
    %v4692 = vld [vmem:[%s4668 + $0x5c] sm:$0xf]
    %v4693 = vld [vmem:[%s4668 + $0x60] sm:$0xf]
    %v4694 = vld [vmem:[%s4668 + $0x64] sm:$0xf]
    %v4695 = vld [vmem:[%s4668 + $0x68] sm:$0xf]
    %v4696 = vld [vmem:[%s4668 + $0x6c] sm:$0xf]
    %v4697 = vld [vmem:[%s4668 + $0x70] sm:$0xf]
    %v4698 = vld [vmem:[%s4668 + $0x74] sm:$0xf]
    %v4699 = vld [vmem:[%s4668 + $0x78] sm:$0xf]
    %v4700 = vld [vmem:[%s4668 + $0x7c] sm:$0xf]
    %v4701 = vld [vmem:[#allocation7 + $0x11] sm:$0x1]
    %v4702 = vlaneseq
    %v4703 = vshrl.u32 %v4702, 7
    %v4704 = vsub.s32 0, %v4703
    %v4705 = vrot.slane %v4701, %v4704
    %v4738 = vunpack.c.l.b16 %v4669
    %v4739 = vunpack.c.l.b16 %v4670
    %v4740 = vunpack.c.l.b16 %v4671
    %v4741 = vunpack.c.l.b16 %v4672
    %v4742 = vunpack.c.l.b16 %v4673
    %v4743 = vunpack.c.l.b16 %v4674
    %v4744 = vunpack.c.l.b16 %v4675
    %v4745 = vunpack.c.l.b16 %v4676
    %v4746 = vunpack.c.l.b16 %v4677
    %v4747 = vunpack.c.l.b16 %v4678
    %v4748 = vunpack.c.l.b16 %v4679
    %v4749 = vunpack.c.l.b16 %v4680
    %v4750 = vunpack.c.l.b16 %v4681
    %v4751 = vunpack.c.l.b16 %v4682
    %v4752 = vunpack.c.l.b16 %v4683
    %v4753 = vunpack.c.l.b16 %v4684
    %v4754 = vunpack.c.l.b16 %v4685
    %v4755 = vunpack.c.l.b16 %v4686
    %v4756 = vunpack.c.l.b16 %v4687
    %v4757 = vunpack.c.l.b16 %v4688
    %v4758 = vunpack.c.l.b16 %v4689
    %v4759 = vunpack.c.l.b16 %v4690
    %v4760 = vunpack.c.l.b16 %v4691
    %v4761 = vunpack.c.l.b16 %v4692
    %v4762 = vunpack.c.l.b16 %v4693
    %v4763 = vunpack.c.l.b16 %v4694
    %v4764 = vunpack.c.l.b16 %v4695
    %v4765 = vunpack.c.l.b16 %v4696
    %v4766 = vunpack.c.l.b16 %v4697
    %v4767 = vunpack.c.l.b16 %v4698
    %v4768 = vunpack.c.l.b16 %v4699
    %v4769 = vunpack.c.l.b16 %v4700
    %v4770 = vpack.c.b16 %v4739, %v4738
    %v4771 = vpack.c.b16 %v4741, %v4740
    %v4772 = vpack.c.b16 %v4743, %v4742
    %v4773 = vpack.c.b16 %v4745, %v4744
    %v4774 = vpack.c.b16 %v4747, %v4746
    %v4775 = vpack.c.b16 %v4749, %v4748
    %v4776 = vpack.c.b16 %v4751, %v4750
    %v4777 = vpack.c.b16 %v4753, %v4752
    %v4778 = vpack.c.b16 %v4755, %v4754
    %v4779 = vpack.c.b16 %v4757, %v4756
    %v4780 = vpack.c.b16 %v4759, %v4758
    %v4781 = vpack.c.b16 %v4761, %v4760
    %v4782 = vpack.c.b16 %v4763, %v4762
    %v4783 = vpack.c.b16 %v4765, %v4764
    %v4784 = vpack.c.b16 %v4767, %v4766
    %v4785 = vpack.c.b16 %v4769, %v4768
    %4802 = vmatprep.subr.bf16.mxu0 0
    %4803 = vmatpush1.bf16.msra.mxu0 %v4777
    %4804 = vmatprep.subr.bf16.mxu0 0
    %4805 = vmatpush1.bf16.msra.mxu0 %v4776
    %4806 = vmatprep.subr.bf16.mxu0 0
    %4807 = vmatpush1.bf16.msra.mxu0 %v4775
    %4808 = vmatprep.subr.bf16.mxu0 0
    %4809 = vmatpush1.bf16.msra.mxu0 %v4774
    %4810 = vmatprep.subr.bf16.mxu0 0
    %4811 = vmatpush1.bf16.msra.mxu0 %v4773
    %4812 = vmatprep.subr.bf16.mxu0 0
    %4813 = vmatpush1.bf16.msra.mxu0 %v4772
    %4814 = vmatprep.subr.bf16.mxu0 0
    %4815 = vmatpush1.bf16.msra.mxu0 %v4771
    %4816 = vmatprep.subr.bf16.mxu0 0
    %4817 = vmatpush1.bf16.msra.mxu0 %v4770
    %4818 = vmatprep.subr.bf16.mxu0 0
    %4819 = vmatpush2.bf16.msra.mxu0 %v4785
    %4820 = vmatprep.subr.bf16.mxu0 0
    %4821 = vmatpush2.bf16.msra.mxu0 %v4784
    %4822 = vmatprep.subr.bf16.mxu0 0
    %4823 = vmatpush2.bf16.msra.mxu0 %v4783
    %4824 = vmatprep.subr.bf16.mxu0 0
    %4825 = vmatpush2.bf16.msra.mxu0 %v4782
    %4826 = vmatprep.subr.bf16.mxu0 0
    %4827 = vmatpush2.bf16.msra.mxu0 %v4781
    %4828 = vmatprep.subr.bf16.mxu0 0
    %4829 = vmatpush2.bf16.msra.mxu0 %v4780
    %4830 = vmatprep.subr.bf16.mxu0 0
    %4831 = vmatpush2.bf16.msra.mxu0 %v4779
    %4832 = vmatprep.subr.bf16.mxu0 0
    %4833 = vmatpush2.bf16.msra.mxu0 %v4778
    %4834 = vmatprep.mubr.bf16.mxu0 %v4667
    %4835 = vmatmul.mubr.bf16.gmra.mxu0 %v4666
    %v4836 = vpop.f32.mrf.mxu0
    %v4837 = vadd.f32 %v4705, %v4836
    %v4838 = vpop.f32.mrf.mxu0
    %v4839 = vpop.f32.mrf.mxu0
    %v4840 = vadd.f32 %v4705, %v4839
    %v4841 = vpop.f32.mrf.mxu0
    %4842 = vdwg.mxu0
    %v4843 = vadd.f32 %v4505, %v4837
    %v4844 = vadd.f32 %v4506, %v4840
    %v4845 = vld [vmem:[#allocation7 + $0x14] sm:$0x1]
    %v4846 = vld [vmem:[#allocation7 + $0x15] sm:$0x1]
    %4847 = vadd.xlane.f32.xlu0 %v4843
    %v4848 = vpop.xlane.xlu0 %4847
    %4849 = vadd.xlane.f32.xlu0 %v4844
    %v4850 = vpop.xlane.xlu0 %4849
    %v4851 = vmul.f32 %v4848, %v2121
    %v4852 = vmul.f32 %v4850, %v2121
    %v4853 = vsub.f32 %v4843, %v4851
    %v4854 = vsub.f32 %v4844, %v4852
    %v4855 = vmul.f32 %v4853, %v4853
    %v4856 = vmul.f32 %v4854, %v4854
    %4857 = vadd.xlane.f32.xlu0 %v4855
    %v4858 = vpop.xlane.xlu0 %4857
    %4859 = vadd.xlane.f32.xlu0 %v4856
    %v4860 = vpop.xlane.xlu0 %4859
    %v4861 = vmul.f32 %v4858, %v2121
    %v4862 = vmul.f32 %v4860, %v2121
    %v4863 = vadd.f32 %v4861, 1e-05
    %v4864 = vadd.f32 %v4862, 1e-05
    %v4865 = vrsqrt.pop %v4863
    %v4866 = vrsqrt.pop %v4864
    %v4867 = vmul.f32 %v4853, %v4865
    %v4868 = vmul.f32 %v4854, %v4866
    %v4869 = vlaneseq
    %v4870 = vshrl.u32 %v4869, 7
    %v4871 = vsub.s32 0, %v4870
    %v4872 = vrot.slane %v4845, %v4871
    %v4873 = vmul.f32 %v4867, %v4872
    %v4874 = vmul.f32 %v4868, %v4872
    %v4875 = vlaneseq
    %v4876 = vshrl.u32 %v4875, 7
    %v4877 = vsub.s32 0, %v4876
    %v4878 = vrot.slane %v4846, %v4877
    %v4879 = vadd.f32 %v4873, %v4878
    %v4880 = vadd.f32 %v4874, %v4878
    %v4881 = vpack.c.bf16 %v4880, %v4879
    %v4882 = vld [vmem:[#allocation14] sm:$0xf]
    %v4883 = vld [vmem:[#allocation14 + $0x4] sm:$0xf]
    %v4884 = vld [vmem:[#allocation14 + $0x8] sm:$0xf]
    %v4885 = vld [vmem:[#allocation14 + $0xc] sm:$0xf]
    %v4886 = vld [vmem:[#allocation14 + $0x10] sm:$0xf]
    %v4887 = vld [vmem:[#allocation14 + $0x14] sm:$0xf]
    %v4888 = vld [vmem:[#allocation14 + $0x18] sm:$0xf]
    %v4889 = vld [vmem:[#allocation14 + $0x1c] sm:$0xf]
    %v4890 = vld [vmem:[#allocation14 + $0x20] sm:$0xf]
    %v4891 = vld [vmem:[#allocation14 + $0x24] sm:$0xf]
    %v4892 = vld [vmem:[#allocation14 + $0x28] sm:$0xf]
    %v4893 = vld [vmem:[#allocation14 + $0x2c] sm:$0xf]
    %v4894 = vld [vmem:[#allocation14 + $0x30] sm:$0xf]
    %v4895 = vld [vmem:[#allocation14 + $0x34] sm:$0xf]
    %v4896 = vld [vmem:[#allocation14 + $0x38] sm:$0xf]
    %v4897 = vld [vmem:[#allocation14 + $0x3c] sm:$0xf]
    %v4898 = vld [vmem:[#allocation7 + $0x16] sm:$0x1]
    %v4899 = vlaneseq
    %v4900 = vshrl.u32 %v4899, 7
    %v4901 = vsub.s32 0, %v4900
    %v4902 = vrot.slane %v4898, %v4901
    %v4919 = vunpack.c.l.b16 %v4882
    %v4920 = vunpack.c.l.b16 %v4883
    %v4921 = vunpack.c.l.b16 %v4884
    %v4922 = vunpack.c.l.b16 %v4885
    %v4923 = vunpack.c.l.b16 %v4886
    %v4924 = vunpack.c.l.b16 %v4887
    %v4925 = vunpack.c.l.b16 %v4888
    %v4926 = vunpack.c.l.b16 %v4889
    %v4927 = vunpack.c.l.b16 %v4890
    %v4928 = vunpack.c.l.b16 %v4891
    %v4929 = vunpack.c.l.b16 %v4892
    %v4930 = vunpack.c.l.b16 %v4893
    %v4931 = vunpack.c.l.b16 %v4894
    %v4932 = vunpack.c.l.b16 %v4895
    %v4933 = vunpack.c.l.b16 %v4896
    %v4934 = vunpack.c.l.b16 %v4897
    %v4935 = vpack.c.b16 %v4920, %v4919
    %v4936 = vpack.c.b16 %v4922, %v4921
    %v4937 = vpack.c.b16 %v4924, %v4923
    %v4938 = vpack.c.b16 %v4926, %v4925
    %v4939 = vpack.c.b16 %v4928, %v4927
    %v4940 = vpack.c.b16 %v4930, %v4929
    %v4941 = vpack.c.b16 %v4932, %v4931
    %v4942 = vpack.c.b16 %v4934, %v4933
    %4951 = vmatprep.subr.bf16.mxu0 0
    %4952 = vmatpush1.bf16.msra.mxu0 %v4942
    %4953 = vmatprep.subr.bf16.mxu0 0
    %4954 = vmatpush1.bf16.msra.mxu0 %v4941
    %4955 = vmatprep.subr.bf16.mxu0 0
    %4956 = vmatpush1.bf16.msra.mxu0 %v4940
    %4957 = vmatprep.subr.bf16.mxu0 0
    %4958 = vmatpush1.bf16.msra.mxu0 %v4939
    %4959 = vmatprep.subr.bf16.mxu0 0
    %4960 = vmatpush1.bf16.msra.mxu0 %v4938
    %4961 = vmatprep.subr.bf16.mxu0 0
    %4962 = vmatpush1.bf16.msra.mxu0 %v4937
    %4963 = vmatprep.subr.bf16.mxu0 0
    %4964 = vmatpush1.bf16.msra.mxu0 %v4936
    %4965 = vmatprep.subr.bf16.mxu0 0
    %4966 = vmatpush1.bf16.msra.mxu0 %v4935
    %4967 = vmatprep.subr.bf16.mxu0 0
    %4968 = vmatpush2.bf16.msra.mxu0 0
    %4969 = vmatprep.subr.bf16.mxu0 0
    %4970 = vmatpush2.bf16.msra.mxu0 0
    %4971 = vmatprep.subr.bf16.mxu0 0
    %4972 = vmatpush2.bf16.msra.mxu0 0
    %4973 = vmatprep.subr.bf16.mxu0 0
    %4974 = vmatpush2.bf16.msra.mxu0 0
    %4975 = vmatprep.subr.bf16.mxu0 0
    %4976 = vmatpush2.bf16.msra.mxu0 0
    %4977 = vmatprep.subr.bf16.mxu0 0
    %4978 = vmatpush2.bf16.msra.mxu0 0
    %4979 = vmatprep.subr.bf16.mxu0 0
    %4980 = vmatpush2.bf16.msra.mxu0 0
    %4981 = vmatprep.subr.bf16.mxu0 0
    %4982 = vmatpush2.bf16.msra.mxu0 0
    %4983 = vmatprep.mubr.bf16.mxu0 0
    %4984 = vmatmul.mubr.bf16.gmra.mxu0 %v4881
    %v4985 = vpop.f32.mrf.mxu0
    %v4986 = vadd.f32 %v4902, %v4985
    %v4987 = vpop.f32.mrf.mxu0
    %v4988 = vpop.f32.mrf.mxu0
    %v4989 = vadd.f32 %v4902, %v4988
    %v4990 = vpop.f32.mrf.mxu0
    %4991 = vdwg.mxu0
    %v4992 = vmax.f32 %v4986, 0.0
    %v4993 = vmax.f32 %v4989, 0.0
    %v4994 = vpack.c.bf16 %v4993, %v4992
    %v4995 = vld [vmem:[#allocation16] sm:$0xf]
    %v4996 = vld [vmem:[#allocation16 + $0x4] sm:$0xf]
    %v4997 = vld [vmem:[#allocation16 + $0x8] sm:$0xf]
    %v4998 = vld [vmem:[#allocation16 + $0xc] sm:$0xf]
    %v4999 = vld [vmem:[#allocation16 + $0x10] sm:$0xf]
    %v5000 = vld [vmem:[#allocation16 + $0x14] sm:$0xf]
    %v5001 = vld [vmem:[#allocation16 + $0x18] sm:$0xf]
    %v5002 = vld [vmem:[#allocation16 + $0x1c] sm:$0xf]
    %v5003 = vld [vmem:[#allocation16 + $0x20] sm:$0xf]
    %v5004 = vld [vmem:[#allocation16 + $0x24] sm:$0xf]
    %v5005 = vld [vmem:[#allocation16 + $0x28] sm:$0xf]
    %v5006 = vld [vmem:[#allocation16 + $0x2c] sm:$0xf]
    %v5007 = vld [vmem:[#allocation16 + $0x30] sm:$0xf]
    %v5008 = vld [vmem:[#allocation16 + $0x34] sm:$0xf]
    %v5009 = vld [vmem:[#allocation16 + $0x38] sm:$0xf]
    %v5010 = vld [vmem:[#allocation16 + $0x3c] sm:$0xf]
    %v5011 = vld [vmem:[#allocation7 + $0x17] sm:$0x1]
    %v5012 = vlaneseq
    %v5013 = vshrl.u32 %v5012, 7
    %v5014 = vsub.s32 0, %v5013
    %v5015 = vrot.slane %v5011, %v5014
    %v5032 = vunpack.c.l.b16 %v4995
    %v5033 = vunpack.c.l.b16 %v4996
    %v5034 = vunpack.c.l.b16 %v4997
    %v5035 = vunpack.c.l.b16 %v4998
    %v5036 = vunpack.c.l.b16 %v4999
    %v5037 = vunpack.c.l.b16 %v5000
    %v5038 = vunpack.c.l.b16 %v5001
    %v5039 = vunpack.c.l.b16 %v5002
    %v5040 = vunpack.c.l.b16 %v5003
    %v5041 = vunpack.c.l.b16 %v5004
    %v5042 = vunpack.c.l.b16 %v5005
    %v5043 = vunpack.c.l.b16 %v5006
    %v5044 = vunpack.c.l.b16 %v5007
    %v5045 = vunpack.c.l.b16 %v5008
    %v5046 = vunpack.c.l.b16 %v5009
    %v5047 = vunpack.c.l.b16 %v5010
    %v5048 = vpack.c.b16 %v5033, %v5032
    %v5049 = vpack.c.b16 %v5035, %v5034
    %v5050 = vpack.c.b16 %v5037, %v5036
    %v5051 = vpack.c.b16 %v5039, %v5038
    %v5052 = vpack.c.b16 %v5041, %v5040
    %v5053 = vpack.c.b16 %v5043, %v5042
    %v5054 = vpack.c.b16 %v5045, %v5044
    %v5055 = vpack.c.b16 %v5047, %v5046
    %5064 = vmatprep.subr.bf16.mxu0 0
    %5065 = vmatpush1.bf16.msra.mxu0 %v5055
    %5066 = vmatprep.subr.bf16.mxu0 0
    %5067 = vmatpush1.bf16.msra.mxu0 %v5054
    %5068 = vmatprep.subr.bf16.mxu0 0
    %5069 = vmatpush1.bf16.msra.mxu0 %v5053
    %5070 = vmatprep.subr.bf16.mxu0 0
    %5071 = vmatpush1.bf16.msra.mxu0 %v5052
    %5072 = vmatprep.subr.bf16.mxu0 0
    %5073 = vmatpush1.bf16.msra.mxu0 %v5051
    %5074 = vmatprep.subr.bf16.mxu0 0
    %5075 = vmatpush1.bf16.msra.mxu0 %v5050
    %5076 = vmatprep.subr.bf16.mxu0 0
    %5077 = vmatpush1.bf16.msra.mxu0 %v5049
    %5078 = vmatprep.subr.bf16.mxu0 0
    %5079 = vmatpush1.bf16.msra.mxu0 %v5048
    %5080 = vmatprep.subr.bf16.mxu0 0
    %5081 = vmatpush2.bf16.msra.mxu0 0
    %5082 = vmatprep.subr.bf16.mxu0 0
    %5083 = vmatpush2.bf16.msra.mxu0 0
    %5084 = vmatprep.subr.bf16.mxu0 0
    %5085 = vmatpush2.bf16.msra.mxu0 0
    %5086 = vmatprep.subr.bf16.mxu0 0
    %5087 = vmatpush2.bf16.msra.mxu0 0
    %5088 = vmatprep.subr.bf16.mxu0 0
    %5089 = vmatpush2.bf16.msra.mxu0 0
    %5090 = vmatprep.subr.bf16.mxu0 0
    %5091 = vmatpush2.bf16.msra.mxu0 0
    %5092 = vmatprep.subr.bf16.mxu0 0
    %5093 = vmatpush2.bf16.msra.mxu0 0
    %5094 = vmatprep.subr.bf16.mxu0 0
    %5095 = vmatpush2.bf16.msra.mxu0 0
    %5096 = vmatprep.mubr.bf16.mxu0 0
    %5097 = vmatmul.mubr.bf16.gmra.mxu0 %v4994
    %v5098 = vpop.f32.mrf.mxu0
    %v5099 = vadd.f32 %v5015, %v5098
    %v5100 = vpop.f32.mrf.mxu0
    %v5101 = vpop.f32.mrf.mxu0
    %v5102 = vadd.f32 %v5015, %v5101
    %v5103 = vpop.f32.mrf.mxu0
    %5104 = vdwg.mxu0
    %v5105 = vrot.slane %v5099, 4
    %v5106 = vadd.f32 %v5099, %v5105
    %v5107 = vrot.slane %v5106, 2
    %v5108 = vadd.f32 %v5106, %v5107
    %v5109 = vrot.slane %v5108, 1
    %v5110 = vadd.f32 %v5108, %v5109
    %v5111 = vrot.slane %v5102, 4
    %v5112 = vadd.f32 %v5102, %v5111
    %v5113 = vrot.slane %v5112, 2
    %v5114 = vadd.f32 %v5112, %v5113
    %v5115 = vrot.slane %v5114, 1
    %v5116 = vadd.f32 %v5114, %v5115
    %v5117 = vrcp.pop 8.0
    %v5118 = vmul.f32 %v5110, %v5117
    %v5119 = vmul.f32 %v5116, %v5117
    %vm5122 = vcmask 1041409
    %v5123 = vsel %vm5122, %v5119, %v5118
    %5125 = vst [vmem:[#allocation17] sm:$0x3] %v5123
    // Predicated region
    $region74: #{tpu_custom_call.1} parent=1 // pred_check
      _
    $region75: #{tpu_custom_call.1} parent=1 // pred_check_branch
      %5127 = sbr.rel (0) target = $region77
    $region76: #{tpu_custom_call.1} parent=1 // pred_region
      %s5129 = ssub.s32 32, 32
      %5130 = vsyncadd [#allocation4], %s5129
      %s5132 = sshll.u32 [#allocation17], 4
      %s5133 = int_to_ptr.vmem [resolvable:$true] %s5132
      %5135 = dma.vmem_to_hbm [thread:$0]  %s5133, 32, %s9, [#allocation4]
    $region77: #{tpu_custom_call.1} parent=1 // pred_fallthru
      _
    // Predicated region
    $region78: #{tpu_custom_call.1} parent=1 // pred_check
      _
    $region79: #{tpu_custom_call.1} parent=1 // pred_check_branch
      %5137 = sbr.rel (0) target = $region81
    $region80: #{tpu_custom_call.1} parent=1 // pred_region
      %5138 = dma.done [#allocation4], 32
    $region81: #{tpu_custom_call.1} parent=1 // pred_fallthru
      _
    %5139 = vsyncpa [#allocation3], 1
    %5140 = vsyncpa [#allocation6], 1
    %5141 = vsyncpa [#allocation9], 1
    %5142 = vsyncpa [#allocation12], 1
    %5143 = vsyncpa [#allocation15], 1
    %5144 = vsyncpa [#allocation4], 1

</llo_original>
